<compile_context>
chip_gen: v6e
topology: v6e:2x2x1
jax: 0.10.0
libtpu: 0.0.40
codegen_flags: <defaults>
</compile_context>

<pallas_src>
import functools

import jax
import jax.numpy as jnp
from jax.experimental import pallas as pl
from jax.experimental.pallas import tpu as pltpu

BN_EPS = 1e-5
LEAKY_SLOPE = 0.2

H1 = 256        # first hidden width
H2 = 64         # second hidden width (logical)
H2_PAD = 128    # second hidden width padded to a full lane register


def _leaky_relu(x):
    return jnp.where(x >= 0, x, LEAKY_SLOPE * x)


def _round_up(n, m):
    return ((n + m - 1) // m) * m


def _pick_batch_tile(batch):
    """Prefer large, MXU/HBM-friendly batch tiles; pad+mask otherwise."""
    for t in (1024, 512, 256):
        if batch % t == 0:
            return t
    if batch <= 1024:
        return _round_up(batch, 8)      # single (possibly padded) tile
    return 512                          # cdiv grid, padded/masked last tile


# ---------------------------------------------------------------------------
# Stage 1:  z1 = x @ W1  (bf16 out)  + per-tile sum / sum-of-squares of z1
# ---------------------------------------------------------------------------
def _linear_stats_kernel(x_ref, w_ref, z_ref, stats_ref):
    z = jnp.dot(x_ref[...].astype(jnp.bfloat16), w_ref[...],
                preferred_element_type=jnp.float32)
    zb = z.astype(jnp.bfloat16)
    z_ref[...] = zb
    zf = zb.astype(jnp.float32)
    stats_ref[0:1, :] = jnp.sum(zf, axis=0, keepdims=True)
    stats_ref[1:2, :] = jnp.sum(zf * zf, axis=0, keepdims=True)


# ---------------------------------------------------------------------------
# Stage 2:  a = leaky(z1*scale+shift); z2 = a @ W2_pad (bf16 out) + stats(z2)
# ---------------------------------------------------------------------------
def _bn_act_linear_stats_kernel(z_ref, scale_ref, shift_ref, w_ref,
                                zout_ref, stats_ref, *, n_rows, needs_mask):
    a = _leaky_relu(z_ref[...].astype(jnp.float32) * scale_ref[...]
                    + shift_ref[...])
    if needs_mask:
        # Zero padded batch rows so they contribute nothing to z2 / stats2.
        tile_b = a.shape[0]
        row = pl.program_id(0) * tile_b + jax.lax.broadcasted_iota(
            jnp.int32, (tile_b, 1), 0)
        a = jnp.where(row < n_rows, a, 0.0)
    z = jnp.dot(a.astype(jnp.bfloat16), w_ref[...],
                preferred_element_type=jnp.float32)
    zb = z.astype(jnp.bfloat16)
    zout_ref[...] = zb
    zf = zb.astype(jnp.float32)
    stats_ref[0:1, :] = jnp.sum(zf, axis=0, keepdims=True)
    stats_ref[1:2, :] = jnp.sum(zf * zf, axis=0, keepdims=True)


# ---------------------------------------------------------------------------
# Stage 3:  a = leaky(z2*scale+shift); out = a . w3 + b3  (VPU + lane reduce)
# ---------------------------------------------------------------------------
def _bn_act_head_kernel(z_ref, scale_ref, shift_ref, w3_ref, b3_ref, out_ref):
    a = _leaky_relu(z_ref[...].astype(jnp.float32) * scale_ref[...]
                    + shift_ref[...])
    out = jnp.sum(a * w3_ref[...], axis=-1, keepdims=True) + b3_ref[...]
    out_ref[...] = out.astype(out_ref.dtype)


def _fold_bn(stats_tiles, gamma, beta, n_rows):
    """Reduce per-tile [n_tiles,2,H] stats and fold BN into scale/shift."""
    s = jnp.sum(stats_tiles, axis=0)             # (2, H) f32
    inv_n = 1.0 / float(n_rows)
    mu = s[0:1, :] * inv_n
    var = jnp.maximum(s[1:2, :] * inv_n - mu * mu, 0.0)
    scale = gamma * jax.lax.rsqrt(var + BN_EPS)
    shift = beta - mu * scale
    return scale, shift


def pack_params(params):
    """One-time parameter packing (bf16 weights, 64->128 lane padding)."""
    w2p = jnp.zeros((H1, H2_PAD), jnp.bfloat16)
    w2p = w2p.at[:, :H2].set(params["w2"].astype(jnp.bfloat16))
    g2p = jnp.zeros((1, H2_PAD), jnp.float32).at[:, :H2].set(params["g2"])
    be2p = jnp.zeros((1, H2_PAD), jnp.float32).at[:, :H2].set(params["be2"])
    w3row = jnp.zeros((1, H2_PAD), jnp.float32).at[:, :H2].set(params["w3"].T)
    return {
        "w1": params["w1"].astype(jnp.bfloat16),     # [F, 256] bf16
        "g1": params["g1"], "be1": params["be1"],    # [1, 256] f32
        "w2p": w2p,                                  # [256, 128] bf16
        "g2p": g2p, "be2p": be2p,                    # [1, 128] f32
        "w3row": w3row,                              # [1, 128] f32
        "b3": params["b3"],                          # [1, 1] f32
    }


def dis_wgan_forward(x, packed):
    """x: [B, features] float32.  packed: dict from pack_params()."""
    batch, feat = x.shape
    tile_b = _pick_batch_tile(batch)
    n_tiles = (batch + tile_b - 1) // tile_b
    padded = n_tiles * tile_b
    needs_mask = padded != batch
    if needs_mask:
        # Zero rows: z1 of a zero row is exactly 0 (no bias), so stats1 stay
        # correct; stage 2 masks them explicitly.
        x = jnp.pad(x, ((0, padded - batch), (0, 0)))

    cp = pltpu.CompilerParams(
        dimension_semantics=("parallel",),
        vmem_limit_bytes=32 * 1024 * 1024)

    # ---- Stage 1: z1 = x @ W1 (bf16), per-tile stats ----
    z1, stats1 = pl.pallas_call(
        _linear_stats_kernel,
        grid=(n_tiles,),
        in_specs=[pl.BlockSpec((tile_b, feat), lambda i: (i, 0)),
                  pl.BlockSpec((feat, H1), lambda i: (0, 0))],
        out_specs=[pl.BlockSpec((tile_b, H1), lambda i: (i, 0)),
                   pl.BlockSpec((None, 2, H1), lambda i: (i, 0, 0))],
        out_shape=(jax.ShapeDtypeStruct((padded, H1), jnp.bfloat16),
                   jax.ShapeDtypeStruct((n_tiles, 2, H1), jnp.float32)),
        compiler_params=cp,
    )(x, packed["w1"])

    scale1, shift1 = _fold_bn(stats1, packed["g1"], packed["be1"], batch)

    # ---- Stage 2: BN1 + LeakyReLU + Linear(256->128 padded), per-tile stats ----
    z2, stats2 = pl.pallas_call(
        functools.partial(_bn_act_linear_stats_kernel,
                          n_rows=batch, needs_mask=needs_mask),
        grid=(n_tiles,),
        in_specs=[pl.BlockSpec((tile_b, H1), lambda i: (i, 0)),
                  pl.BlockSpec((1, H1), lambda i: (0, 0)),
                  pl.BlockSpec((1, H1), lambda i: (0, 0)),
                  pl.BlockSpec((H1, H2_PAD), lambda i: (0, 0))],
        out_specs=[pl.BlockSpec((tile_b, H2_PAD), lambda i: (i, 0)),
                   pl.BlockSpec((None, 2, H2_PAD), lambda i: (i, 0, 0))],
        out_shape=(jax.ShapeDtypeStruct((padded, H2_PAD), jnp.bfloat16),
                   jax.ShapeDtypeStruct((n_tiles, 2, H2_PAD), jnp.float32)),
        compiler_params=cp,
    )(z1, scale1, shift1, packed["w2p"])

    scale2, shift2 = _fold_bn(stats2, packed["g2p"], packed["be2p"], batch)

    # ---- Stage 3: BN2 + LeakyReLU + head (dot with w3 row, + b3) ----
    out = pl.pallas_call(
        _bn_act_head_kernel,
        grid=(n_tiles,),
        in_specs=[pl.BlockSpec((tile_b, H2_PAD), lambda i: (i, 0)),
                  pl.BlockSpec((1, H2_PAD), lambda i: (0, 0)),
                  pl.BlockSpec((1, H2_PAD), lambda i: (0, 0)),
                  pl.BlockSpec((1, H2_PAD), lambda i: (0, 0)),
                  pl.BlockSpec((1, 1), lambda i: (0, 0))],
        out_specs=pl.BlockSpec((tile_b, 1), lambda i: (i, 0)),
        out_shape=jax.ShapeDtypeStruct((padded, 1), jnp.float32),
        compiler_params=cp,
    )(z2, scale2, shift2, packed["w3row"], packed["b3"])

    if needs_mask:
        out = out[:batch]
    return out


def init_params(key, features=512):
    """Deterministic synthetic parameter init (shapes match the nn.Module)."""
    ks = jax.random.split(key, 6)

    def lin(kw, kb, fan_in, fan_out):
        bound = 1.0 / (fan_in ** 0.5)
        w = jax.random.uniform(kw, (fan_in, fan_out), jnp.float32, -bound, bound)
        b = jax.random.uniform(kb, (1, fan_out), jnp.float32, -bound, bound)
        return w, b

    w1, b1 = lin(ks[0], ks[1], features, H1)
    w2, b2 = lin(ks[2], ks[3], H1, H2)
    w3, b3 = lin(ks[4], ks[5], H2, 1)
    return {
        "w1": w1, "b1": b1,
        "g1": jnp.ones((1, H1), jnp.float32),
        "be1": jnp.zeros((1, H1), jnp.float32),
        "w2": w2, "b2": b2,
        "g2": jnp.ones((1, H2), jnp.float32),
        "be2": jnp.zeros((1, H2), jnp.float32),
        "w3": w3, "b3": b3,
    }


def _reference_f32(x, p):
    """PyTorch-semantics reference, all f32 (with the b1/b2 biases)."""
    h = x @ p["w1"] + p["b1"]
    mu = h.mean(0, keepdims=True)
    var = ((h - mu) ** 2).mean(0, keepdims=True)
    h = _leaky_relu((h - mu) * jax.lax.rsqrt(var + BN_EPS) * p["g1"] + p["be1"])
    h = h @ p["w2"] + p["b2"]
    mu = h.mean(0, keepdims=True)
    var = ((h - mu) ** 2).mean(0, keepdims=True)
    h = _leaky_relu((h - mu) * jax.lax.rsqrt(var + BN_EPS) * p["g2"] + p["be2"])
    return h @ p["w3"] + p["b3"]


def _reference_kernel_precision(x, p):
    """Reference mirroring the kernel's bf16 matmuls / bf16 intermediates /
    folded (E[z^2]-mu^2) BatchNorm arithmetic."""
    n = x.shape[0]
    inv_n = 1.0 / float(n)

    def bn_leaky(z_bf, g, be):
        zf = z_bf.astype(jnp.float32)
        mu = jnp.sum(zf, axis=0, keepdims=True) * inv_n
        var = jnp.maximum(
            jnp.sum(zf * zf, axis=0, keepdims=True) * inv_n - mu * mu, 0.0)
        scale = g * jax.lax.rsqrt(var + BN_EPS)
        shift = be - mu * scale
        return _leaky_relu(zf * scale + shift)

    z1 = jnp.dot(x.astype(jnp.bfloat16), p["w1"].astype(jnp.bfloat16),
                 preferred_element_type=jnp.float32).astype(jnp.bfloat16)
    a1 = bn_leaky(z1, p["g1"], p["be1"])
    z2 = jnp.dot(a1.astype(jnp.bfloat16), p["w2"].astype(jnp.bfloat16),
                 preferred_element_type=jnp.float32).astype(jnp.bfloat16)
    a2 = bn_leaky(z2, p["g2"], p["be2"])
    return jnp.sum(a2 * p["w3"].T, axis=-1, keepdims=True) + p["b3"]


if __name__ == "__main__":
    FEATURES = 512   # module default
    BATCH = 512      # evenly-tiled path

    key = jax.random.PRNGKey(0)
    k_x, k_p = jax.random.split(key)
    x = jax.random.normal(k_x, (BATCH, FEATURES), jnp.float32)
    params = init_params(k_p, FEATURES)
    packed = pack_params(params)          # one-time packing (outside jit)

    fwd = jax.jit(dis_wgan_forward)
    out = jax.block_until_ready(fwd(x, packed))
    assert out.shape == (BATCH, 1)

    # Tight check against a reference that mirrors the kernel's precision.
    ref_bits = _reference_kernel_precision(x, params)
    assert jnp.allclose(out, ref_bits, atol=2e-3, rtol=2e-3), \
        "mismatch vs precision-matched reference"

    # Loose sanity check against the exact f32 PyTorch-semantics reference
    # (bf16 matmul operands / intermediates are an intentional trade-off).
    ref_f32 = _reference_f32(x, params)
    assert float(jnp.max(jnp.abs(out - ref_f32))) < 0.3, \
        "too far from f32 PyTorch-semantics reference"

    # Exercise the padded / masked-last-tile path with an odd batch size.
    BATCH2 = 333
    x2 = jax.random.normal(jax.random.PRNGKey(1), (BATCH2, FEATURES),
                           jnp.float32)
    out2 = jax.block_until_ready(jax.jit(dis_wgan_forward)(x2, packed))
    assert out2.shape == (BATCH2, 1)
    ref2 = _reference_kernel_precision(x2, params)
    assert jnp.allclose(out2, ref2, atol=2e-3, rtol=2e-3), \
        "padded-batch mismatch vs precision-matched reference"

    # TODO(synk): eval-mode BatchNorm (running stats) is not implemented; this
    # kernel matches the module's training-mode forward only.
    print("KERNEL_OK")
</pallas_src>

<mosaic_0001>
module attributes {stable_mosaic.version = 11 : i64} {
  func.func @_linear_stats_kernel(%arg0: i32, %arg1: memref<512x512xf32, #tpu.memory_space<vmem>>, %arg2: memref<512x256xbf16, #tpu.memory_space<vmem>>, %arg3: memref<512x256xbf16, #tpu.memory_space<vmem>>, %arg4: memref<1x2x256xf32, #tpu.memory_space<vmem>>) attributes {dimension_semantics = [#tpu.dimension_semantics<parallel>], iteration_bounds = array<i64: 1>, scalar_prefetch = 0 : i64, scratch_operands = 0 : i64, tpu.core_type = #tpu.core_type<tc>, window_params = [{transform_indices = @transform_0, window_bounds = array<i64: 512, 512>}, {pipeline_mode = #tpu.pipeline_mode<synchronous>, transform_indices = @transform_1, window_bounds = array<i64: 512, 256>}, {transform_indices = @transform_2, window_bounds = array<i64: 512, 256>}, {transform_indices = @transform_3, window_bounds = array<i64: 1, 2, 256>}]} {
    %c0 = arith.constant 0 : index
    %c0_0 = arith.constant 0 : index
    %0 = vector.load %arg1[%c0, %c0_0] : memref<512x512xf32, #tpu.memory_space<vmem>>, vector<512x512xf32>
    %1 = arith.truncf %0 : vector<512x512xf32> to vector<512x512xbf16>
    %c0_1 = arith.constant 0 : index
    %c0_2 = arith.constant 0 : index
    %2 = vector.load %arg2[%c0_1, %c0_2] : memref<512x256xbf16, #tpu.memory_space<vmem>>, vector<512x256xbf16>
    %cst = arith.constant dense<0.000000e+00> : vector<512x256xf32>
    %3 = tpu.matmul %1, %2, %cst {dimension_numbers = #tpu.dot_dimension_numbers<[1], [0], [0], [1], [0, 0, 1, 1], [], []>} : vector<512x512xbf16>, vector<512x256xbf16>, vector<512x256xf32> -> vector<512x256xf32>
    %4 = arith.truncf %3 : vector<512x256xf32> to vector<512x256xbf16>
    %c0_3 = arith.constant 0 : index
    %c0_4 = arith.constant 0 : index
    %5 = vector.load %arg3[%c0_3, %c0_4] : memref<512x256xbf16, #tpu.memory_space<vmem>>, vector<512x256xbf16>
    tpu.vector_store %arg3[%c0_3, %c0_4], %4 {strides = array<i32>} : memref<512x256xbf16, #tpu.memory_space<vmem>>, vector<512x256xbf16>,
    %6 = arith.extf %4 : vector<512x256xbf16> to vector<512x256xf32>
    %cst_5 = arith.constant dense<0.000000e+00> : vector<256xf32>
    %7 = vector.multi_reduction <add>, %6, %cst_5 [0] : vector<512x256xf32> to vector<256xf32>
    %8 = vector.shape_cast %7 : vector<256xf32> to vector<1x256xf32>
    %c0_6 = arith.constant 0 : index
    %c0_7 = arith.constant 0 : index
    %c0_8 = arith.constant 0 : index
    %9 = vector.load %arg4[%c0_6, %c0_7, %c0_8] : memref<1x2x256xf32, #tpu.memory_space<vmem>>, vector<1x1x256xf32>
    %10 = vector.shape_cast %9 : vector<1x1x256xf32> to vector<1x256xf32>
    %11 = vector.shape_cast %8 : vector<1x256xf32> to vector<1x1x256xf32>
    tpu.vector_store %arg4[%c0_6, %c0_7, %c0_8], %11 {strides = array<i32>} : memref<1x2x256xf32, #tpu.memory_space<vmem>>, vector<1x1x256xf32>,
    %12 = arith.mulf %6, %6 : vector<512x256xf32>
    %cst_9 = arith.constant dense<0.000000e+00> : vector<256xf32>
    %13 = vector.multi_reduction <add>, %12, %cst_9 [0] : vector<512x256xf32> to vector<256xf32>
    %14 = vector.shape_cast %13 : vector<256xf32> to vector<1x256xf32>
    %c0_10 = arith.constant 0 : index
    %c1 = arith.constant 1 : index
    %c0_11 = arith.constant 0 : index
    %15 = vector.load %arg4[%c0_10, %c1, %c0_11] : memref<1x2x256xf32, #tpu.memory_space<vmem>>, vector<1x1x256xf32>
    %16 = vector.shape_cast %15 : vector<1x1x256xf32> to vector<1x256xf32>
    %17 = vector.shape_cast %14 : vector<1x256xf32> to vector<1x1x256xf32>
    tpu.vector_store %arg4[%c0_10, %c1, %c0_11], %17 {strides = array<i32>} : memref<1x2x256xf32, #tpu.memory_space<vmem>>, vector<1x1x256xf32>,
    return
  }
  func.func @transform_0(%arg0: i32) -> (i32, i32) {
    %c0_i32 = arith.constant 0 : i32
    %c0_i32_0 = arith.constant 0 : i32
    return %arg0, %c0_i32 : i32, i32
  }
  func.func @transform_1(%arg0: i32) -> (i32, i32) {
    %c0_i32 = arith.constant 0 : i32
    %c0_i32_0 = arith.constant 0 : i32
    %c0_i32_1 = arith.constant 0 : i32
    return %c0_i32, %c0_i32_0 : i32, i32
  }
  func.func @transform_2(%arg0: i32) -> (i32, i32) {
    %c0_i32 = arith.constant 0 : i32
    %c0_i32_0 = arith.constant 0 : i32
    return %arg0, %c0_i32 : i32, i32
  }
  func.func @transform_3(%arg0: i32) -> (i32, i32, i32) {
    %c0_i32 = arith.constant 0 : i32
    %c0_i32_0 = arith.constant 0 : i32
    %c0_i32_1 = arith.constant 0 : i32
    return %arg0, %c0_i32, %c0_i32_0 : i32, i32, i32
  }
}

module attributes {stable_mosaic.version = 11 : i64} {
  func.func @_bn_act_linear_stats_kernel(%arg0: i32, %arg1: memref<512x256xbf16, #tpu.memory_space<vmem>>, %arg2: memref<1x256xf32, #tpu.memory_space<vmem>>, %arg3: memref<1x256xf32, #tpu.memory_space<vmem>>, %arg4: memref<256x128xbf16, #tpu.memory_space<vmem>>, %arg5: memref<512x128xbf16, #tpu.memory_space<vmem>>, %arg6: memref<1x2x128xf32, #tpu.memory_space<vmem>>) attributes {dimension_semantics = [#tpu.dimension_semantics<parallel>], iteration_bounds = array<i64: 1>, scalar_prefetch = 0 : i64, scratch_operands = 0 : i64, tpu.core_type = #tpu.core_type<tc>, window_params = [{transform_indices = @transform_0, window_bounds = array<i64: 512, 256>}, {pipeline_mode = #tpu.pipeline_mode<synchronous>, transform_indices = @transform_1, window_bounds = array<i64: 1, 256>}, {pipeline_mode = #tpu.pipeline_mode<synchronous>, transform_indices = @transform_2, window_bounds = array<i64: 1, 256>}, {pipeline_mode = #tpu.pipeline_mode<synchronous>, transform_indices = @transform_3, window_bounds = array<i64: 256, 128>}, {transform_indices = @transform_4, window_bounds = array<i64: 512, 128>}, {transform_indices = @transform_5, window_bounds = array<i64: 1, 2, 128>}]} {
    %c0 = arith.constant 0 : index
    %c0_0 = arith.constant 0 : index
    %0 = vector.load %arg1[%c0, %c0_0] : memref<512x256xbf16, #tpu.memory_space<vmem>>, vector<512x256xbf16>
    %1 = arith.extf %0 : vector<512x256xbf16> to vector<512x256xf32>
    %c0_1 = arith.constant 0 : index
    %c0_2 = arith.constant 0 : index
    %2 = vector.load %arg2[%c0_1, %c0_2] : memref<1x256xf32, #tpu.memory_space<vmem>>, vector<1x256xf32>
    %3 = vector.broadcast %2 : vector<1x256xf32> to vector<512x256xf32>
    %4 = arith.mulf %1, %3 : vector<512x256xf32>
    %c0_3 = arith.constant 0 : index
    %c0_4 = arith.constant 0 : index
    %5 = vector.load %arg3[%c0_3, %c0_4] : memref<1x256xf32, #tpu.memory_space<vmem>>, vector<1x256xf32>
    %6 = vector.broadcast %5 : vector<1x256xf32> to vector<512x256xf32>
    %7 = arith.addf %4, %6 : vector<512x256xf32>
    %cst = arith.constant 0.000000e+00 : f32
    %8 = vector.broadcast %cst : f32 to vector<512x256xf32>
    %9 = arith.cmpf oge, %7, %8 : vector<512x256xf32>
    %cst_5 = arith.constant 2.000000e-01 : f32
    %10 = vector.broadcast %cst_5 : f32 to vector<512x256xf32>
    %11 = arith.mulf %10, %7 : vector<512x256xf32>
    %12 = arith.select %9, %7, %11 : vector<512x256xi1>, vector<512x256xf32>
    %13 = arith.truncf %12 : vector<512x256xf32> to vector<512x256xbf16>
    %c0_6 = arith.constant 0 : index
    %c0_7 = arith.constant 0 : index
    %14 = vector.load %arg4[%c0_6, %c0_7] : memref<256x128xbf16, #tpu.memory_space<vmem>>, vector<256x128xbf16>
    %cst_8 = arith.constant dense<0.000000e+00> : vector<512x128xf32>
    %15 = tpu.matmul %13, %14, %cst_8 {dimension_numbers = #tpu.dot_dimension_numbers<[1], [0], [0], [1], [0, 0, 1, 1], [], []>} : vector<512x256xbf16>, vector<256x128xbf16>, vector<512x128xf32> -> vector<512x128xf32>
    %16 = arith.truncf %15 : vector<512x128xf32> to vector<512x128xbf16>
    %c0_9 = arith.constant 0 : index
    %c0_10 = arith.constant 0 : index
    %17 = vector.load %arg5[%c0_9, %c0_10] : memref<512x128xbf16, #tpu.memory_space<vmem>>, vector<512x128xbf16>
    tpu.vector_store %arg5[%c0_9, %c0_10], %16 {strides = array<i32>} : memref<512x128xbf16, #tpu.memory_space<vmem>>, vector<512x128xbf16>,
    %18 = arith.extf %16 : vector<512x128xbf16> to vector<512x128xf32>
    %cst_11 = arith.constant dense<0.000000e+00> : vector<128xf32>
    %19 = vector.multi_reduction <add>, %18, %cst_11 [0] : vector<512x128xf32> to vector<128xf32>
    %20 = vector.shape_cast %19 : vector<128xf32> to vector<1x128xf32>
    %c0_12 = arith.constant 0 : index
    %c0_13 = arith.constant 0 : index
    %c0_14 = arith.constant 0 : index
    %21 = vector.load %arg6[%c0_12, %c0_13, %c0_14] : memref<1x2x128xf32, #tpu.memory_space<vmem>>, vector<1x1x128xf32>
    %22 = vector.shape_cast %21 : vector<1x1x128xf32> to vector<1x128xf32>
    %23 = vector.shape_cast %20 : vector<1x128xf32> to vector<1x1x128xf32>
    tpu.vector_store %arg6[%c0_12, %c0_13, %c0_14], %23 {strides = array<i32>} : memref<1x2x128xf32, #tpu.memory_space<vmem>>, vector<1x1x128xf32>,
    %24 = arith.mulf %18, %18 : vector<512x128xf32>
    %cst_15 = arith.constant dense<0.000000e+00> : vector<128xf32>
    %25 = vector.multi_reduction <add>, %24, %cst_15 [0] : vector<512x128xf32> to vector<128xf32>
    %26 = vector.shape_cast %25 : vector<128xf32> to vector<1x128xf32>
    %c0_16 = arith.constant 0 : index
    %c1 = arith.constant 1 : index
    %c0_17 = arith.constant 0 : index
    %27 = vector.load %arg6[%c0_16, %c1, %c0_17] : memref<1x2x128xf32, #tpu.memory_space<vmem>>, vector<1x1x128xf32>
    %28 = vector.shape_cast %27 : vector<1x1x128xf32> to vector<1x128xf32>
    %29 = vector.shape_cast %26 : vector<1x128xf32> to vector<1x1x128xf32>
    tpu.vector_store %arg6[%c0_16, %c1, %c0_17], %29 {strides = array<i32>} : memref<1x2x128xf32, #tpu.memory_space<vmem>>, vector<1x1x128xf32>,
    return
  }
  func.func @transform_0(%arg0: i32) -> (i32, i32) {
    %c0_i32 = arith.constant 0 : i32
    %c0_i32_0 = arith.constant 0 : i32
    return %arg0, %c0_i32 : i32, i32
  }
  func.func @transform_1(%arg0: i32) -> (i32, i32) {
    %c0_i32 = arith.constant 0 : i32
    %c0_i32_0 = arith.constant 0 : i32
    %c0_i32_1 = arith.constant 0 : i32
    return %c0_i32, %c0_i32_0 : i32, i32
  }
  func.func @transform_2(%arg0: i32) -> (i32, i32) {
    %c0_i32 = arith.constant 0 : i32
    %c0_i32_0 = arith.constant 0 : i32
    %c0_i32_1 = arith.constant 0 : i32
    return %c0_i32, %c0_i32_0 : i32, i32
  }
  func.func @transform_3(%arg0: i32) -> (i32, i32) {
    %c0_i32 = arith.constant 0 : i32
    %c0_i32_0 = arith.constant 0 : i32
    %c0_i32_1 = arith.constant 0 : i32
    return %c0_i32, %c0_i32_0 : i32, i32
  }
  func.func @transform_4(%arg0: i32) -> (i32, i32) {
    %c0_i32 = arith.constant 0 : i32
    %c0_i32_0 = arith.constant 0 : i32
    return %arg0, %c0_i32 : i32, i32
  }
  func.func @transform_5(%arg0: i32) -> (i32, i32, i32) {
    %c0_i32 = arith.constant 0 : i32
    %c0_i32_0 = arith.constant 0 : i32
    %c0_i32_1 = arith.constant 0 : i32
    return %arg0, %c0_i32, %c0_i32_0 : i32, i32, i32
  }
}

module attributes {stable_mosaic.version = 11 : i64} {
  func.func @_bn_act_head_kernel(%arg0: i32, %arg1: memref<512x128xbf16, #tpu.memory_space<vmem>>, %arg2: memref<1x128xf32, #tpu.memory_space<vmem>>, %arg3: memref<1x128xf32, #tpu.memory_space<vmem>>, %arg4: memref<1x128xf32, #tpu.memory_space<vmem>>, %arg5: memref<1x1xf32, #tpu.memory_space<vmem>>, %arg6: memref<512x1xf32, #tpu.memory_space<vmem>>) attributes {dimension_semantics = [#tpu.dimension_semantics<parallel>], iteration_bounds = array<i64: 1>, scalar_prefetch = 0 : i64, scratch_operands = 0 : i64, tpu.core_type = #tpu.core_type<tc>, window_params = [{transform_indices = @transform_0, window_bounds = array<i64: 512, 128>}, {pipeline_mode = #tpu.pipeline_mode<synchronous>, transform_indices = @transform_1, window_bounds = array<i64: 1, 128>}, {pipeline_mode = #tpu.pipeline_mode<synchronous>, transform_indices = @transform_2, window_bounds = array<i64: 1, 128>}, {pipeline_mode = #tpu.pipeline_mode<synchronous>, transform_indices = @transform_3, window_bounds = array<i64: 1, 128>}, {pipeline_mode = #tpu.pipeline_mode<synchronous>, transform_indices = @transform_4, window_bounds = array<i64: 1, 1>}, {transform_indices = @transform_5, window_bounds = array<i64: 512, 1>}]} {
    %c0 = arith.constant 0 : index
    %c0_0 = arith.constant 0 : index
    %0 = vector.load %arg1[%c0, %c0_0] : memref<512x128xbf16, #tpu.memory_space<vmem>>, vector<512x128xbf16>
    %1 = arith.extf %0 : vector<512x128xbf16> to vector<512x128xf32>
    %c0_1 = arith.constant 0 : index
    %c0_2 = arith.constant 0 : index
    %2 = vector.load %arg2[%c0_1, %c0_2] : memref<1x128xf32, #tpu.memory_space<vmem>>, vector<1x128xf32>
    %3 = vector.broadcast %2 : vector<1x128xf32> to vector<512x128xf32>
    %4 = arith.mulf %1, %3 : vector<512x128xf32>
    %c0_3 = arith.constant 0 : index
    %c0_4 = arith.constant 0 : index
    %5 = vector.load %arg3[%c0_3, %c0_4] : memref<1x128xf32, #tpu.memory_space<vmem>>, vector<1x128xf32>
    %6 = vector.broadcast %5 : vector<1x128xf32> to vector<512x128xf32>
    %7 = arith.addf %4, %6 : vector<512x128xf32>
    %cst = arith.constant 0.000000e+00 : f32
    %8 = vector.broadcast %cst : f32 to vector<512x128xf32>
    %9 = arith.cmpf oge, %7, %8 : vector<512x128xf32>
    %cst_5 = arith.constant 2.000000e-01 : f32
    %10 = vector.broadcast %cst_5 : f32 to vector<512x128xf32>
    %11 = arith.mulf %10, %7 : vector<512x128xf32>
    %12 = arith.select %9, %7, %11 : vector<512x128xi1>, vector<512x128xf32>
    %c0_6 = arith.constant 0 : index
    %c0_7 = arith.constant 0 : index
    %13 = vector.load %arg4[%c0_6, %c0_7] : memref<1x128xf32, #tpu.memory_space<vmem>>, vector<1x128xf32>
    %14 = vector.broadcast %13 : vector<1x128xf32> to vector<512x128xf32>
    %15 = arith.mulf %12, %14 : vector<512x128xf32>
    %cst_8 = arith.constant dense<0.000000e+00> : vector<512xf32>
    %16 = vector.multi_reduction <add>, %15, %cst_8 [1] : vector<512x128xf32> to vector<512xf32>
    %17 = vector.shape_cast %16 : vector<512xf32> to vector<512x1xf32>
    %c0_9 = arith.constant 0 : index
    %c0_10 = arith.constant 0 : index
    %18 = vector.load %arg5[%c0_9, %c0_10] : memref<1x1xf32, #tpu.memory_space<vmem>>, vector<1x1xf32>
    %19 = vector.broadcast %18 : vector<1x1xf32> to vector<512x1xf32>
    %20 = arith.addf %17, %19 : vector<512x1xf32>
    %c0_11 = arith.constant 0 : index
    %c0_12 = arith.constant 0 : index
    %21 = vector.load %arg6[%c0_11, %c0_12] : memref<512x1xf32, #tpu.memory_space<vmem>>, vector<512x1xf32>
    tpu.vector_store %arg6[%c0_11, %c0_12], %20 {strides = array<i32>} : memref<512x1xf32, #tpu.memory_space<vmem>>, vector<512x1xf32>,
    return
  }
  func.func @transform_0(%arg0: i32) -> (i32, i32) {
    %c0_i32 = arith.constant 0 : i32
    %c0_i32_0 = arith.constant 0 : i32
    return %arg0, %c0_i32 : i32, i32
  }
  func.func @transform_1(%arg0: i32) -> (i32, i32) {
    %c0_i32 = arith.constant 0 : i32
    %c0_i32_0 = arith.constant 0 : i32
    %c0_i32_1 = arith.constant 0 : i32
    return %c0_i32, %c0_i32_0 : i32, i32
  }
  func.func @transform_2(%arg0: i32) -> (i32, i32) {
    %c0_i32 = arith.constant 0 : i32
    %c0_i32_0 = arith.constant 0 : i32
    %c0_i32_1 = arith.constant 0 : i32
    return %c0_i32, %c0_i32_0 : i32, i32
  }
  func.func @transform_3(%arg0: i32) -> (i32, i32) {
    %c0_i32 = arith.constant 0 : i32
    %c0_i32_0 = arith.constant 0 : i32
    %c0_i32_1 = arith.constant 0 : i32
    return %c0_i32, %c0_i32_0 : i32, i32
  }
  func.func @transform_4(%arg0: i32) -> (i32, i32) {
    %c0_i32 = arith.constant 0 : i32
    %c0_i32_0 = arith.constant 0 : i32
    %c0_i32_1 = arith.constant 0 : i32
    return %c0_i32, %c0_i32_0 : i32, i32
  }
  func.func @transform_5(%arg0: i32) -> (i32, i32) {
    %c0_i32 = arith.constant 0 : i32
    %c0_i32_0 = arith.constant 0 : i32
    return %arg0, %c0_i32 : i32, i32
  }
}

</mosaic_0001>

<llo_original>
// kernel: dis_wgan_forward.5
$region0: #{dis_wgan_forward.5}
  #allocation0 [shape = 'u32[]', space=smem, size = 0x4, offset = 0x4, fixed_abs, tag = 'smem constant byte address 0x4 - core index']
  #allocation1 [shape = 'u32[144,128]{1,0:T(1,128)}', space=vmem, size = 0x12000, scoped, tag = 'internal scratch']
  #allocation2 [shape = 'f32[1,1]{1,0:T(1,128)S(1)}', space=vmem, size = 0x200, scoped, tag = 'scoped memory for dis_wgan_forward.5']
  %s0 = inlined_call_operand.vmem [shape: bf16[512,128], index: 0, kind: input, shape index: {}]
  %s1 = inlined_call_operand.vmem [shape: f32[1,128], index: 1, kind: input, shape index: {}]
  %s2 = inlined_call_operand.vmem [shape: f32[1,128], index: 2, kind: input, shape index: {}]
  %s3 = inlined_call_operand.vmem [shape: f32[1,128], index: 3, kind: input, shape index: {}]
  %s4 = inlined_call_operand.<no memory space> [shape: f32[1,1], index: 4, kind: input, shape index: {}]
  %s5 = inlined_call_operand.vmem [shape: f32[512,1], index: 5, kind: output, shape index: {}]
  %s6 = sld [smem:[#allocation0]]
  $region30: #{dis_wgan_forward.5} parent=0
    _
  %s8 = ssub.s32 1, %s6
  %s9 = scalar_select 0, %s8, %s6
  %v10 = vstv %s4
  %11 = vst [vmem:[#allocation2] sm:$0x1] %v10
  // Predicated region
  $region2: #{dis_wgan_forward.5} parent=0 // pred_check
    _
  $region3: #{dis_wgan_forward.5} parent=0 // pred_check_branch
    %13 = sbr.rel (0) target = $region5
  $region4: #{dis_wgan_forward.5} parent=0 // pred_region
    _
  $region5: #{dis_wgan_forward.5} parent=0 // pred_fallthru
    _
  // Predicated region
  $region6: #{dis_wgan_forward.5} parent=0 // pred_check
    _
  $region7: #{dis_wgan_forward.5} parent=0 // pred_check_branch
    %15 = sbr.rel (0) target = $region9
  $region8: #{dis_wgan_forward.5} parent=0 // pred_region
    _
  $region9: #{dis_wgan_forward.5} parent=0 // pred_fallthru
    _
  // Predicated region
  $region10: #{dis_wgan_forward.5} parent=0 // pred_check
    _
  $region11: #{dis_wgan_forward.5} parent=0 // pred_check_branch
    %17 = sbr.rel (0) target = $region13
  $region12: #{dis_wgan_forward.5} parent=0 // pred_region
    _
  $region13: #{dis_wgan_forward.5} parent=0 // pred_fallthru
    _
  // Predicated region
  $region14: #{dis_wgan_forward.5} parent=0 // pred_check
    _
  $region15: #{dis_wgan_forward.5} parent=0 // pred_check_branch
    %19 = sbr.rel (0) target = $region17
  $region16: #{dis_wgan_forward.5} parent=0 // pred_region
    _
  $region17: #{dis_wgan_forward.5} parent=0 // pred_fallthru
    _
  // Predicated region
  $region18: #{dis_wgan_forward.5} parent=0 // pred_check
    _
  $region19: #{dis_wgan_forward.5} parent=0 // pred_check_branch
    %21 = sbr.rel (0) target = $region21
  $region20: #{dis_wgan_forward.5} parent=0 // pred_region
    _
  $region21: #{dis_wgan_forward.5} parent=0 // pred_fallthru
    _
  %v22 = vld [vmem:[%s0] sm:$0xf]
  %v23 = vld [vmem:[%s0 + $0x4] sm:$0xf]
  %v24 = vld [vmem:[%s0 + $0x8] sm:$0xf]
  %v25 = vld [vmem:[%s0 + $0xc] sm:$0xf]
  %v26 = vld [vmem:[%s0 + $0x10] sm:$0xf]
  %v27 = vld [vmem:[%s0 + $0x14] sm:$0xf]
  %v28 = vld [vmem:[%s0 + $0x18] sm:$0xf]
  %v29 = vld [vmem:[%s0 + $0x1c] sm:$0xf]
  %v30 = vld [vmem:[%s0 + $0x20] sm:$0xf]
  %v31 = vld [vmem:[%s0 + $0x24] sm:$0xf]
  %v32 = vld [vmem:[%s0 + $0x28] sm:$0xf]
  %v33 = vld [vmem:[%s0 + $0x2c] sm:$0xf]
  %v34 = vld [vmem:[%s0 + $0x30] sm:$0xf]
  %v35 = vld [vmem:[%s0 + $0x34] sm:$0xf]
  %v36 = vld [vmem:[%s0 + $0x38] sm:$0xf]
  %v37 = vld [vmem:[%s0 + $0x3c] sm:$0xf]
  %v38 = vld [vmem:[%s0 + $0x40] sm:$0xf]
  %v39 = vld [vmem:[%s0 + $0x44] sm:$0xf]
  %v40 = vld [vmem:[%s0 + $0x48] sm:$0xf]
  %v41 = vld [vmem:[%s0 + $0x4c] sm:$0xf]
  %v42 = vld [vmem:[%s0 + $0x50] sm:$0xf]
  %v43 = vld [vmem:[%s0 + $0x54] sm:$0xf]
  %v44 = vld [vmem:[%s0 + $0x58] sm:$0xf]
  %v45 = vld [vmem:[%s0 + $0x5c] sm:$0xf]
  %v46 = vld [vmem:[%s0 + $0x60] sm:$0xf]
  %v47 = vld [vmem:[%s0 + $0x64] sm:$0xf]
  %v48 = vld [vmem:[%s0 + $0x68] sm:$0xf]
  %v49 = vld [vmem:[%s0 + $0x6c] sm:$0xf]
  %v50 = vld [vmem:[%s0 + $0x70] sm:$0xf]
  %v51 = vld [vmem:[%s0 + $0x74] sm:$0xf]
  %v52 = vld [vmem:[%s0 + $0x78] sm:$0xf]
  %v53 = vld [vmem:[%s0 + $0x7c] sm:$0xf]
  %v54 = vld [vmem:[%s0 + $0x80] sm:$0xf]
  %v55 = vld [vmem:[%s0 + $0x84] sm:$0xf]
  %v56 = vld [vmem:[%s0 + $0x88] sm:$0xf]
  %v57 = vld [vmem:[%s0 + $0x8c] sm:$0xf]
  %v58 = vld [vmem:[%s0 + $0x90] sm:$0xf]
  %v59 = vld [vmem:[%s0 + $0x94] sm:$0xf]
  %v60 = vld [vmem:[%s0 + $0x98] sm:$0xf]
  %v61 = vld [vmem:[%s0 + $0x9c] sm:$0xf]
  %v62 = vld [vmem:[%s0 + $0xa0] sm:$0xf]
  %v63 = vld [vmem:[%s0 + $0xa4] sm:$0xf]
  %v64 = vld [vmem:[%s0 + $0xa8] sm:$0xf]
  %v65 = vld [vmem:[%s0 + $0xac] sm:$0xf]
  %v66 = vld [vmem:[%s0 + $0xb0] sm:$0xf]
  %v67 = vld [vmem:[%s0 + $0xb4] sm:$0xf]
  %v68 = vld [vmem:[%s0 + $0xb8] sm:$0xf]
  %v69 = vld [vmem:[%s0 + $0xbc] sm:$0xf]
  %v70 = vld [vmem:[%s0 + $0xc0] sm:$0xf]
  %v71 = vld [vmem:[%s0 + $0xc4] sm:$0xf]
  %v72 = vld [vmem:[%s0 + $0xc8] sm:$0xf]
  %v73 = vld [vmem:[%s0 + $0xcc] sm:$0xf]
  %v74 = vld [vmem:[%s0 + $0xd0] sm:$0xf]
  %v75 = vld [vmem:[%s0 + $0xd4] sm:$0xf]
  %v76 = vld [vmem:[%s0 + $0xd8] sm:$0xf]
  %v77 = vld [vmem:[%s0 + $0xdc] sm:$0xf]
  %v78 = vld [vmem:[%s0 + $0xe0] sm:$0xf]
  %v79 = vld [vmem:[%s0 + $0xe4] sm:$0xf]
  %v80 = vld [vmem:[%s0 + $0xe8] sm:$0xf]
  %v81 = vld [vmem:[%s0 + $0xec] sm:$0xf]
  %v82 = vld [vmem:[%s0 + $0xf0] sm:$0xf]
  %v83 = vld [vmem:[%s0 + $0xf4] sm:$0xf]
  %v84 = vld [vmem:[%s0 + $0xf8] sm:$0xf]
  %v85 = vld [vmem:[%s0 + $0xfc] sm:$0xf]
  %v86 = vunpack.c.l.bf16 %v22
  %v87 = vunpack.c.l.bf16 %v23
  %v88 = vunpack.c.l.bf16 %v24
  %v89 = vunpack.c.l.bf16 %v25
  %v90 = vunpack.c.l.bf16 %v26
  %v91 = vunpack.c.l.bf16 %v27
  %v92 = vunpack.c.l.bf16 %v28
  %v93 = vunpack.c.l.bf16 %v29
  %v94 = vunpack.c.l.bf16 %v30
  %v95 = vunpack.c.l.bf16 %v31
  %v96 = vunpack.c.l.bf16 %v32
  %v97 = vunpack.c.l.bf16 %v33
  %v98 = vunpack.c.l.bf16 %v34
  %v99 = vunpack.c.l.bf16 %v35
  %v100 = vunpack.c.l.bf16 %v36
  %v101 = vunpack.c.l.bf16 %v37
  %v102 = vunpack.c.l.bf16 %v38
  %v103 = vunpack.c.l.bf16 %v39
  %v104 = vunpack.c.l.bf16 %v40
  %v105 = vunpack.c.l.bf16 %v41
  %v106 = vunpack.c.l.bf16 %v42
  %v107 = vunpack.c.l.bf16 %v43
  %v108 = vunpack.c.l.bf16 %v44
  %v109 = vunpack.c.l.bf16 %v45
  %v110 = vunpack.c.l.bf16 %v46
  %v111 = vunpack.c.l.bf16 %v47
  %v112 = vunpack.c.l.bf16 %v48
  %v113 = vunpack.c.l.bf16 %v49
  %v114 = vunpack.c.l.bf16 %v50
  %v115 = vunpack.c.l.bf16 %v51
  %v116 = vunpack.c.l.bf16 %v52
  %v117 = vunpack.c.l.bf16 %v53
  %v118 = vunpack.c.l.bf16 %v54
  %v119 = vunpack.c.l.bf16 %v55
  %v120 = vunpack.c.l.bf16 %v56
  %v121 = vunpack.c.l.bf16 %v57
  %v122 = vunpack.c.l.bf16 %v58
  %v123 = vunpack.c.l.bf16 %v59
  %v124 = vunpack.c.l.bf16 %v60
  %v125 = vunpack.c.l.bf16 %v61
  %v126 = vunpack.c.l.bf16 %v62
  %v127 = vunpack.c.l.bf16 %v63
  %v128 = vunpack.c.l.bf16 %v64
  %v129 = vunpack.c.l.bf16 %v65
  %v130 = vunpack.c.l.bf16 %v66
  %v131 = vunpack.c.l.bf16 %v67
  %v132 = vunpack.c.l.bf16 %v68
  %v133 = vunpack.c.l.bf16 %v69
  %v134 = vunpack.c.l.bf16 %v70
  %v135 = vunpack.c.l.bf16 %v71
  %v136 = vunpack.c.l.bf16 %v72
  %v137 = vunpack.c.l.bf16 %v73
  %v138 = vunpack.c.l.bf16 %v74
  %v139 = vunpack.c.l.bf16 %v75
  %v140 = vunpack.c.l.bf16 %v76
  %v141 = vunpack.c.l.bf16 %v77
  %v142 = vunpack.c.l.bf16 %v78
  %v143 = vunpack.c.l.bf16 %v79
  %v144 = vunpack.c.l.bf16 %v80
  %v145 = vunpack.c.l.bf16 %v81
  %v146 = vunpack.c.l.bf16 %v82
  %v147 = vunpack.c.l.bf16 %v83
  %v148 = vunpack.c.l.bf16 %v84
  %v149 = vunpack.c.l.bf16 %v85
  %v150 = vld [vmem:[%s1] sm:$0x1]
  %v152 = vlaneseq
  %v153 = vshrl.u32 %v152, 7
  %v154 = vsub.s32 0, %v153
  %v155 = vrot.slane %v150, %v154
  %v157 = vmul.f32 %v86, %v155
  %v158 = vmul.f32 %v87, %v155
  %v159 = vmul.f32 %v88, %v155
  %v160 = vmul.f32 %v89, %v155
  %v161 = vmul.f32 %v90, %v155
  %v162 = vmul.f32 %v91, %v155
  %v163 = vmul.f32 %v92, %v155
  %v164 = vmul.f32 %v93, %v155
  %v165 = vmul.f32 %v94, %v155
  %v166 = vmul.f32 %v95, %v155
  %v167 = vmul.f32 %v96, %v155
  %v168 = vmul.f32 %v97, %v155
  %v169 = vmul.f32 %v98, %v155
  %v170 = vmul.f32 %v99, %v155
  %v171 = vmul.f32 %v100, %v155
  %v172 = vmul.f32 %v101, %v155
  %v173 = vmul.f32 %v102, %v155
  %v174 = vmul.f32 %v103, %v155
  %v175 = vmul.f32 %v104, %v155
  %v176 = vmul.f32 %v105, %v155
  %v177 = vmul.f32 %v106, %v155
  %v178 = vmul.f32 %v107, %v155
  %v179 = vmul.f32 %v108, %v155
  %v180 = vmul.f32 %v109, %v155
  %v181 = vmul.f32 %v110, %v155
  %v182 = vmul.f32 %v111, %v155
  %v183 = vmul.f32 %v112, %v155
  %v184 = vmul.f32 %v113, %v155
  %v185 = vmul.f32 %v114, %v155
  %v186 = vmul.f32 %v115, %v155
  %v187 = vmul.f32 %v116, %v155
  %v188 = vmul.f32 %v117, %v155
  %v189 = vmul.f32 %v118, %v155
  %v190 = vmul.f32 %v119, %v155
  %v191 = vmul.f32 %v120, %v155
  %v192 = vmul.f32 %v121, %v155
  %v193 = vmul.f32 %v122, %v155
  %v194 = vmul.f32 %v123, %v155
  %v195 = vmul.f32 %v124, %v155
  %v196 = vmul.f32 %v125, %v155
  %v197 = vmul.f32 %v126, %v155
  %v198 = vmul.f32 %v127, %v155
  %v199 = vmul.f32 %v128, %v155
  %v200 = vmul.f32 %v129, %v155
  %v201 = vmul.f32 %v130, %v155
  %v202 = vmul.f32 %v131, %v155
  %v203 = vmul.f32 %v132, %v155
  %v204 = vmul.f32 %v133, %v155
  %v205 = vmul.f32 %v134, %v155
  %v206 = vmul.f32 %v135, %v155
  %v207 = vmul.f32 %v136, %v155
  %v208 = vmul.f32 %v137, %v155
  %v209 = vmul.f32 %v138, %v155
  %v210 = vmul.f32 %v139, %v155
  %v211 = vmul.f32 %v140, %v155
  %v212 = vmul.f32 %v141, %v155
  %v213 = vmul.f32 %v142, %v155
  %v214 = vmul.f32 %v143, %v155
  %v215 = vmul.f32 %v144, %v155
  %v216 = vmul.f32 %v145, %v155
  %v217 = vmul.f32 %v146, %v155
  %v218 = vmul.f32 %v147, %v155
  %v219 = vmul.f32 %v148, %v155
  %v220 = vmul.f32 %v149, %v155
  %v221 = vld [vmem:[%s2] sm:$0x1]
  %v223 = vlaneseq
  %v224 = vshrl.u32 %v223, 7
  %v225 = vsub.s32 0, %v224
  %v226 = vrot.slane %v221, %v225
  %v228 = vadd.f32 %v157, %v226
  %v229 = vadd.f32 %v158, %v226
  %v230 = vadd.f32 %v159, %v226
  %v231 = vadd.f32 %v160, %v226
  %v232 = vadd.f32 %v161, %v226
  %v233 = vadd.f32 %v162, %v226
  %v234 = vadd.f32 %v163, %v226
  %v235 = vadd.f32 %v164, %v226
  %v236 = vadd.f32 %v165, %v226
  %v237 = vadd.f32 %v166, %v226
  %v238 = vadd.f32 %v167, %v226
  %v239 = vadd.f32 %v168, %v226
  %v240 = vadd.f32 %v169, %v226
  %v241 = vadd.f32 %v170, %v226
  %v242 = vadd.f32 %v171, %v226
  %v243 = vadd.f32 %v172, %v226
  %v244 = vadd.f32 %v173, %v226
  %v245 = vadd.f32 %v174, %v226
  %v246 = vadd.f32 %v175, %v226
  %v247 = vadd.f32 %v176, %v226
  %v248 = vadd.f32 %v177, %v226
  %v249 = vadd.f32 %v178, %v226
  %v250 = vadd.f32 %v179, %v226
  %v251 = vadd.f32 %v180, %v226
  %v252 = vadd.f32 %v181, %v226
  %v253 = vadd.f32 %v182, %v226
  %v254 = vadd.f32 %v183, %v226
  %v255 = vadd.f32 %v184, %v226
  %v256 = vadd.f32 %v185, %v226
  %v257 = vadd.f32 %v186, %v226
  %v258 = vadd.f32 %v187, %v226
  %v259 = vadd.f32 %v188, %v226
  %v260 = vadd.f32 %v189, %v226
  %v261 = vadd.f32 %v190, %v226
  %v262 = vadd.f32 %v191, %v226
  %v263 = vadd.f32 %v192, %v226
  %v264 = vadd.f32 %v193, %v226
  %v265 = vadd.f32 %v194, %v226
  %v266 = vadd.f32 %v195, %v226
  %v267 = vadd.f32 %v196, %v226
  %v268 = vadd.f32 %v197, %v226
  %v269 = vadd.f32 %v198, %v226
  %v270 = vadd.f32 %v199, %v226
  %v271 = vadd.f32 %v200, %v226
  %v272 = vadd.f32 %v201, %v226
  %v273 = vadd.f32 %v202, %v226
  %v274 = vadd.f32 %v203, %v226
  %v275 = vadd.f32 %v204, %v226
  %v276 = vadd.f32 %v205, %v226
  %v277 = vadd.f32 %v206, %v226
  %v278 = vadd.f32 %v207, %v226
  %v279 = vadd.f32 %v208, %v226
  %v280 = vadd.f32 %v209, %v226
  %v281 = vadd.f32 %v210, %v226
  %v282 = vadd.f32 %v211, %v226
  %v283 = vadd.f32 %v212, %v226
  %v284 = vadd.f32 %v213, %v226
  %v285 = vadd.f32 %v214, %v226
  %v286 = vadd.f32 %v215, %v226
  %v287 = vadd.f32 %v216, %v226
  %v288 = vadd.f32 %v217, %v226
  %v289 = vadd.f32 %v218, %v226
  %v290 = vadd.f32 %v219, %v226
  %v291 = vadd.f32 %v220, %v226
  %vm292 = vcmp.ge.f32.partialorder %v228, 0.0
  %vm293 = vcmp.ge.f32.partialorder %v229, 0.0
  %vm294 = vcmp.ge.f32.partialorder %v230, 0.0
  %vm295 = vcmp.ge.f32.partialorder %v231, 0.0
  %vm296 = vcmp.ge.f32.partialorder %v232, 0.0
  %vm297 = vcmp.ge.f32.partialorder %v233, 0.0
  %vm298 = vcmp.ge.f32.partialorder %v234, 0.0
  %vm299 = vcmp.ge.f32.partialorder %v235, 0.0
  %vm300 = vcmp.ge.f32.partialorder %v236, 0.0
  %vm301 = vcmp.ge.f32.partialorder %v237, 0.0
  %vm302 = vcmp.ge.f32.partialorder %v238, 0.0
  %vm303 = vcmp.ge.f32.partialorder %v239, 0.0
  %vm304 = vcmp.ge.f32.partialorder %v240, 0.0
  %vm305 = vcmp.ge.f32.partialorder %v241, 0.0
  %vm306 = vcmp.ge.f32.partialorder %v242, 0.0
  %vm307 = vcmp.ge.f32.partialorder %v243, 0.0
  %vm308 = vcmp.ge.f32.partialorder %v244, 0.0
  %vm309 = vcmp.ge.f32.partialorder %v245, 0.0
  %vm310 = vcmp.ge.f32.partialorder %v246, 0.0
  %vm311 = vcmp.ge.f32.partialorder %v247, 0.0
  %vm312 = vcmp.ge.f32.partialorder %v248, 0.0
  %vm313 = vcmp.ge.f32.partialorder %v249, 0.0
  %vm314 = vcmp.ge.f32.partialorder %v250, 0.0
  %vm315 = vcmp.ge.f32.partialorder %v251, 0.0
  %vm316 = vcmp.ge.f32.partialorder %v252, 0.0
  %vm317 = vcmp.ge.f32.partialorder %v253, 0.0
  %vm318 = vcmp.ge.f32.partialorder %v254, 0.0
  %vm319 = vcmp.ge.f32.partialorder %v255, 0.0
  %vm320 = vcmp.ge.f32.partialorder %v256, 0.0
  %vm321 = vcmp.ge.f32.partialorder %v257, 0.0
  %vm322 = vcmp.ge.f32.partialorder %v258, 0.0
  %vm323 = vcmp.ge.f32.partialorder %v259, 0.0
  %vm324 = vcmp.ge.f32.partialorder %v260, 0.0
  %vm325 = vcmp.ge.f32.partialorder %v261, 0.0
  %vm326 = vcmp.ge.f32.partialorder %v262, 0.0
  %vm327 = vcmp.ge.f32.partialorder %v263, 0.0
  %vm328 = vcmp.ge.f32.partialorder %v264, 0.0
  %vm329 = vcmp.ge.f32.partialorder %v265, 0.0
  %vm330 = vcmp.ge.f32.partialorder %v266, 0.0
  %vm331 = vcmp.ge.f32.partialorder %v267, 0.0
  %vm332 = vcmp.ge.f32.partialorder %v268, 0.0
  %vm333 = vcmp.ge.f32.partialorder %v269, 0.0
  %vm334 = vcmp.ge.f32.partialorder %v270, 0.0
  %vm335 = vcmp.ge.f32.partialorder %v271, 0.0
  %vm336 = vcmp.ge.f32.partialorder %v272, 0.0
  %vm337 = vcmp.ge.f32.partialorder %v273, 0.0
  %vm338 = vcmp.ge.f32.partialorder %v274, 0.0
  %vm339 = vcmp.ge.f32.partialorder %v275, 0.0
  %vm340 = vcmp.ge.f32.partialorder %v276, 0.0
  %vm341 = vcmp.ge.f32.partialorder %v277, 0.0
  %vm342 = vcmp.ge.f32.partialorder %v278, 0.0
  %vm343 = vcmp.ge.f32.partialorder %v279, 0.0
  %vm344 = vcmp.ge.f32.partialorder %v280, 0.0
  %vm345 = vcmp.ge.f32.partialorder %v281, 0.0
  %vm346 = vcmp.ge.f32.partialorder %v282, 0.0
  %vm347 = vcmp.ge.f32.partialorder %v283, 0.0
  %vm348 = vcmp.ge.f32.partialorder %v284, 0.0
  %vm349 = vcmp.ge.f32.partialorder %v285, 0.0
  %vm350 = vcmp.ge.f32.partialorder %v286, 0.0
  %vm351 = vcmp.ge.f32.partialorder %v287, 0.0
  %vm352 = vcmp.ge.f32.partialorder %v288, 0.0
  %vm353 = vcmp.ge.f32.partialorder %v289, 0.0
  %vm354 = vcmp.ge.f32.partialorder %v290, 0.0
  %vm355 = vcmp.ge.f32.partialorder %v291, 0.0
  %v356 = vmul.f32 %v228, 0.2
  %v357 = vmul.f32 %v229, 0.2
  %v358 = vmul.f32 %v230, 0.2
  %v359 = vmul.f32 %v231, 0.2
  %v360 = vmul.f32 %v232, 0.2
  %v361 = vmul.f32 %v233, 0.2
  %v362 = vmul.f32 %v234, 0.2
  %v363 = vmul.f32 %v235, 0.2
  %v364 = vmul.f32 %v236, 0.2
  %v365 = vmul.f32 %v237, 0.2
  %v366 = vmul.f32 %v238, 0.2
  %v367 = vmul.f32 %v239, 0.2
  %v368 = vmul.f32 %v240, 0.2
  %v369 = vmul.f32 %v241, 0.2
  %v370 = vmul.f32 %v242, 0.2
  %v371 = vmul.f32 %v243, 0.2
  %v372 = vmul.f32 %v244, 0.2
  %v373 = vmul.f32 %v245, 0.2
  %v374 = vmul.f32 %v246, 0.2
  %v375 = vmul.f32 %v247, 0.2
  %v376 = vmul.f32 %v248, 0.2
  %v377 = vmul.f32 %v249, 0.2
  %v378 = vmul.f32 %v250, 0.2
  %v379 = vmul.f32 %v251, 0.2
  %v380 = vmul.f32 %v252, 0.2
  %v381 = vmul.f32 %v253, 0.2
  %v382 = vmul.f32 %v254, 0.2
  %v383 = vmul.f32 %v255, 0.2
  %v384 = vmul.f32 %v256, 0.2
  %v385 = vmul.f32 %v257, 0.2
  %v386 = vmul.f32 %v258, 0.2
  %v387 = vmul.f32 %v259, 0.2
  %v388 = vmul.f32 %v260, 0.2
  %v389 = vmul.f32 %v261, 0.2
  %v390 = vmul.f32 %v262, 0.2
  %v391 = vmul.f32 %v263, 0.2
  %v392 = vmul.f32 %v264, 0.2
  %v393 = vmul.f32 %v265, 0.2
  %v394 = vmul.f32 %v266, 0.2
  %v395 = vmul.f32 %v267, 0.2
  %v396 = vmul.f32 %v268, 0.2
  %v397 = vmul.f32 %v269, 0.2
  %v398 = vmul.f32 %v270, 0.2
  %v399 = vmul.f32 %v271, 0.2
  %v400 = vmul.f32 %v272, 0.2
  %v401 = vmul.f32 %v273, 0.2
  %v402 = vmul.f32 %v274, 0.2
  %v403 = vmul.f32 %v275, 0.2
  %v404 = vmul.f32 %v276, 0.2
  %v405 = vmul.f32 %v277, 0.2
  %v406 = vmul.f32 %v278, 0.2
  %v407 = vmul.f32 %v279, 0.2
  %v408 = vmul.f32 %v280, 0.2
  %v409 = vmul.f32 %v281, 0.2
  %v410 = vmul.f32 %v282, 0.2
  %v411 = vmul.f32 %v283, 0.2
  %v412 = vmul.f32 %v284, 0.2
  %v413 = vmul.f32 %v285, 0.2
  %v414 = vmul.f32 %v286, 0.2
  %v415 = vmul.f32 %v287, 0.2
  %v416 = vmul.f32 %v288, 0.2
  %v417 = vmul.f32 %v289, 0.2
  %v418 = vmul.f32 %v290, 0.2
  %v419 = vmul.f32 %v291, 0.2
  %v420 = vsel %vm292, %v228, %v356
  %v421 = vsel %vm293, %v229, %v357
  %v422 = vsel %vm294, %v230, %v358
  %v423 = vsel %vm295, %v231, %v359
  %v424 = vsel %vm296, %v232, %v360
  %v425 = vsel %vm297, %v233, %v361
  %v426 = vsel %vm298, %v234, %v362
  %v427 = vsel %vm299, %v235, %v363
  %v428 = vsel %vm300, %v236, %v364
  %v429 = vsel %vm301, %v237, %v365
  %v430 = vsel %vm302, %v238, %v366
  %v431 = vsel %vm303, %v239, %v367
  %v432 = vsel %vm304, %v240, %v368
  %v433 = vsel %vm305, %v241, %v369
  %v434 = vsel %vm306, %v242, %v370
  %v435 = vsel %vm307, %v243, %v371
  %v436 = vsel %vm308, %v244, %v372
  %v437 = vsel %vm309, %v245, %v373
  %v438 = vsel %vm310, %v246, %v374
  %v439 = vsel %vm311, %v247, %v375
  %v440 = vsel %vm312, %v248, %v376
  %v441 = vsel %vm313, %v249, %v377
  %v442 = vsel %vm314, %v250, %v378
  %v443 = vsel %vm315, %v251, %v379
  %v444 = vsel %vm316, %v252, %v380
  %v445 = vsel %vm317, %v253, %v381
  %v446 = vsel %vm318, %v254, %v382
  %v447 = vsel %vm319, %v255, %v383
  %v448 = vsel %vm320, %v256, %v384
  %v449 = vsel %vm321, %v257, %v385
  %v450 = vsel %vm322, %v258, %v386
  %v451 = vsel %vm323, %v259, %v387
  %v452 = vsel %vm324, %v260, %v388
  %v453 = vsel %vm325, %v261, %v389
  %v454 = vsel %vm326, %v262, %v390
  %v455 = vsel %vm327, %v263, %v391
  %v456 = vsel %vm328, %v264, %v392
  %v457 = vsel %vm329, %v265, %v393
  %v458 = vsel %vm330, %v266, %v394
  %v459 = vsel %vm331, %v267, %v395
  %v460 = vsel %vm332, %v268, %v396
  %v461 = vsel %vm333, %v269, %v397
  %v462 = vsel %vm334, %v270, %v398
  %v463 = vsel %vm335, %v271, %v399
  %v464 = vsel %vm336, %v272, %v400
  %v465 = vsel %vm337, %v273, %v401
  %v466 = vsel %vm338, %v274, %v402
  %v467 = vsel %vm339, %v275, %v403
  %v468 = vsel %vm340, %v276, %v404
  %v469 = vsel %vm341, %v277, %v405
  %v470 = vsel %vm342, %v278, %v406
  %v471 = vsel %vm343, %v279, %v407
  %v472 = vsel %vm344, %v280, %v408
  %v473 = vsel %vm345, %v281, %v409
  %v474 = vsel %vm346, %v282, %v410
  %v475 = vsel %vm347, %v283, %v411
  %v476 = vsel %vm348, %v284, %v412
  %v477 = vsel %vm349, %v285, %v413
  %v478 = vsel %vm350, %v286, %v414
  %v479 = vsel %vm351, %v287, %v415
  %v480 = vsel %vm352, %v288, %v416
  %v481 = vsel %vm353, %v289, %v417
  %v482 = vsel %vm354, %v290, %v418
  %v483 = vsel %vm355, %v291, %v419
  %v484 = vld [vmem:[%s3] sm:$0x1]
  %v486 = vlaneseq
  %v487 = vshrl.u32 %v486, 7
  %v488 = vsub.s32 0, %v487
  %v489 = vrot.slane %v484, %v488
  %v491 = vmul.f32 %v420, %v489
  %v492 = vmul.f32 %v421, %v489
  %v493 = vmul.f32 %v422, %v489
  %v494 = vmul.f32 %v423, %v489
  %v495 = vmul.f32 %v424, %v489
  %v496 = vmul.f32 %v425, %v489
  %v497 = vmul.f32 %v426, %v489
  %v498 = vmul.f32 %v427, %v489
  %v499 = vmul.f32 %v428, %v489
  %v500 = vmul.f32 %v429, %v489
  %v501 = vmul.f32 %v430, %v489
  %v502 = vmul.f32 %v431, %v489
  %v503 = vmul.f32 %v432, %v489
  %v504 = vmul.f32 %v433, %v489
  %v505 = vmul.f32 %v434, %v489
  %v506 = vmul.f32 %v435, %v489
  %v507 = vmul.f32 %v436, %v489
  %v508 = vmul.f32 %v437, %v489
  %v509 = vmul.f32 %v438, %v489
  %v510 = vmul.f32 %v439, %v489
  %v511 = vmul.f32 %v440, %v489
  %v512 = vmul.f32 %v441, %v489
  %v513 = vmul.f32 %v442, %v489
  %v514 = vmul.f32 %v443, %v489
  %v515 = vmul.f32 %v444, %v489
  %v516 = vmul.f32 %v445, %v489
  %v517 = vmul.f32 %v446, %v489
  %v518 = vmul.f32 %v447, %v489
  %v519 = vmul.f32 %v448, %v489
  %v520 = vmul.f32 %v449, %v489
  %v521 = vmul.f32 %v450, %v489
  %v522 = vmul.f32 %v451, %v489
  %v523 = vmul.f32 %v452, %v489
  %v524 = vmul.f32 %v453, %v489
  %v525 = vmul.f32 %v454, %v489
  %v526 = vmul.f32 %v455, %v489
  %v527 = vmul.f32 %v456, %v489
  %v528 = vmul.f32 %v457, %v489
  %v529 = vmul.f32 %v458, %v489
  %v530 = vmul.f32 %v459, %v489
  %v531 = vmul.f32 %v460, %v489
  %v532 = vmul.f32 %v461, %v489
  %v533 = vmul.f32 %v462, %v489
  %v534 = vmul.f32 %v463, %v489
  %v535 = vmul.f32 %v464, %v489
  %v536 = vmul.f32 %v465, %v489
  %v537 = vmul.f32 %v466, %v489
  %v538 = vmul.f32 %v467, %v489
  %v539 = vmul.f32 %v468, %v489
  %v540 = vmul.f32 %v469, %v489
  %v541 = vmul.f32 %v470, %v489
  %v542 = vmul.f32 %v471, %v489
  %v543 = vmul.f32 %v472, %v489
  %v544 = vmul.f32 %v473, %v489
  %v545 = vmul.f32 %v474, %v489
  %v546 = vmul.f32 %v475, %v489
  %v547 = vmul.f32 %v476, %v489
  %v548 = vmul.f32 %v477, %v489
  %v549 = vmul.f32 %v478, %v489
  %v550 = vmul.f32 %v479, %v489
  %v551 = vmul.f32 %v480, %v489
  %v552 = vmul.f32 %v481, %v489
  %v553 = vmul.f32 %v482, %v489
  %v554 = vmul.f32 %v483, %v489
  %555 = vadd.xlane.f32.xlu0 %v491
  %v556 = vpop.xlane.xlu0 %555
  %557 = vadd.xlane.f32.xlu0 %v492
  %v558 = vpop.xlane.xlu0 %557
  %559 = vadd.xlane.f32.xlu0 %v493
  %v560 = vpop.xlane.xlu0 %559
  %561 = vadd.xlane.f32.xlu0 %v494
  %v562 = vpop.xlane.xlu0 %561
  %563 = vadd.xlane.f32.xlu0 %v495
  %v564 = vpop.xlane.xlu0 %563
  %565 = vadd.xlane.f32.xlu0 %v496
  %v566 = vpop.xlane.xlu0 %565
  %567 = vadd.xlane.f32.xlu0 %v497
  %v568 = vpop.xlane.xlu0 %567
  %569 = vadd.xlane.f32.xlu0 %v498
  %v570 = vpop.xlane.xlu0 %569
  %571 = vadd.xlane.f32.xlu0 %v499
  %v572 = vpop.xlane.xlu0 %571
  %573 = vadd.xlane.f32.xlu0 %v500
  %v574 = vpop.xlane.xlu0 %573
  %575 = vadd.xlane.f32.xlu0 %v501
  %v576 = vpop.xlane.xlu0 %575
  %577 = vadd.xlane.f32.xlu0 %v502
  %v578 = vpop.xlane.xlu0 %577
  %579 = vadd.xlane.f32.xlu0 %v503
  %v580 = vpop.xlane.xlu0 %579
  %581 = vadd.xlane.f32.xlu0 %v504
  %v582 = vpop.xlane.xlu0 %581
  %583 = vadd.xlane.f32.xlu0 %v505
  %v584 = vpop.xlane.xlu0 %583
  %585 = vadd.xlane.f32.xlu0 %v506
  %v586 = vpop.xlane.xlu0 %585
  %587 = vadd.xlane.f32.xlu0 %v507
  %v588 = vpop.xlane.xlu0 %587
  %589 = vadd.xlane.f32.xlu0 %v508
  %v590 = vpop.xlane.xlu0 %589
  %591 = vadd.xlane.f32.xlu0 %v509
  %v592 = vpop.xlane.xlu0 %591
  %593 = vadd.xlane.f32.xlu0 %v510
  %v594 = vpop.xlane.xlu0 %593
  %595 = vadd.xlane.f32.xlu0 %v511
  %v596 = vpop.xlane.xlu0 %595
  %597 = vadd.xlane.f32.xlu0 %v512
  %v598 = vpop.xlane.xlu0 %597
  %599 = vadd.xlane.f32.xlu0 %v513
  %v600 = vpop.xlane.xlu0 %599
  %601 = vadd.xlane.f32.xlu0 %v514
  %v602 = vpop.xlane.xlu0 %601
  %603 = vadd.xlane.f32.xlu0 %v515
  %v604 = vpop.xlane.xlu0 %603
  %605 = vadd.xlane.f32.xlu0 %v516
  %v606 = vpop.xlane.xlu0 %605
  %607 = vadd.xlane.f32.xlu0 %v517
  %v608 = vpop.xlane.xlu0 %607
  %609 = vadd.xlane.f32.xlu0 %v518
  %v610 = vpop.xlane.xlu0 %609
  %611 = vadd.xlane.f32.xlu0 %v519
  %v612 = vpop.xlane.xlu0 %611
  %613 = vadd.xlane.f32.xlu0 %v520
  %v614 = vpop.xlane.xlu0 %613
  %615 = vadd.xlane.f32.xlu0 %v521
  %v616 = vpop.xlane.xlu0 %615
  %617 = vadd.xlane.f32.xlu0 %v522
  %v618 = vpop.xlane.xlu0 %617
  %619 = vadd.xlane.f32.xlu0 %v523
  %v620 = vpop.xlane.xlu0 %619
  %621 = vadd.xlane.f32.xlu0 %v524
  %v622 = vpop.xlane.xlu0 %621
  %623 = vadd.xlane.f32.xlu0 %v525
  %v624 = vpop.xlane.xlu0 %623
  %625 = vadd.xlane.f32.xlu0 %v526
  %v626 = vpop.xlane.xlu0 %625
  %627 = vadd.xlane.f32.xlu0 %v527
  %v628 = vpop.xlane.xlu0 %627
  %629 = vadd.xlane.f32.xlu0 %v528
  %v630 = vpop.xlane.xlu0 %629
  %631 = vadd.xlane.f32.xlu0 %v529
  %v632 = vpop.xlane.xlu0 %631
  %633 = vadd.xlane.f32.xlu0 %v530
  %v634 = vpop.xlane.xlu0 %633
  %635 = vadd.xlane.f32.xlu0 %v531
  %v636 = vpop.xlane.xlu0 %635
  %637 = vadd.xlane.f32.xlu0 %v532
  %v638 = vpop.xlane.xlu0 %637
  %639 = vadd.xlane.f32.xlu0 %v533
  %v640 = vpop.xlane.xlu0 %639
  %641 = vadd.xlane.f32.xlu0 %v534
  %v642 = vpop.xlane.xlu0 %641
  %643 = vadd.xlane.f32.xlu0 %v535
  %v644 = vpop.xlane.xlu0 %643
  %645 = vadd.xlane.f32.xlu0 %v536
  %v646 = vpop.xlane.xlu0 %645
  %647 = vadd.xlane.f32.xlu0 %v537
  %v648 = vpop.xlane.xlu0 %647
  %649 = vadd.xlane.f32.xlu0 %v538
  %v650 = vpop.xlane.xlu0 %649
  %651 = vadd.xlane.f32.xlu0 %v539
  %v652 = vpop.xlane.xlu0 %651
  %653 = vadd.xlane.f32.xlu0 %v540
  %v654 = vpop.xlane.xlu0 %653
  %655 = vadd.xlane.f32.xlu0 %v541
  %v656 = vpop.xlane.xlu0 %655
  %657 = vadd.xlane.f32.xlu0 %v542
  %v658 = vpop.xlane.xlu0 %657
  %659 = vadd.xlane.f32.xlu0 %v543
  %v660 = vpop.xlane.xlu0 %659
  %661 = vadd.xlane.f32.xlu0 %v544
  %v662 = vpop.xlane.xlu0 %661
  %663 = vadd.xlane.f32.xlu0 %v545
  %v664 = vpop.xlane.xlu0 %663
  %665 = vadd.xlane.f32.xlu0 %v546
  %v666 = vpop.xlane.xlu0 %665
  %667 = vadd.xlane.f32.xlu0 %v547
  %v668 = vpop.xlane.xlu0 %667
  %669 = vadd.xlane.f32.xlu0 %v548
  %v670 = vpop.xlane.xlu0 %669
  %671 = vadd.xlane.f32.xlu0 %v549
  %v672 = vpop.xlane.xlu0 %671
  %673 = vadd.xlane.f32.xlu0 %v550
  %v674 = vpop.xlane.xlu0 %673
  %675 = vadd.xlane.f32.xlu0 %v551
  %v676 = vpop.xlane.xlu0 %675
  %677 = vadd.xlane.f32.xlu0 %v552
  %v678 = vpop.xlane.xlu0 %677
  %679 = vadd.xlane.f32.xlu0 %v553
  %v680 = vpop.xlane.xlu0 %679
  %681 = vadd.xlane.f32.xlu0 %v554
  %v682 = vpop.xlane.xlu0 %681
  %v683 = vld [vmem:[#allocation2] sm:$0x1]
  %v685 = vlaneseq
  %v686 = vshrl.u32 %v685, 7
  %v687 = vsub.s32 0, %v686
  %v688 = vrot.slane %v683, %v687
  %v690 = vadd.f32 %v556, %v688
  %v691 = vadd.f32 %v558, %v688
  %v692 = vadd.f32 %v560, %v688
  %v693 = vadd.f32 %v562, %v688
  %v694 = vadd.f32 %v564, %v688
  %v695 = vadd.f32 %v566, %v688
  %v696 = vadd.f32 %v568, %v688
  %v697 = vadd.f32 %v570, %v688
  %v698 = vadd.f32 %v572, %v688
  %v699 = vadd.f32 %v574, %v688
  %v700 = vadd.f32 %v576, %v688
  %v701 = vadd.f32 %v578, %v688
  %v702 = vadd.f32 %v580, %v688
  %v703 = vadd.f32 %v582, %v688
  %v704 = vadd.f32 %v584, %v688
  %v705 = vadd.f32 %v586, %v688
  %v706 = vadd.f32 %v588, %v688
  %v707 = vadd.f32 %v590, %v688
  %v708 = vadd.f32 %v592, %v688
  %v709 = vadd.f32 %v594, %v688
  %v710 = vadd.f32 %v596, %v688
  %v711 = vadd.f32 %v598, %v688
  %v712 = vadd.f32 %v600, %v688
  %v713 = vadd.f32 %v602, %v688
  %v714 = vadd.f32 %v604, %v688
  %v715 = vadd.f32 %v606, %v688
  %v716 = vadd.f32 %v608, %v688
  %v717 = vadd.f32 %v610, %v688
  %v718 = vadd.f32 %v612, %v688
  %v719 = vadd.f32 %v614, %v688
  %v720 = vadd.f32 %v616, %v688
  %v721 = vadd.f32 %v618, %v688
  %v722 = vadd.f32 %v620, %v688
  %v723 = vadd.f32 %v622, %v688
  %v724 = vadd.f32 %v624, %v688
  %v725 = vadd.f32 %v626, %v688
  %v726 = vadd.f32 %v628, %v688
  %v727 = vadd.f32 %v630, %v688
  %v728 = vadd.f32 %v632, %v688
  %v729 = vadd.f32 %v634, %v688
  %v730 = vadd.f32 %v636, %v688
  %v731 = vadd.f32 %v638, %v688
  %v732 = vadd.f32 %v640, %v688
  %v733 = vadd.f32 %v642, %v688
  %v734 = vadd.f32 %v644, %v688
  %v735 = vadd.f32 %v646, %v688
  %v736 = vadd.f32 %v648, %v688
  %v737 = vadd.f32 %v650, %v688
  %v738 = vadd.f32 %v652, %v688
  %v739 = vadd.f32 %v654, %v688
  %v740 = vadd.f32 %v656, %v688
  %v741 = vadd.f32 %v658, %v688
  %v742 = vadd.f32 %v660, %v688
  %v743 = vadd.f32 %v662, %v688
  %v744 = vadd.f32 %v664, %v688
  %v745 = vadd.f32 %v666, %v688
  %v746 = vadd.f32 %v668, %v688
  %v747 = vadd.f32 %v670, %v688
  %v748 = vadd.f32 %v672, %v688
  %v749 = vadd.f32 %v674, %v688
  %v750 = vadd.f32 %v676, %v688
  %v751 = vadd.f32 %v678, %v688
  %v752 = vadd.f32 %v680, %v688
  %v753 = vadd.f32 %v682, %v688
  %vm754 = vcmask 7168
  %755 = vst.msk [vmem:[%s5] sm:$0xff] %vm754, %v690
  %756 = vst.msk [vmem:[%s5 + $0x8] sm:$0xff] %vm754, %v691
  %757 = vst.msk [vmem:[%s5 + $0x10] sm:$0xff] %vm754, %v692
  %758 = vst.msk [vmem:[%s5 + $0x18] sm:$0xff] %vm754, %v693
  %759 = vst.msk [vmem:[%s5 + $0x20] sm:$0xff] %vm754, %v694
  %760 = vst.msk [vmem:[%s5 + $0x28] sm:$0xff] %vm754, %v695
  %761 = vst.msk [vmem:[%s5 + $0x30] sm:$0xff] %vm754, %v696
  %762 = vst.msk [vmem:[%s5 + $0x38] sm:$0xff] %vm754, %v697
  %763 = vst.msk [vmem:[%s5 + $0x40] sm:$0xff] %vm754, %v698
  %764 = vst.msk [vmem:[%s5 + $0x48] sm:$0xff] %vm754, %v699
  %765 = vst.msk [vmem:[%s5 + $0x50] sm:$0xff] %vm754, %v700
  %766 = vst.msk [vmem:[%s5 + $0x58] sm:$0xff] %vm754, %v701
  %767 = vst.msk [vmem:[%s5 + $0x60] sm:$0xff] %vm754, %v702
  %768 = vst.msk [vmem:[%s5 + $0x68] sm:$0xff] %vm754, %v703
  %769 = vst.msk [vmem:[%s5 + $0x70] sm:$0xff] %vm754, %v704
  %770 = vst.msk [vmem:[%s5 + $0x78] sm:$0xff] %vm754, %v705
  %771 = vst.msk [vmem:[%s5 + $0x80] sm:$0xff] %vm754, %v706
  %772 = vst.msk [vmem:[%s5 + $0x88] sm:$0xff] %vm754, %v707
  %773 = vst.msk [vmem:[%s5 + $0x90] sm:$0xff] %vm754, %v708
  %774 = vst.msk [vmem:[%s5 + $0x98] sm:$0xff] %vm754, %v709
  %775 = vst.msk [vmem:[%s5 + $0xa0] sm:$0xff] %vm754, %v710
  %776 = vst.msk [vmem:[%s5 + $0xa8] sm:$0xff] %vm754, %v711
  %777 = vst.msk [vmem:[%s5 + $0xb0] sm:$0xff] %vm754, %v712
  %778 = vst.msk [vmem:[%s5 + $0xb8] sm:$0xff] %vm754, %v713
  %779 = vst.msk [vmem:[%s5 + $0xc0] sm:$0xff] %vm754, %v714
  %780 = vst.msk [vmem:[%s5 + $0xc8] sm:$0xff] %vm754, %v715
  %781 = vst.msk [vmem:[%s5 + $0xd0] sm:$0xff] %vm754, %v716
  %782 = vst.msk [vmem:[%s5 + $0xd8] sm:$0xff] %vm754, %v717
  %783 = vst.msk [vmem:[%s5 + $0xe0] sm:$0xff] %vm754, %v718
  %784 = vst.msk [vmem:[%s5 + $0xe8] sm:$0xff] %vm754, %v719
  %785 = vst.msk [vmem:[%s5 + $0xf0] sm:$0xff] %vm754, %v720
  %786 = vst.msk [vmem:[%s5 + $0xf8] sm:$0xff] %vm754, %v721
  %787 = vst.msk [vmem:[%s5 + $0x100] sm:$0xff] %vm754, %v722
  %788 = vst.msk [vmem:[%s5 + $0x108] sm:$0xff] %vm754, %v723
  %789 = vst.msk [vmem:[%s5 + $0x110] sm:$0xff] %vm754, %v724
  %790 = vst.msk [vmem:[%s5 + $0x118] sm:$0xff] %vm754, %v725
  %791 = vst.msk [vmem:[%s5 + $0x120] sm:$0xff] %vm754, %v726
  %792 = vst.msk [vmem:[%s5 + $0x128] sm:$0xff] %vm754, %v727
  %793 = vst.msk [vmem:[%s5 + $0x130] sm:$0xff] %vm754, %v728
  %794 = vst.msk [vmem:[%s5 + $0x138] sm:$0xff] %vm754, %v729
  %795 = vst.msk [vmem:[%s5 + $0x140] sm:$0xff] %vm754, %v730
  %796 = vst.msk [vmem:[%s5 + $0x148] sm:$0xff] %vm754, %v731
  %797 = vst.msk [vmem:[%s5 + $0x150] sm:$0xff] %vm754, %v732
  %798 = vst.msk [vmem:[%s5 + $0x158] sm:$0xff] %vm754, %v733
  %799 = vst.msk [vmem:[%s5 + $0x160] sm:$0xff] %vm754, %v734
  %800 = vst.msk [vmem:[%s5 + $0x168] sm:$0xff] %vm754, %v735
  %801 = vst.msk [vmem:[%s5 + $0x170] sm:$0xff] %vm754, %v736
  %802 = vst.msk [vmem:[%s5 + $0x178] sm:$0xff] %vm754, %v737
  %803 = vst.msk [vmem:[%s5 + $0x180] sm:$0xff] %vm754, %v738
  %804 = vst.msk [vmem:[%s5 + $0x188] sm:$0xff] %vm754, %v739
  %805 = vst.msk [vmem:[%s5 + $0x190] sm:$0xff] %vm754, %v740
  %806 = vst.msk [vmem:[%s5 + $0x198] sm:$0xff] %vm754, %v741
  %807 = vst.msk [vmem:[%s5 + $0x1a0] sm:$0xff] %vm754, %v742
  %808 = vst.msk [vmem:[%s5 + $0x1a8] sm:$0xff] %vm754, %v743
  %809 = vst.msk [vmem:[%s5 + $0x1b0] sm:$0xff] %vm754, %v744
  %810 = vst.msk [vmem:[%s5 + $0x1b8] sm:$0xff] %vm754, %v745
  %811 = vst.msk [vmem:[%s5 + $0x1c0] sm:$0xff] %vm754, %v746
  %812 = vst.msk [vmem:[%s5 + $0x1c8] sm:$0xff] %vm754, %v747
  %813 = vst.msk [vmem:[%s5 + $0x1d0] sm:$0xff] %vm754, %v748
  %814 = vst.msk [vmem:[%s5 + $0x1d8] sm:$0xff] %vm754, %v749
  %815 = vst.msk [vmem:[%s5 + $0x1e0] sm:$0xff] %vm754, %v750
  %816 = vst.msk [vmem:[%s5 + $0x1e8] sm:$0xff] %vm754, %v751
  %817 = vst.msk [vmem:[%s5 + $0x1f0] sm:$0xff] %vm754, %v752
  %818 = vst.msk [vmem:[%s5 + $0x1f8] sm:$0xff] %vm754, %v753
  // Predicated region
  $region22: #{dis_wgan_forward.5} parent=0 // pred_check
    _
  $region23: #{dis_wgan_forward.5} parent=0 // pred_check_branch
    %820 = sbr.rel (0) target = $region25
  $region24: #{dis_wgan_forward.5} parent=0 // pred_region
    _
  $region25: #{dis_wgan_forward.5} parent=0 // pred_fallthru
    _
  // Predicated region
  $region26: #{dis_wgan_forward.5} parent=0 // pred_check
    _
  $region27: #{dis_wgan_forward.5} parent=0 // pred_check_branch
    %822 = sbr.rel (0) target = $region29
  $region28: #{dis_wgan_forward.5} parent=0 // pred_region
    _
  $region29: #{dis_wgan_forward.5} parent=0 // pred_fallthru
    _

// kernel: dis_wgan_forward.4
$region0: #{dis_wgan_forward.4}
  #allocation0 [shape = 'u32[]', space=smem, size = 0x4, offset = 0x4, fixed_abs, tag = 'smem constant byte address 0x4 - core index']
  #allocation1 [shape = 'u32[144,128]{1,0:T(1,128)}', space=vmem, size = 0x12000, scoped, tag = 'internal scratch']
  %s0 = inlined_call_operand.vmem [shape: bf16[512,256], index: 0, kind: input, shape index: {}]
  %s1 = inlined_call_operand.vmem [shape: f32[1,256], index: 1, kind: input, shape index: {}]
  %s2 = inlined_call_operand.vmem [shape: f32[1,256], index: 2, kind: input, shape index: {}]
  %s3 = inlined_call_operand.vmem [shape: bf16[256,128], index: 3, kind: input, shape index: {}]
  %s4 = inlined_call_operand.vmem [shape: bf16[512,128], index: 4, kind: output, shape index: {0}]
  %s5 = inlined_call_operand.vmem [shape: f32[1,2,128], index: 5, kind: output, shape index: {1}]
  %6 = xla_tuple %s4, %s5
  %s7 = sld [smem:[#allocation0]]
  $region34: #{dis_wgan_forward.4} parent=0
    _
  %s9 = ssub.s32 1, %s7
  %s10 = scalar_select 0, %s9, %s7
  // Predicated region
  $region2: #{dis_wgan_forward.4} parent=0 // pred_check
    _
  $region3: #{dis_wgan_forward.4} parent=0 // pred_check_branch
    %12 = sbr.rel (0) target = $region5
  $region4: #{dis_wgan_forward.4} parent=0 // pred_region
    _
  $region5: #{dis_wgan_forward.4} parent=0 // pred_fallthru
    _
  // Predicated region
  $region6: #{dis_wgan_forward.4} parent=0 // pred_check
    _
  $region7: #{dis_wgan_forward.4} parent=0 // pred_check_branch
    %14 = sbr.rel (0) target = $region9
  $region8: #{dis_wgan_forward.4} parent=0 // pred_region
    _
  $region9: #{dis_wgan_forward.4} parent=0 // pred_fallthru
    _
  // Predicated region
  $region10: #{dis_wgan_forward.4} parent=0 // pred_check
    _
  $region11: #{dis_wgan_forward.4} parent=0 // pred_check_branch
    %16 = sbr.rel (0) target = $region13
  $region12: #{dis_wgan_forward.4} parent=0 // pred_region
    _
  $region13: #{dis_wgan_forward.4} parent=0 // pred_fallthru
    _
  // Predicated region
  $region14: #{dis_wgan_forward.4} parent=0 // pred_check
    _
  $region15: #{dis_wgan_forward.4} parent=0 // pred_check_branch
    %18 = sbr.rel (0) target = $region17
  $region16: #{dis_wgan_forward.4} parent=0 // pred_region
    _
  $region17: #{dis_wgan_forward.4} parent=0 // pred_fallthru
    _
  %v20 = vld [vmem:[%s0] sm:$0xff]
  %v21 = vld [vmem:[%s0 + $0x8] sm:$0xff]
  %v22 = vld [vmem:[%s0 + $0x10] sm:$0xff]
  %v23 = vld [vmem:[%s0 + $0x18] sm:$0xff]
  %v24 = vld [vmem:[%s0 + $0x20] sm:$0xff]
  %v25 = vld [vmem:[%s0 + $0x28] sm:$0xff]
  %v26 = vld [vmem:[%s0 + $0x30] sm:$0xff]
  %v27 = vld [vmem:[%s0 + $0x38] sm:$0xff]
  %v28 = vld [vmem:[%s0 + $0x40] sm:$0xff]
  %v29 = vld [vmem:[%s0 + $0x48] sm:$0xff]
  %v30 = vld [vmem:[%s0 + $0x50] sm:$0xff]
  %v31 = vld [vmem:[%s0 + $0x58] sm:$0xff]
  %v32 = vld [vmem:[%s0 + $0x60] sm:$0xff]
  %v33 = vld [vmem:[%s0 + $0x68] sm:$0xff]
  %v34 = vld [vmem:[%s0 + $0x70] sm:$0xff]
  %v35 = vld [vmem:[%s0 + $0x78] sm:$0xff]
  %v36 = vld [vmem:[%s0 + $0x80] sm:$0xff]
  %v37 = vld [vmem:[%s0 + $0x88] sm:$0xff]
  %v38 = vld [vmem:[%s0 + $0x90] sm:$0xff]
  %v39 = vld [vmem:[%s0 + $0x98] sm:$0xff]
  %v40 = vld [vmem:[%s0 + $0xa0] sm:$0xff]
  %v41 = vld [vmem:[%s0 + $0xa8] sm:$0xff]
  %v42 = vld [vmem:[%s0 + $0xb0] sm:$0xff]
  %v43 = vld [vmem:[%s0 + $0xb8] sm:$0xff]
  %v44 = vld [vmem:[%s0 + $0xc0] sm:$0xff]
  %v45 = vld [vmem:[%s0 + $0xc8] sm:$0xff]
  %v46 = vld [vmem:[%s0 + $0xd0] sm:$0xff]
  %v47 = vld [vmem:[%s0 + $0xd8] sm:$0xff]
  %v48 = vld [vmem:[%s0 + $0xe0] sm:$0xff]
  %v49 = vld [vmem:[%s0 + $0xe8] sm:$0xff]
  %v50 = vld [vmem:[%s0 + $0xf0] sm:$0xff]
  %v51 = vld [vmem:[%s0 + $0xf8] sm:$0xff]
  %v52 = vld [vmem:[%s0 + $0x100] sm:$0xff]
  %v53 = vld [vmem:[%s0 + $0x108] sm:$0xff]
  %v54 = vld [vmem:[%s0 + $0x110] sm:$0xff]
  %v55 = vld [vmem:[%s0 + $0x118] sm:$0xff]
  %v56 = vld [vmem:[%s0 + $0x120] sm:$0xff]
  %v57 = vld [vmem:[%s0 + $0x128] sm:$0xff]
  %v58 = vld [vmem:[%s0 + $0x130] sm:$0xff]
  %v59 = vld [vmem:[%s0 + $0x138] sm:$0xff]
  %v60 = vld [vmem:[%s0 + $0x140] sm:$0xff]
  %v61 = vld [vmem:[%s0 + $0x148] sm:$0xff]
  %v62 = vld [vmem:[%s0 + $0x150] sm:$0xff]
  %v63 = vld [vmem:[%s0 + $0x158] sm:$0xff]
  %v64 = vld [vmem:[%s0 + $0x160] sm:$0xff]
  %v65 = vld [vmem:[%s0 + $0x168] sm:$0xff]
  %v66 = vld [vmem:[%s0 + $0x170] sm:$0xff]
  %v67 = vld [vmem:[%s0 + $0x178] sm:$0xff]
  %v68 = vld [vmem:[%s0 + $0x180] sm:$0xff]
  %v69 = vld [vmem:[%s0 + $0x188] sm:$0xff]
  %v70 = vld [vmem:[%s0 + $0x190] sm:$0xff]
  %v71 = vld [vmem:[%s0 + $0x198] sm:$0xff]
  %v72 = vld [vmem:[%s0 + $0x1a0] sm:$0xff]
  %v73 = vld [vmem:[%s0 + $0x1a8] sm:$0xff]
  %v74 = vld [vmem:[%s0 + $0x1b0] sm:$0xff]
  %v75 = vld [vmem:[%s0 + $0x1b8] sm:$0xff]
  %v76 = vld [vmem:[%s0 + $0x1c0] sm:$0xff]
  %v77 = vld [vmem:[%s0 + $0x1c8] sm:$0xff]
  %v78 = vld [vmem:[%s0 + $0x1d0] sm:$0xff]
  %v79 = vld [vmem:[%s0 + $0x1d8] sm:$0xff]
  %v80 = vld [vmem:[%s0 + $0x1e0] sm:$0xff]
  %v81 = vld [vmem:[%s0 + $0x1e8] sm:$0xff]
  %v82 = vld [vmem:[%s0 + $0x1f0] sm:$0xff]
  %v83 = vld [vmem:[%s0 + $0x1f8] sm:$0xff]
  %v84 = vunpack.c.l.bf16 %v20
  %v85 = vunpack.c.h.bf16 %v20
  %v86 = vunpack.c.l.bf16 %v21
  %v87 = vunpack.c.h.bf16 %v21
  %v88 = vunpack.c.l.bf16 %v22
  %v89 = vunpack.c.h.bf16 %v22
  %v90 = vunpack.c.l.bf16 %v23
  %v91 = vunpack.c.h.bf16 %v23
  %v92 = vunpack.c.l.bf16 %v24
  %v93 = vunpack.c.h.bf16 %v24
  %v94 = vunpack.c.l.bf16 %v25
  %v95 = vunpack.c.h.bf16 %v25
  %v96 = vunpack.c.l.bf16 %v26
  %v97 = vunpack.c.h.bf16 %v26
  %v98 = vunpack.c.l.bf16 %v27
  %v99 = vunpack.c.h.bf16 %v27
  %v100 = vunpack.c.l.bf16 %v28
  %v101 = vunpack.c.h.bf16 %v28
  %v102 = vunpack.c.l.bf16 %v29
  %v103 = vunpack.c.h.bf16 %v29
  %v104 = vunpack.c.l.bf16 %v30
  %v105 = vunpack.c.h.bf16 %v30
  %v106 = vunpack.c.l.bf16 %v31
  %v107 = vunpack.c.h.bf16 %v31
  %v108 = vunpack.c.l.bf16 %v32
  %v109 = vunpack.c.h.bf16 %v32
  %v110 = vunpack.c.l.bf16 %v33
  %v111 = vunpack.c.h.bf16 %v33
  %v112 = vunpack.c.l.bf16 %v34
  %v113 = vunpack.c.h.bf16 %v34
  %v114 = vunpack.c.l.bf16 %v35
  %v115 = vunpack.c.h.bf16 %v35
  %v116 = vunpack.c.l.bf16 %v36
  %v117 = vunpack.c.h.bf16 %v36
  %v118 = vunpack.c.l.bf16 %v37
  %v119 = vunpack.c.h.bf16 %v37
  %v120 = vunpack.c.l.bf16 %v38
  %v121 = vunpack.c.h.bf16 %v38
  %v122 = vunpack.c.l.bf16 %v39
  %v123 = vunpack.c.h.bf16 %v39
  %v124 = vunpack.c.l.bf16 %v40
  %v125 = vunpack.c.h.bf16 %v40
  %v126 = vunpack.c.l.bf16 %v41
  %v127 = vunpack.c.h.bf16 %v41
  %v128 = vunpack.c.l.bf16 %v42
  %v129 = vunpack.c.h.bf16 %v42
  %v130 = vunpack.c.l.bf16 %v43
  %v131 = vunpack.c.h.bf16 %v43
  %v132 = vunpack.c.l.bf16 %v44
  %v133 = vunpack.c.h.bf16 %v44
  %v134 = vunpack.c.l.bf16 %v45
  %v135 = vunpack.c.h.bf16 %v45
  %v136 = vunpack.c.l.bf16 %v46
  %v137 = vunpack.c.h.bf16 %v46
  %v138 = vunpack.c.l.bf16 %v47
  %v139 = vunpack.c.h.bf16 %v47
  %v140 = vunpack.c.l.bf16 %v48
  %v141 = vunpack.c.h.bf16 %v48
  %v142 = vunpack.c.l.bf16 %v49
  %v143 = vunpack.c.h.bf16 %v49
  %v144 = vunpack.c.l.bf16 %v50
  %v145 = vunpack.c.h.bf16 %v50
  %v146 = vunpack.c.l.bf16 %v51
  %v147 = vunpack.c.h.bf16 %v51
  %v148 = vunpack.c.l.bf16 %v52
  %v149 = vunpack.c.h.bf16 %v52
  %v150 = vunpack.c.l.bf16 %v53
  %v151 = vunpack.c.h.bf16 %v53
  %v152 = vunpack.c.l.bf16 %v54
  %v153 = vunpack.c.h.bf16 %v54
  %v154 = vunpack.c.l.bf16 %v55
  %v155 = vunpack.c.h.bf16 %v55
  %v156 = vunpack.c.l.bf16 %v56
  %v157 = vunpack.c.h.bf16 %v56
  %v158 = vunpack.c.l.bf16 %v57
  %v159 = vunpack.c.h.bf16 %v57
  %v160 = vunpack.c.l.bf16 %v58
  %v161 = vunpack.c.h.bf16 %v58
  %v162 = vunpack.c.l.bf16 %v59
  %v163 = vunpack.c.h.bf16 %v59
  %v164 = vunpack.c.l.bf16 %v60
  %v165 = vunpack.c.h.bf16 %v60
  %v166 = vunpack.c.l.bf16 %v61
  %v167 = vunpack.c.h.bf16 %v61
  %v168 = vunpack.c.l.bf16 %v62
  %v169 = vunpack.c.h.bf16 %v62
  %v170 = vunpack.c.l.bf16 %v63
  %v171 = vunpack.c.h.bf16 %v63
  %v172 = vunpack.c.l.bf16 %v64
  %v173 = vunpack.c.h.bf16 %v64
  %v174 = vunpack.c.l.bf16 %v65
  %v175 = vunpack.c.h.bf16 %v65
  %v176 = vunpack.c.l.bf16 %v66
  %v177 = vunpack.c.h.bf16 %v66
  %v178 = vunpack.c.l.bf16 %v67
  %v179 = vunpack.c.h.bf16 %v67
  %v180 = vunpack.c.l.bf16 %v68
  %v181 = vunpack.c.h.bf16 %v68
  %v182 = vunpack.c.l.bf16 %v69
  %v183 = vunpack.c.h.bf16 %v69
  %v184 = vunpack.c.l.bf16 %v70
  %v185 = vunpack.c.h.bf16 %v70
  %v186 = vunpack.c.l.bf16 %v71
  %v187 = vunpack.c.h.bf16 %v71
  %v188 = vunpack.c.l.bf16 %v72
  %v189 = vunpack.c.h.bf16 %v72
  %v190 = vunpack.c.l.bf16 %v73
  %v191 = vunpack.c.h.bf16 %v73
  %v192 = vunpack.c.l.bf16 %v74
  %v193 = vunpack.c.h.bf16 %v74
  %v194 = vunpack.c.l.bf16 %v75
  %v195 = vunpack.c.h.bf16 %v75
  %v196 = vunpack.c.l.bf16 %v76
  %v197 = vunpack.c.h.bf16 %v76
  %v198 = vunpack.c.l.bf16 %v77
  %v199 = vunpack.c.h.bf16 %v77
  %v200 = vunpack.c.l.bf16 %v78
  %v201 = vunpack.c.h.bf16 %v78
  %v202 = vunpack.c.l.bf16 %v79
  %v203 = vunpack.c.h.bf16 %v79
  %v204 = vunpack.c.l.bf16 %v80
  %v205 = vunpack.c.h.bf16 %v80
  %v206 = vunpack.c.l.bf16 %v81
  %v207 = vunpack.c.h.bf16 %v81
  %v208 = vunpack.c.l.bf16 %v82
  %v209 = vunpack.c.h.bf16 %v82
  %v210 = vunpack.c.l.bf16 %v83
  %v211 = vunpack.c.h.bf16 %v83
  %v212 = vld [vmem:[%s1] sm:$0x3]
  %v214 = vlaneseq
  %v215 = vshrl.u32 %v214, 7
  %v216 = vsub.s32 0, %v215
  %v217 = vrot.slane %v212, %v216
  %v218 = vlaneseq
  %v219 = vshrl.u32 %v218, 7
  %v220 = vsub.s32 1, %v219
  %v221 = vrot.slane %v212, %v220
  %v224 = vmul.f32 %v84, %v217
  %v225 = vmul.f32 %v85, %v221
  %v226 = vmul.f32 %v86, %v217
  %v227 = vmul.f32 %v87, %v221
  %v228 = vmul.f32 %v88, %v217
  %v229 = vmul.f32 %v89, %v221
  %v230 = vmul.f32 %v90, %v217
  %v231 = vmul.f32 %v91, %v221
  %v232 = vmul.f32 %v92, %v217
  %v233 = vmul.f32 %v93, %v221
  %v234 = vmul.f32 %v94, %v217
  %v235 = vmul.f32 %v95, %v221
  %v236 = vmul.f32 %v96, %v217
  %v237 = vmul.f32 %v97, %v221
  %v238 = vmul.f32 %v98, %v217
  %v239 = vmul.f32 %v99, %v221
  %v240 = vmul.f32 %v100, %v217
  %v241 = vmul.f32 %v101, %v221
  %v242 = vmul.f32 %v102, %v217
  %v243 = vmul.f32 %v103, %v221
  %v244 = vmul.f32 %v104, %v217
  %v245 = vmul.f32 %v105, %v221
  %v246 = vmul.f32 %v106, %v217
  %v247 = vmul.f32 %v107, %v221
  %v248 = vmul.f32 %v108, %v217
  %v249 = vmul.f32 %v109, %v221
  %v250 = vmul.f32 %v110, %v217
  %v251 = vmul.f32 %v111, %v221
  %v252 = vmul.f32 %v112, %v217
  %v253 = vmul.f32 %v113, %v221
  %v254 = vmul.f32 %v114, %v217
  %v255 = vmul.f32 %v115, %v221
  %v256 = vmul.f32 %v116, %v217
  %v257 = vmul.f32 %v117, %v221
  %v258 = vmul.f32 %v118, %v217
  %v259 = vmul.f32 %v119, %v221
  %v260 = vmul.f32 %v120, %v217
  %v261 = vmul.f32 %v121, %v221
  %v262 = vmul.f32 %v122, %v217
  %v263 = vmul.f32 %v123, %v221
  %v264 = vmul.f32 %v124, %v217
  %v265 = vmul.f32 %v125, %v221
  %v266 = vmul.f32 %v126, %v217
  %v267 = vmul.f32 %v127, %v221
  %v268 = vmul.f32 %v128, %v217
  %v269 = vmul.f32 %v129, %v221
  %v270 = vmul.f32 %v130, %v217
  %v271 = vmul.f32 %v131, %v221
  %v272 = vmul.f32 %v132, %v217
  %v273 = vmul.f32 %v133, %v221
  %v274 = vmul.f32 %v134, %v217
  %v275 = vmul.f32 %v135, %v221
  %v276 = vmul.f32 %v136, %v217
  %v277 = vmul.f32 %v137, %v221
  %v278 = vmul.f32 %v138, %v217
  %v279 = vmul.f32 %v139, %v221
  %v280 = vmul.f32 %v140, %v217
  %v281 = vmul.f32 %v141, %v221
  %v282 = vmul.f32 %v142, %v217
  %v283 = vmul.f32 %v143, %v221
  %v284 = vmul.f32 %v144, %v217
  %v285 = vmul.f32 %v145, %v221
  %v286 = vmul.f32 %v146, %v217
  %v287 = vmul.f32 %v147, %v221
  %v288 = vmul.f32 %v148, %v217
  %v289 = vmul.f32 %v149, %v221
  %v290 = vmul.f32 %v150, %v217
  %v291 = vmul.f32 %v151, %v221
  %v292 = vmul.f32 %v152, %v217
  %v293 = vmul.f32 %v153, %v221
  %v294 = vmul.f32 %v154, %v217
  %v295 = vmul.f32 %v155, %v221
  %v296 = vmul.f32 %v156, %v217
  %v297 = vmul.f32 %v157, %v221
  %v298 = vmul.f32 %v158, %v217
  %v299 = vmul.f32 %v159, %v221
  %v300 = vmul.f32 %v160, %v217
  %v301 = vmul.f32 %v161, %v221
  %v302 = vmul.f32 %v162, %v217
  %v303 = vmul.f32 %v163, %v221
  %v304 = vmul.f32 %v164, %v217
  %v305 = vmul.f32 %v165, %v221
  %v306 = vmul.f32 %v166, %v217
  %v307 = vmul.f32 %v167, %v221
  %v308 = vmul.f32 %v168, %v217
  %v309 = vmul.f32 %v169, %v221
  %v310 = vmul.f32 %v170, %v217
  %v311 = vmul.f32 %v171, %v221
  %v312 = vmul.f32 %v172, %v217
  %v313 = vmul.f32 %v173, %v221
  %v314 = vmul.f32 %v174, %v217
  %v315 = vmul.f32 %v175, %v221
  %v316 = vmul.f32 %v176, %v217
  %v317 = vmul.f32 %v177, %v221
  %v318 = vmul.f32 %v178, %v217
  %v319 = vmul.f32 %v179, %v221
  %v320 = vmul.f32 %v180, %v217
  %v321 = vmul.f32 %v181, %v221
  %v322 = vmul.f32 %v182, %v217
  %v323 = vmul.f32 %v183, %v221
  %v324 = vmul.f32 %v184, %v217
  %v325 = vmul.f32 %v185, %v221
  %v326 = vmul.f32 %v186, %v217
  %v327 = vmul.f32 %v187, %v221
  %v328 = vmul.f32 %v188, %v217
  %v329 = vmul.f32 %v189, %v221
  %v330 = vmul.f32 %v190, %v217
  %v331 = vmul.f32 %v191, %v221
  %v332 = vmul.f32 %v192, %v217
  %v333 = vmul.f32 %v193, %v221
  %v334 = vmul.f32 %v194, %v217
  %v335 = vmul.f32 %v195, %v221
  %v336 = vmul.f32 %v196, %v217
  %v337 = vmul.f32 %v197, %v221
  %v338 = vmul.f32 %v198, %v217
  %v339 = vmul.f32 %v199, %v221
  %v340 = vmul.f32 %v200, %v217
  %v341 = vmul.f32 %v201, %v221
  %v342 = vmul.f32 %v202, %v217
  %v343 = vmul.f32 %v203, %v221
  %v344 = vmul.f32 %v204, %v217
  %v345 = vmul.f32 %v205, %v221
  %v346 = vmul.f32 %v206, %v217
  %v347 = vmul.f32 %v207, %v221
  %v348 = vmul.f32 %v208, %v217
  %v349 = vmul.f32 %v209, %v221
  %v350 = vmul.f32 %v210, %v217
  %v351 = vmul.f32 %v211, %v221
  %v352 = vld [vmem:[%s2] sm:$0x3]
  %v354 = vlaneseq
  %v355 = vshrl.u32 %v354, 7
  %v356 = vsub.s32 0, %v355
  %v357 = vrot.slane %v352, %v356
  %v358 = vlaneseq
  %v359 = vshrl.u32 %v358, 7
  %v360 = vsub.s32 1, %v359
  %v361 = vrot.slane %v352, %v360
  %v364 = vadd.f32 %v224, %v357
  %v365 = vadd.f32 %v225, %v361
  %v366 = vadd.f32 %v226, %v357
  %v367 = vadd.f32 %v227, %v361
  %v368 = vadd.f32 %v228, %v357
  %v369 = vadd.f32 %v229, %v361
  %v370 = vadd.f32 %v230, %v357
  %v371 = vadd.f32 %v231, %v361
  %v372 = vadd.f32 %v232, %v357
  %v373 = vadd.f32 %v233, %v361
  %v374 = vadd.f32 %v234, %v357
  %v375 = vadd.f32 %v235, %v361
  %v376 = vadd.f32 %v236, %v357
  %v377 = vadd.f32 %v237, %v361
  %v378 = vadd.f32 %v238, %v357
  %v379 = vadd.f32 %v239, %v361
  %v380 = vadd.f32 %v240, %v357
  %v381 = vadd.f32 %v241, %v361
  %v382 = vadd.f32 %v242, %v357
  %v383 = vadd.f32 %v243, %v361
  %v384 = vadd.f32 %v244, %v357
  %v385 = vadd.f32 %v245, %v361
  %v386 = vadd.f32 %v246, %v357
  %v387 = vadd.f32 %v247, %v361
  %v388 = vadd.f32 %v248, %v357
  %v389 = vadd.f32 %v249, %v361
  %v390 = vadd.f32 %v250, %v357
  %v391 = vadd.f32 %v251, %v361
  %v392 = vadd.f32 %v252, %v357
  %v393 = vadd.f32 %v253, %v361
  %v394 = vadd.f32 %v254, %v357
  %v395 = vadd.f32 %v255, %v361
  %v396 = vadd.f32 %v256, %v357
  %v397 = vadd.f32 %v257, %v361
  %v398 = vadd.f32 %v258, %v357
  %v399 = vadd.f32 %v259, %v361
  %v400 = vadd.f32 %v260, %v357
  %v401 = vadd.f32 %v261, %v361
  %v402 = vadd.f32 %v262, %v357
  %v403 = vadd.f32 %v263, %v361
  %v404 = vadd.f32 %v264, %v357
  %v405 = vadd.f32 %v265, %v361
  %v406 = vadd.f32 %v266, %v357
  %v407 = vadd.f32 %v267, %v361
  %v408 = vadd.f32 %v268, %v357
  %v409 = vadd.f32 %v269, %v361
  %v410 = vadd.f32 %v270, %v357
  %v411 = vadd.f32 %v271, %v361
  %v412 = vadd.f32 %v272, %v357
  %v413 = vadd.f32 %v273, %v361
  %v414 = vadd.f32 %v274, %v357
  %v415 = vadd.f32 %v275, %v361
  %v416 = vadd.f32 %v276, %v357
  %v417 = vadd.f32 %v277, %v361
  %v418 = vadd.f32 %v278, %v357
  %v419 = vadd.f32 %v279, %v361
  %v420 = vadd.f32 %v280, %v357
  %v421 = vadd.f32 %v281, %v361
  %v422 = vadd.f32 %v282, %v357
  %v423 = vadd.f32 %v283, %v361
  %v424 = vadd.f32 %v284, %v357
  %v425 = vadd.f32 %v285, %v361
  %v426 = vadd.f32 %v286, %v357
  %v427 = vadd.f32 %v287, %v361
  %v428 = vadd.f32 %v288, %v357
  %v429 = vadd.f32 %v289, %v361
  %v430 = vadd.f32 %v290, %v357
  %v431 = vadd.f32 %v291, %v361
  %v432 = vadd.f32 %v292, %v357
  %v433 = vadd.f32 %v293, %v361
  %v434 = vadd.f32 %v294, %v357
  %v435 = vadd.f32 %v295, %v361
  %v436 = vadd.f32 %v296, %v357
  %v437 = vadd.f32 %v297, %v361
  %v438 = vadd.f32 %v298, %v357
  %v439 = vadd.f32 %v299, %v361
  %v440 = vadd.f32 %v300, %v357
  %v441 = vadd.f32 %v301, %v361
  %v442 = vadd.f32 %v302, %v357
  %v443 = vadd.f32 %v303, %v361
  %v444 = vadd.f32 %v304, %v357
  %v445 = vadd.f32 %v305, %v361
  %v446 = vadd.f32 %v306, %v357
  %v447 = vadd.f32 %v307, %v361
  %v448 = vadd.f32 %v308, %v357
  %v449 = vadd.f32 %v309, %v361
  %v450 = vadd.f32 %v310, %v357
  %v451 = vadd.f32 %v311, %v361
  %v452 = vadd.f32 %v312, %v357
  %v453 = vadd.f32 %v313, %v361
  %v454 = vadd.f32 %v314, %v357
  %v455 = vadd.f32 %v315, %v361
  %v456 = vadd.f32 %v316, %v357
  %v457 = vadd.f32 %v317, %v361
  %v458 = vadd.f32 %v318, %v357
  %v459 = vadd.f32 %v319, %v361
  %v460 = vadd.f32 %v320, %v357
  %v461 = vadd.f32 %v321, %v361
  %v462 = vadd.f32 %v322, %v357
  %v463 = vadd.f32 %v323, %v361
  %v464 = vadd.f32 %v324, %v357
  %v465 = vadd.f32 %v325, %v361
  %v466 = vadd.f32 %v326, %v357
  %v467 = vadd.f32 %v327, %v361
  %v468 = vadd.f32 %v328, %v357
  %v469 = vadd.f32 %v329, %v361
  %v470 = vadd.f32 %v330, %v357
  %v471 = vadd.f32 %v331, %v361
  %v472 = vadd.f32 %v332, %v357
  %v473 = vadd.f32 %v333, %v361
  %v474 = vadd.f32 %v334, %v357
  %v475 = vadd.f32 %v335, %v361
  %v476 = vadd.f32 %v336, %v357
  %v477 = vadd.f32 %v337, %v361
  %v478 = vadd.f32 %v338, %v357
  %v479 = vadd.f32 %v339, %v361
  %v480 = vadd.f32 %v340, %v357
  %v481 = vadd.f32 %v341, %v361
  %v482 = vadd.f32 %v342, %v357
  %v483 = vadd.f32 %v343, %v361
  %v484 = vadd.f32 %v344, %v357
  %v485 = vadd.f32 %v345, %v361
  %v486 = vadd.f32 %v346, %v357
  %v487 = vadd.f32 %v347, %v361
  %v488 = vadd.f32 %v348, %v357
  %v489 = vadd.f32 %v349, %v361
  %v490 = vadd.f32 %v350, %v357
  %v491 = vadd.f32 %v351, %v361
  %vm492 = vcmp.ge.f32.partialorder %v364, 0.0
  %vm493 = vcmp.ge.f32.partialorder %v365, 0.0
  %vm494 = vcmp.ge.f32.partialorder %v366, 0.0
  %vm495 = vcmp.ge.f32.partialorder %v367, 0.0
  %vm496 = vcmp.ge.f32.partialorder %v368, 0.0
  %vm497 = vcmp.ge.f32.partialorder %v369, 0.0
  %vm498 = vcmp.ge.f32.partialorder %v370, 0.0
  %vm499 = vcmp.ge.f32.partialorder %v371, 0.0
  %vm500 = vcmp.ge.f32.partialorder %v372, 0.0
  %vm501 = vcmp.ge.f32.partialorder %v373, 0.0
  %vm502 = vcmp.ge.f32.partialorder %v374, 0.0
  %vm503 = vcmp.ge.f32.partialorder %v375, 0.0
  %vm504 = vcmp.ge.f32.partialorder %v376, 0.0
  %vm505 = vcmp.ge.f32.partialorder %v377, 0.0
  %vm506 = vcmp.ge.f32.partialorder %v378, 0.0
  %vm507 = vcmp.ge.f32.partialorder %v379, 0.0
  %vm508 = vcmp.ge.f32.partialorder %v380, 0.0
  %vm509 = vcmp.ge.f32.partialorder %v381, 0.0
  %vm510 = vcmp.ge.f32.partialorder %v382, 0.0
  %vm511 = vcmp.ge.f32.partialorder %v383, 0.0
  %vm512 = vcmp.ge.f32.partialorder %v384, 0.0
  %vm513 = vcmp.ge.f32.partialorder %v385, 0.0
  %vm514 = vcmp.ge.f32.partialorder %v386, 0.0
  %vm515 = vcmp.ge.f32.partialorder %v387, 0.0
  %vm516 = vcmp.ge.f32.partialorder %v388, 0.0
  %vm517 = vcmp.ge.f32.partialorder %v389, 0.0
  %vm518 = vcmp.ge.f32.partialorder %v390, 0.0
  %vm519 = vcmp.ge.f32.partialorder %v391, 0.0
  %vm520 = vcmp.ge.f32.partialorder %v392, 0.0
  %vm521 = vcmp.ge.f32.partialorder %v393, 0.0
  %vm522 = vcmp.ge.f32.partialorder %v394, 0.0
  %vm523 = vcmp.ge.f32.partialorder %v395, 0.0
  %vm524 = vcmp.ge.f32.partialorder %v396, 0.0
  %vm525 = vcmp.ge.f32.partialorder %v397, 0.0
  %vm526 = vcmp.ge.f32.partialorder %v398, 0.0
  %vm527 = vcmp.ge.f32.partialorder %v399, 0.0
  %vm528 = vcmp.ge.f32.partialorder %v400, 0.0
  %vm529 = vcmp.ge.f32.partialorder %v401, 0.0
  %vm530 = vcmp.ge.f32.partialorder %v402, 0.0
  %vm531 = vcmp.ge.f32.partialorder %v403, 0.0
  %vm532 = vcmp.ge.f32.partialorder %v404, 0.0
  %vm533 = vcmp.ge.f32.partialorder %v405, 0.0
  %vm534 = vcmp.ge.f32.partialorder %v406, 0.0
  %vm535 = vcmp.ge.f32.partialorder %v407, 0.0
  %vm536 = vcmp.ge.f32.partialorder %v408, 0.0
  %vm537 = vcmp.ge.f32.partialorder %v409, 0.0
  %vm538 = vcmp.ge.f32.partialorder %v410, 0.0
  %vm539 = vcmp.ge.f32.partialorder %v411, 0.0
  %vm540 = vcmp.ge.f32.partialorder %v412, 0.0
  %vm541 = vcmp.ge.f32.partialorder %v413, 0.0
  %vm542 = vcmp.ge.f32.partialorder %v414, 0.0
  %vm543 = vcmp.ge.f32.partialorder %v415, 0.0
  %vm544 = vcmp.ge.f32.partialorder %v416, 0.0
  %vm545 = vcmp.ge.f32.partialorder %v417, 0.0
  %vm546 = vcmp.ge.f32.partialorder %v418, 0.0
  %vm547 = vcmp.ge.f32.partialorder %v419, 0.0
  %vm548 = vcmp.ge.f32.partialorder %v420, 0.0
  %vm549 = vcmp.ge.f32.partialorder %v421, 0.0
  %vm550 = vcmp.ge.f32.partialorder %v422, 0.0
  %vm551 = vcmp.ge.f32.partialorder %v423, 0.0
  %vm552 = vcmp.ge.f32.partialorder %v424, 0.0
  %vm553 = vcmp.ge.f32.partialorder %v425, 0.0
  %vm554 = vcmp.ge.f32.partialorder %v426, 0.0
  %vm555 = vcmp.ge.f32.partialorder %v427, 0.0
  %vm556 = vcmp.ge.f32.partialorder %v428, 0.0
  %vm557 = vcmp.ge.f32.partialorder %v429, 0.0
  %vm558 = vcmp.ge.f32.partialorder %v430, 0.0
  %vm559 = vcmp.ge.f32.partialorder %v431, 0.0
  %vm560 = vcmp.ge.f32.partialorder %v432, 0.0
  %vm561 = vcmp.ge.f32.partialorder %v433, 0.0
  %vm562 = vcmp.ge.f32.partialorder %v434, 0.0
  %vm563 = vcmp.ge.f32.partialorder %v435, 0.0
  %vm564 = vcmp.ge.f32.partialorder %v436, 0.0
  %vm565 = vcmp.ge.f32.partialorder %v437, 0.0
  %vm566 = vcmp.ge.f32.partialorder %v438, 0.0
  %vm567 = vcmp.ge.f32.partialorder %v439, 0.0
  %vm568 = vcmp.ge.f32.partialorder %v440, 0.0
  %vm569 = vcmp.ge.f32.partialorder %v441, 0.0
  %vm570 = vcmp.ge.f32.partialorder %v442, 0.0
  %vm571 = vcmp.ge.f32.partialorder %v443, 0.0
  %vm572 = vcmp.ge.f32.partialorder %v444, 0.0
  %vm573 = vcmp.ge.f32.partialorder %v445, 0.0
  %vm574 = vcmp.ge.f32.partialorder %v446, 0.0
  %vm575 = vcmp.ge.f32.partialorder %v447, 0.0
  %vm576 = vcmp.ge.f32.partialorder %v448, 0.0
  %vm577 = vcmp.ge.f32.partialorder %v449, 0.0
  %vm578 = vcmp.ge.f32.partialorder %v450, 0.0
  %vm579 = vcmp.ge.f32.partialorder %v451, 0.0
  %vm580 = vcmp.ge.f32.partialorder %v452, 0.0
  %vm581 = vcmp.ge.f32.partialorder %v453, 0.0
  %vm582 = vcmp.ge.f32.partialorder %v454, 0.0
  %vm583 = vcmp.ge.f32.partialorder %v455, 0.0
  %vm584 = vcmp.ge.f32.partialorder %v456, 0.0
  %vm585 = vcmp.ge.f32.partialorder %v457, 0.0
  %vm586 = vcmp.ge.f32.partialorder %v458, 0.0
  %vm587 = vcmp.ge.f32.partialorder %v459, 0.0
  %vm588 = vcmp.ge.f32.partialorder %v460, 0.0
  %vm589 = vcmp.ge.f32.partialorder %v461, 0.0
  %vm590 = vcmp.ge.f32.partialorder %v462, 0.0
  %vm591 = vcmp.ge.f32.partialorder %v463, 0.0
  %vm592 = vcmp.ge.f32.partialorder %v464, 0.0
  %vm593 = vcmp.ge.f32.partialorder %v465, 0.0
  %vm594 = vcmp.ge.f32.partialorder %v466, 0.0
  %vm595 = vcmp.ge.f32.partialorder %v467, 0.0
  %vm596 = vcmp.ge.f32.partialorder %v468, 0.0
  %vm597 = vcmp.ge.f32.partialorder %v469, 0.0
  %vm598 = vcmp.ge.f32.partialorder %v470, 0.0
  %vm599 = vcmp.ge.f32.partialorder %v471, 0.0
  %vm600 = vcmp.ge.f32.partialorder %v472, 0.0
  %vm601 = vcmp.ge.f32.partialorder %v473, 0.0
  %vm602 = vcmp.ge.f32.partialorder %v474, 0.0
  %vm603 = vcmp.ge.f32.partialorder %v475, 0.0
  %vm604 = vcmp.ge.f32.partialorder %v476, 0.0
  %vm605 = vcmp.ge.f32.partialorder %v477, 0.0
  %vm606 = vcmp.ge.f32.partialorder %v478, 0.0
  %vm607 = vcmp.ge.f32.partialorder %v479, 0.0
  %vm608 = vcmp.ge.f32.partialorder %v480, 0.0
  %vm609 = vcmp.ge.f32.partialorder %v481, 0.0
  %vm610 = vcmp.ge.f32.partialorder %v482, 0.0
  %vm611 = vcmp.ge.f32.partialorder %v483, 0.0
  %vm612 = vcmp.ge.f32.partialorder %v484, 0.0
  %vm613 = vcmp.ge.f32.partialorder %v485, 0.0
  %vm614 = vcmp.ge.f32.partialorder %v486, 0.0
  %vm615 = vcmp.ge.f32.partialorder %v487, 0.0
  %vm616 = vcmp.ge.f32.partialorder %v488, 0.0
  %vm617 = vcmp.ge.f32.partialorder %v489, 0.0
  %vm618 = vcmp.ge.f32.partialorder %v490, 0.0
  %vm619 = vcmp.ge.f32.partialorder %v491, 0.0
  %v620 = vmul.f32 %v364, 0.2
  %v621 = vmul.f32 %v365, 0.2
  %v622 = vmul.f32 %v366, 0.2
  %v623 = vmul.f32 %v367, 0.2
  %v624 = vmul.f32 %v368, 0.2
  %v625 = vmul.f32 %v369, 0.2
  %v626 = vmul.f32 %v370, 0.2
  %v627 = vmul.f32 %v371, 0.2
  %v628 = vmul.f32 %v372, 0.2
  %v629 = vmul.f32 %v373, 0.2
  %v630 = vmul.f32 %v374, 0.2
  %v631 = vmul.f32 %v375, 0.2
  %v632 = vmul.f32 %v376, 0.2
  %v633 = vmul.f32 %v377, 0.2
  %v634 = vmul.f32 %v378, 0.2
  %v635 = vmul.f32 %v379, 0.2
  %v636 = vmul.f32 %v380, 0.2
  %v637 = vmul.f32 %v381, 0.2
  %v638 = vmul.f32 %v382, 0.2
  %v639 = vmul.f32 %v383, 0.2
  %v640 = vmul.f32 %v384, 0.2
  %v641 = vmul.f32 %v385, 0.2
  %v642 = vmul.f32 %v386, 0.2
  %v643 = vmul.f32 %v387, 0.2
  %v644 = vmul.f32 %v388, 0.2
  %v645 = vmul.f32 %v389, 0.2
  %v646 = vmul.f32 %v390, 0.2
  %v647 = vmul.f32 %v391, 0.2
  %v648 = vmul.f32 %v392, 0.2
  %v649 = vmul.f32 %v393, 0.2
  %v650 = vmul.f32 %v394, 0.2
  %v651 = vmul.f32 %v395, 0.2
  %v652 = vmul.f32 %v396, 0.2
  %v653 = vmul.f32 %v397, 0.2
  %v654 = vmul.f32 %v398, 0.2
  %v655 = vmul.f32 %v399, 0.2
  %v656 = vmul.f32 %v400, 0.2
  %v657 = vmul.f32 %v401, 0.2
  %v658 = vmul.f32 %v402, 0.2
  %v659 = vmul.f32 %v403, 0.2
  %v660 = vmul.f32 %v404, 0.2
  %v661 = vmul.f32 %v405, 0.2
  %v662 = vmul.f32 %v406, 0.2
  %v663 = vmul.f32 %v407, 0.2
  %v664 = vmul.f32 %v408, 0.2
  %v665 = vmul.f32 %v409, 0.2
  %v666 = vmul.f32 %v410, 0.2
  %v667 = vmul.f32 %v411, 0.2
  %v668 = vmul.f32 %v412, 0.2
  %v669 = vmul.f32 %v413, 0.2
  %v670 = vmul.f32 %v414, 0.2
  %v671 = vmul.f32 %v415, 0.2
  %v672 = vmul.f32 %v416, 0.2
  %v673 = vmul.f32 %v417, 0.2
  %v674 = vmul.f32 %v418, 0.2
  %v675 = vmul.f32 %v419, 0.2
  %v676 = vmul.f32 %v420, 0.2
  %v677 = vmul.f32 %v421, 0.2
  %v678 = vmul.f32 %v422, 0.2
  %v679 = vmul.f32 %v423, 0.2
  %v680 = vmul.f32 %v424, 0.2
  %v681 = vmul.f32 %v425, 0.2
  %v682 = vmul.f32 %v426, 0.2
  %v683 = vmul.f32 %v427, 0.2
  %v684 = vmul.f32 %v428, 0.2
  %v685 = vmul.f32 %v429, 0.2
  %v686 = vmul.f32 %v430, 0.2
  %v687 = vmul.f32 %v431, 0.2
  %v688 = vmul.f32 %v432, 0.2
  %v689 = vmul.f32 %v433, 0.2
  %v690 = vmul.f32 %v434, 0.2
  %v691 = vmul.f32 %v435, 0.2
  %v692 = vmul.f32 %v436, 0.2
  %v693 = vmul.f32 %v437, 0.2
  %v694 = vmul.f32 %v438, 0.2
  %v695 = vmul.f32 %v439, 0.2
  %v696 = vmul.f32 %v440, 0.2
  %v697 = vmul.f32 %v441, 0.2
  %v698 = vmul.f32 %v442, 0.2
  %v699 = vmul.f32 %v443, 0.2
  %v700 = vmul.f32 %v444, 0.2
  %v701 = vmul.f32 %v445, 0.2
  %v702 = vmul.f32 %v446, 0.2
  %v703 = vmul.f32 %v447, 0.2
  %v704 = vmul.f32 %v448, 0.2
  %v705 = vmul.f32 %v449, 0.2
  %v706 = vmul.f32 %v450, 0.2
  %v707 = vmul.f32 %v451, 0.2
  %v708 = vmul.f32 %v452, 0.2
  %v709 = vmul.f32 %v453, 0.2
  %v710 = vmul.f32 %v454, 0.2
  %v711 = vmul.f32 %v455, 0.2
  %v712 = vmul.f32 %v456, 0.2
  %v713 = vmul.f32 %v457, 0.2
  %v714 = vmul.f32 %v458, 0.2
  %v715 = vmul.f32 %v459, 0.2
  %v716 = vmul.f32 %v460, 0.2
  %v717 = vmul.f32 %v461, 0.2
  %v718 = vmul.f32 %v462, 0.2
  %v719 = vmul.f32 %v463, 0.2
  %v720 = vmul.f32 %v464, 0.2
  %v721 = vmul.f32 %v465, 0.2
  %v722 = vmul.f32 %v466, 0.2
  %v723 = vmul.f32 %v467, 0.2
  %v724 = vmul.f32 %v468, 0.2
  %v725 = vmul.f32 %v469, 0.2
  %v726 = vmul.f32 %v470, 0.2
  %v727 = vmul.f32 %v471, 0.2
  %v728 = vmul.f32 %v472, 0.2
  %v729 = vmul.f32 %v473, 0.2
  %v730 = vmul.f32 %v474, 0.2
  %v731 = vmul.f32 %v475, 0.2
  %v732 = vmul.f32 %v476, 0.2
  %v733 = vmul.f32 %v477, 0.2
  %v734 = vmul.f32 %v478, 0.2
  %v735 = vmul.f32 %v479, 0.2
  %v736 = vmul.f32 %v480, 0.2
  %v737 = vmul.f32 %v481, 0.2
  %v738 = vmul.f32 %v482, 0.2
  %v739 = vmul.f32 %v483, 0.2
  %v740 = vmul.f32 %v484, 0.2
  %v741 = vmul.f32 %v485, 0.2
  %v742 = vmul.f32 %v486, 0.2
  %v743 = vmul.f32 %v487, 0.2
  %v744 = vmul.f32 %v488, 0.2
  %v745 = vmul.f32 %v489, 0.2
  %v746 = vmul.f32 %v490, 0.2
  %v747 = vmul.f32 %v491, 0.2
  %v748 = vsel %vm492, %v364, %v620
  %v749 = vsel %vm493, %v365, %v621
  %v750 = vsel %vm494, %v366, %v622
  %v751 = vsel %vm495, %v367, %v623
  %v752 = vsel %vm496, %v368, %v624
  %v753 = vsel %vm497, %v369, %v625
  %v754 = vsel %vm498, %v370, %v626
  %v755 = vsel %vm499, %v371, %v627
  %v756 = vsel %vm500, %v372, %v628
  %v757 = vsel %vm501, %v373, %v629
  %v758 = vsel %vm502, %v374, %v630
  %v759 = vsel %vm503, %v375, %v631
  %v760 = vsel %vm504, %v376, %v632
  %v761 = vsel %vm505, %v377, %v633
  %v762 = vsel %vm506, %v378, %v634
  %v763 = vsel %vm507, %v379, %v635
  %v764 = vsel %vm508, %v380, %v636
  %v765 = vsel %vm509, %v381, %v637
  %v766 = vsel %vm510, %v382, %v638
  %v767 = vsel %vm511, %v383, %v639
  %v768 = vsel %vm512, %v384, %v640
  %v769 = vsel %vm513, %v385, %v641
  %v770 = vsel %vm514, %v386, %v642
  %v771 = vsel %vm515, %v387, %v643
  %v772 = vsel %vm516, %v388, %v644
  %v773 = vsel %vm517, %v389, %v645
  %v774 = vsel %vm518, %v390, %v646
  %v775 = vsel %vm519, %v391, %v647
  %v776 = vsel %vm520, %v392, %v648
  %v777 = vsel %vm521, %v393, %v649
  %v778 = vsel %vm522, %v394, %v650
  %v779 = vsel %vm523, %v395, %v651
  %v780 = vsel %vm524, %v396, %v652
  %v781 = vsel %vm525, %v397, %v653
  %v782 = vsel %vm526, %v398, %v654
  %v783 = vsel %vm527, %v399, %v655
  %v784 = vsel %vm528, %v400, %v656
  %v785 = vsel %vm529, %v401, %v657
  %v786 = vsel %vm530, %v402, %v658
  %v787 = vsel %vm531, %v403, %v659
  %v788 = vsel %vm532, %v404, %v660
  %v789 = vsel %vm533, %v405, %v661
  %v790 = vsel %vm534, %v406, %v662
  %v791 = vsel %vm535, %v407, %v663
  %v792 = vsel %vm536, %v408, %v664
  %v793 = vsel %vm537, %v409, %v665
  %v794 = vsel %vm538, %v410, %v666
  %v795 = vsel %vm539, %v411, %v667
  %v796 = vsel %vm540, %v412, %v668
  %v797 = vsel %vm541, %v413, %v669
  %v798 = vsel %vm542, %v414, %v670
  %v799 = vsel %vm543, %v415, %v671
  %v800 = vsel %vm544, %v416, %v672
  %v801 = vsel %vm545, %v417, %v673
  %v802 = vsel %vm546, %v418, %v674
  %v803 = vsel %vm547, %v419, %v675
  %v804 = vsel %vm548, %v420, %v676
  %v805 = vsel %vm549, %v421, %v677
  %v806 = vsel %vm550, %v422, %v678
  %v807 = vsel %vm551, %v423, %v679
  %v808 = vsel %vm552, %v424, %v680
  %v809 = vsel %vm553, %v425, %v681
  %v810 = vsel %vm554, %v426, %v682
  %v811 = vsel %vm555, %v427, %v683
  %v812 = vsel %vm556, %v428, %v684
  %v813 = vsel %vm557, %v429, %v685
  %v814 = vsel %vm558, %v430, %v686
  %v815 = vsel %vm559, %v431, %v687
  %v816 = vsel %vm560, %v432, %v688
  %v817 = vsel %vm561, %v433, %v689
  %v818 = vsel %vm562, %v434, %v690
  %v819 = vsel %vm563, %v435, %v691
  %v820 = vsel %vm564, %v436, %v692
  %v821 = vsel %vm565, %v437, %v693
  %v822 = vsel %vm566, %v438, %v694
  %v823 = vsel %vm567, %v439, %v695
  %v824 = vsel %vm568, %v440, %v696
  %v825 = vsel %vm569, %v441, %v697
  %v826 = vsel %vm570, %v442, %v698
  %v827 = vsel %vm571, %v443, %v699
  %v828 = vsel %vm572, %v444, %v700
  %v829 = vsel %vm573, %v445, %v701
  %v830 = vsel %vm574, %v446, %v702
  %v831 = vsel %vm575, %v447, %v703
  %v832 = vsel %vm576, %v448, %v704
  %v833 = vsel %vm577, %v449, %v705
  %v834 = vsel %vm578, %v450, %v706
  %v835 = vsel %vm579, %v451, %v707
  %v836 = vsel %vm580, %v452, %v708
  %v837 = vsel %vm581, %v453, %v709
  %v838 = vsel %vm582, %v454, %v710
  %v839 = vsel %vm583, %v455, %v711
  %v840 = vsel %vm584, %v456, %v712
  %v841 = vsel %vm585, %v457, %v713
  %v842 = vsel %vm586, %v458, %v714
  %v843 = vsel %vm587, %v459, %v715
  %v844 = vsel %vm588, %v460, %v716
  %v845 = vsel %vm589, %v461, %v717
  %v846 = vsel %vm590, %v462, %v718
  %v847 = vsel %vm591, %v463, %v719
  %v848 = vsel %vm592, %v464, %v720
  %v849 = vsel %vm593, %v465, %v721
  %v850 = vsel %vm594, %v466, %v722
  %v851 = vsel %vm595, %v467, %v723
  %v852 = vsel %vm596, %v468, %v724
  %v853 = vsel %vm597, %v469, %v725
  %v854 = vsel %vm598, %v470, %v726
  %v855 = vsel %vm599, %v471, %v727
  %v856 = vsel %vm600, %v472, %v728
  %v857 = vsel %vm601, %v473, %v729
  %v858 = vsel %vm602, %v474, %v730
  %v859 = vsel %vm603, %v475, %v731
  %v860 = vsel %vm604, %v476, %v732
  %v861 = vsel %vm605, %v477, %v733
  %v862 = vsel %vm606, %v478, %v734
  %v863 = vsel %vm607, %v479, %v735
  %v864 = vsel %vm608, %v480, %v736
  %v865 = vsel %vm609, %v481, %v737
  %v866 = vsel %vm610, %v482, %v738
  %v867 = vsel %vm611, %v483, %v739
  %v868 = vsel %vm612, %v484, %v740
  %v869 = vsel %vm613, %v485, %v741
  %v870 = vsel %vm614, %v486, %v742
  %v871 = vsel %vm615, %v487, %v743
  %v872 = vsel %vm616, %v488, %v744
  %v873 = vsel %vm617, %v489, %v745
  %v874 = vsel %vm618, %v490, %v746
  %v875 = vsel %vm619, %v491, %v747
  %v876 = vpack.c.bf16 %v750, %v748
  %v877 = vpack.c.bf16 %v751, %v749
  %v878 = vpack.c.bf16 %v754, %v752
  %v879 = vpack.c.bf16 %v755, %v753
  %v880 = vpack.c.bf16 %v758, %v756
  %v881 = vpack.c.bf16 %v759, %v757
  %v882 = vpack.c.bf16 %v762, %v760
  %v883 = vpack.c.bf16 %v763, %v761
  %v884 = vpack.c.bf16 %v766, %v764
  %v885 = vpack.c.bf16 %v767, %v765
  %v886 = vpack.c.bf16 %v770, %v768
  %v887 = vpack.c.bf16 %v771, %v769
  %v888 = vpack.c.bf16 %v774, %v772
  %v889 = vpack.c.bf16 %v775, %v773
  %v890 = vpack.c.bf16 %v778, %v776
  %v891 = vpack.c.bf16 %v779, %v777
  %v892 = vpack.c.bf16 %v782, %v780
  %v893 = vpack.c.bf16 %v783, %v781
  %v894 = vpack.c.bf16 %v786, %v784
  %v895 = vpack.c.bf16 %v787, %v785
  %v896 = vpack.c.bf16 %v790, %v788
  %v897 = vpack.c.bf16 %v791, %v789
  %v898 = vpack.c.bf16 %v794, %v792
  %v899 = vpack.c.bf16 %v795, %v793
  %v900 = vpack.c.bf16 %v798, %v796
  %v901 = vpack.c.bf16 %v799, %v797
  %v902 = vpack.c.bf16 %v802, %v800
  %v903 = vpack.c.bf16 %v803, %v801
  %v904 = vpack.c.bf16 %v806, %v804
  %v905 = vpack.c.bf16 %v807, %v805
  %v906 = vpack.c.bf16 %v810, %v808
  %v907 = vpack.c.bf16 %v811, %v809
  %v908 = vpack.c.bf16 %v814, %v812
  %v909 = vpack.c.bf16 %v815, %v813
  %v910 = vpack.c.bf16 %v818, %v816
  %v911 = vpack.c.bf16 %v819, %v817
  %v912 = vpack.c.bf16 %v822, %v820
  %v913 = vpack.c.bf16 %v823, %v821
  %v914 = vpack.c.bf16 %v826, %v824
  %v915 = vpack.c.bf16 %v827, %v825
  %v916 = vpack.c.bf16 %v830, %v828
  %v917 = vpack.c.bf16 %v831, %v829
  %v918 = vpack.c.bf16 %v834, %v832
  %v919 = vpack.c.bf16 %v835, %v833
  %v920 = vpack.c.bf16 %v838, %v836
  %v921 = vpack.c.bf16 %v839, %v837
  %v922 = vpack.c.bf16 %v842, %v840
  %v923 = vpack.c.bf16 %v843, %v841
  %v924 = vpack.c.bf16 %v846, %v844
  %v925 = vpack.c.bf16 %v847, %v845
  %v926 = vpack.c.bf16 %v850, %v848
  %v927 = vpack.c.bf16 %v851, %v849
  %v928 = vpack.c.bf16 %v854, %v852
  %v929 = vpack.c.bf16 %v855, %v853
  %v930 = vpack.c.bf16 %v858, %v856
  %v931 = vpack.c.bf16 %v859, %v857
  %v932 = vpack.c.bf16 %v862, %v860
  %v933 = vpack.c.bf16 %v863, %v861
  %v934 = vpack.c.bf16 %v866, %v864
  %v935 = vpack.c.bf16 %v867, %v865
  %v936 = vpack.c.bf16 %v870, %v868
  %v937 = vpack.c.bf16 %v871, %v869
  %v938 = vpack.c.bf16 %v874, %v872
  %v939 = vpack.c.bf16 %v875, %v873
  %v940 = vld [vmem:[%s3] sm:$0xf]
  %v941 = vld [vmem:[%s3 + $0x4] sm:$0xf]
  %v942 = vld [vmem:[%s3 + $0x8] sm:$0xf]
  %v943 = vld [vmem:[%s3 + $0xc] sm:$0xf]
  %v944 = vld [vmem:[%s3 + $0x10] sm:$0xf]
  %v945 = vld [vmem:[%s3 + $0x14] sm:$0xf]
  %v946 = vld [vmem:[%s3 + $0x18] sm:$0xf]
  %v947 = vld [vmem:[%s3 + $0x1c] sm:$0xf]
  %v948 = vld [vmem:[%s3 + $0x20] sm:$0xf]
  %v949 = vld [vmem:[%s3 + $0x24] sm:$0xf]
  %v950 = vld [vmem:[%s3 + $0x28] sm:$0xf]
  %v951 = vld [vmem:[%s3 + $0x2c] sm:$0xf]
  %v952 = vld [vmem:[%s3 + $0x30] sm:$0xf]
  %v953 = vld [vmem:[%s3 + $0x34] sm:$0xf]
  %v954 = vld [vmem:[%s3 + $0x38] sm:$0xf]
  %v955 = vld [vmem:[%s3 + $0x3c] sm:$0xf]
  %v956 = vld [vmem:[%s3 + $0x40] sm:$0xf]
  %v957 = vld [vmem:[%s3 + $0x44] sm:$0xf]
  %v958 = vld [vmem:[%s3 + $0x48] sm:$0xf]
  %v959 = vld [vmem:[%s3 + $0x4c] sm:$0xf]
  %v960 = vld [vmem:[%s3 + $0x50] sm:$0xf]
  %v961 = vld [vmem:[%s3 + $0x54] sm:$0xf]
  %v962 = vld [vmem:[%s3 + $0x58] sm:$0xf]
  %v963 = vld [vmem:[%s3 + $0x5c] sm:$0xf]
  %v964 = vld [vmem:[%s3 + $0x60] sm:$0xf]
  %v965 = vld [vmem:[%s3 + $0x64] sm:$0xf]
  %v966 = vld [vmem:[%s3 + $0x68] sm:$0xf]
  %v967 = vld [vmem:[%s3 + $0x6c] sm:$0xf]
  %v968 = vld [vmem:[%s3 + $0x70] sm:$0xf]
  %v969 = vld [vmem:[%s3 + $0x74] sm:$0xf]
  %v970 = vld [vmem:[%s3 + $0x78] sm:$0xf]
  %v971 = vld [vmem:[%s3 + $0x7c] sm:$0xf]
  %v1004 = vunpack.c.l.b16 %v940
  %v1005 = vunpack.c.l.b16 %v941
  %v1006 = vunpack.c.l.b16 %v942
  %v1007 = vunpack.c.l.b16 %v943
  %v1008 = vunpack.c.l.b16 %v944
  %v1009 = vunpack.c.l.b16 %v945
  %v1010 = vunpack.c.l.b16 %v946
  %v1011 = vunpack.c.l.b16 %v947
  %v1012 = vunpack.c.l.b16 %v948
  %v1013 = vunpack.c.l.b16 %v949
  %v1014 = vunpack.c.l.b16 %v950
  %v1015 = vunpack.c.l.b16 %v951
  %v1016 = vunpack.c.l.b16 %v952
  %v1017 = vunpack.c.l.b16 %v953
  %v1018 = vunpack.c.l.b16 %v954
  %v1019 = vunpack.c.l.b16 %v955
  %v1020 = vunpack.c.l.b16 %v956
  %v1021 = vunpack.c.l.b16 %v957
  %v1022 = vunpack.c.l.b16 %v958
  %v1023 = vunpack.c.l.b16 %v959
  %v1024 = vunpack.c.l.b16 %v960
  %v1025 = vunpack.c.l.b16 %v961
  %v1026 = vunpack.c.l.b16 %v962
  %v1027 = vunpack.c.l.b16 %v963
  %v1028 = vunpack.c.l.b16 %v964
  %v1029 = vunpack.c.l.b16 %v965
  %v1030 = vunpack.c.l.b16 %v966
  %v1031 = vunpack.c.l.b16 %v967
  %v1032 = vunpack.c.l.b16 %v968
  %v1033 = vunpack.c.l.b16 %v969
  %v1034 = vunpack.c.l.b16 %v970
  %v1035 = vunpack.c.l.b16 %v971
  %v1036 = vpack.c.b16 %v1005, %v1004
  %v1037 = vpack.c.b16 %v1007, %v1006
  %v1038 = vpack.c.b16 %v1009, %v1008
  %v1039 = vpack.c.b16 %v1011, %v1010
  %v1040 = vpack.c.b16 %v1013, %v1012
  %v1041 = vpack.c.b16 %v1015, %v1014
  %v1042 = vpack.c.b16 %v1017, %v1016
  %v1043 = vpack.c.b16 %v1019, %v1018
  %v1044 = vpack.c.b16 %v1021, %v1020
  %v1045 = vpack.c.b16 %v1023, %v1022
  %v1046 = vpack.c.b16 %v1025, %v1024
  %v1047 = vpack.c.b16 %v1027, %v1026
  %v1048 = vpack.c.b16 %v1029, %v1028
  %v1049 = vpack.c.b16 %v1031, %v1030
  %v1050 = vpack.c.b16 %v1033, %v1032
  %v1051 = vpack.c.b16 %v1035, %v1034
  %1068 = vmatprep.subr.bf16.mxu0 0
  %1069 = vmatpush1.bf16.msra.mxu0 %v1043
  %1070 = vmatprep.subr.bf16.mxu0 0
  %1071 = vmatpush1.bf16.msra.mxu0 %v1042
  %1072 = vmatprep.subr.bf16.mxu0 0
  %1073 = vmatpush1.bf16.msra.mxu0 %v1041
  %1074 = vmatprep.subr.bf16.mxu0 0
  %1075 = vmatpush1.bf16.msra.mxu0 %v1040
  %1076 = vmatprep.subr.bf16.mxu0 0
  %1077 = vmatpush1.bf16.msra.mxu0 %v1039
  %1078 = vmatprep.subr.bf16.mxu0 0
  %1079 = vmatpush1.bf16.msra.mxu0 %v1038
  %1080 = vmatprep.subr.bf16.mxu0 0
  %1081 = vmatpush1.bf16.msra.mxu0 %v1037
  %1082 = vmatprep.subr.bf16.mxu0 0
  %1083 = vmatpush1.bf16.msra.mxu0 %v1036
  %1084 = vmatprep.subr.bf16.mxu0 0
  %1085 = vmatpush2.bf16.msra.mxu0 %v1051
  %1086 = vmatprep.subr.bf16.mxu0 0
  %1087 = vmatpush2.bf16.msra.mxu0 %v1050
  %1088 = vmatprep.subr.bf16.mxu0 0
  %1089 = vmatpush2.bf16.msra.mxu0 %v1049
  %1090 = vmatprep.subr.bf16.mxu0 0
  %1091 = vmatpush2.bf16.msra.mxu0 %v1048
  %1092 = vmatprep.subr.bf16.mxu0 0
  %1093 = vmatpush2.bf16.msra.mxu0 %v1047
  %1094 = vmatprep.subr.bf16.mxu0 0
  %1095 = vmatpush2.bf16.msra.mxu0 %v1046
  %1096 = vmatprep.subr.bf16.mxu0 0
  %1097 = vmatpush2.bf16.msra.mxu0 %v1045
  %1098 = vmatprep.subr.bf16.mxu0 0
  %1099 = vmatpush2.bf16.msra.mxu0 %v1044
  %1100 = vmatprep.mubr.bf16.mxu0 %v877
  %1101 = vmatmul.mubr.bf16.gmra.mxu0 %v876
  %v1102 = vpop.f32.mrf.mxu0
  %v1103 = vadd.f32 0.0, %v1102
  %v1104 = vpop.f32.mrf.mxu0
  %v1105 = vpop.f32.mrf.mxu0
  %v1106 = vadd.f32 0.0, %v1105
  %v1107 = vpop.f32.mrf.mxu0
  %1108 = vmatprep.mubr.bf16.mxu0 %v879
  %1109 = vmatmul.mubr.bf16.gmra.mxu0 %v878
  %v1110 = vpop.f32.mrf.mxu0
  %v1111 = vadd.f32 0.0, %v1110
  %v1112 = vpop.f32.mrf.mxu0
  %v1113 = vpop.f32.mrf.mxu0
  %v1114 = vadd.f32 0.0, %v1113
  %v1115 = vpop.f32.mrf.mxu0
  %1116 = vmatprep.mubr.bf16.mxu0 %v881
  %1117 = vmatmul.mubr.bf16.gmra.mxu0 %v880
  %v1118 = vpop.f32.mrf.mxu0
  %v1119 = vadd.f32 0.0, %v1118
  %v1120 = vpop.f32.mrf.mxu0
  %v1121 = vpop.f32.mrf.mxu0
  %v1122 = vadd.f32 0.0, %v1121
  %v1123 = vpop.f32.mrf.mxu0
  %1124 = vmatprep.mubr.bf16.mxu0 %v883
  %1125 = vmatmul.mubr.bf16.gmra.mxu0 %v882
  %v1126 = vpop.f32.mrf.mxu0
  %v1127 = vadd.f32 0.0, %v1126
  %v1128 = vpop.f32.mrf.mxu0
  %v1129 = vpop.f32.mrf.mxu0
  %v1130 = vadd.f32 0.0, %v1129
  %v1131 = vpop.f32.mrf.mxu0
  %1132 = vmatprep.mubr.bf16.mxu0 %v885
  %1133 = vmatmul.mubr.bf16.gmra.mxu0 %v884
  %v1134 = vpop.f32.mrf.mxu0
  %v1135 = vadd.f32 0.0, %v1134
  %v1136 = vpop.f32.mrf.mxu0
  %v1137 = vpop.f32.mrf.mxu0
  %v1138 = vadd.f32 0.0, %v1137
  %v1139 = vpop.f32.mrf.mxu0
  %1140 = vmatprep.mubr.bf16.mxu0 %v887
  %1141 = vmatmul.mubr.bf16.gmra.mxu0 %v886
  %v1142 = vpop.f32.mrf.mxu0
  %v1143 = vadd.f32 0.0, %v1142
  %v1144 = vpop.f32.mrf.mxu0
  %v1145 = vpop.f32.mrf.mxu0
  %v1146 = vadd.f32 0.0, %v1145
  %v1147 = vpop.f32.mrf.mxu0
  %1148 = vmatprep.mubr.bf16.mxu0 %v889
  %1149 = vmatmul.mubr.bf16.gmra.mxu0 %v888
  %v1150 = vpop.f32.mrf.mxu0
  %v1151 = vadd.f32 0.0, %v1150
  %v1152 = vpop.f32.mrf.mxu0
  %v1153 = vpop.f32.mrf.mxu0
  %v1154 = vadd.f32 0.0, %v1153
  %v1155 = vpop.f32.mrf.mxu0
  %1156 = vmatprep.mubr.bf16.mxu0 %v891
  %1157 = vmatmul.mubr.bf16.gmra.mxu0 %v890
  %v1158 = vpop.f32.mrf.mxu0
  %v1159 = vadd.f32 0.0, %v1158
  %v1160 = vpop.f32.mrf.mxu0
  %v1161 = vpop.f32.mrf.mxu0
  %v1162 = vadd.f32 0.0, %v1161
  %v1163 = vpop.f32.mrf.mxu0
  %1164 = vmatprep.mubr.bf16.mxu0 %v893
  %1165 = vmatmul.mubr.bf16.gmra.mxu0 %v892
  %v1166 = vpop.f32.mrf.mxu0
  %v1167 = vadd.f32 0.0, %v1166
  %v1168 = vpop.f32.mrf.mxu0
  %v1169 = vpop.f32.mrf.mxu0
  %v1170 = vadd.f32 0.0, %v1169
  %v1171 = vpop.f32.mrf.mxu0
  %1172 = vmatprep.mubr.bf16.mxu0 %v895
  %1173 = vmatmul.mubr.bf16.gmra.mxu0 %v894
  %v1174 = vpop.f32.mrf.mxu0
  %v1175 = vadd.f32 0.0, %v1174
  %v1176 = vpop.f32.mrf.mxu0
  %v1177 = vpop.f32.mrf.mxu0
  %v1178 = vadd.f32 0.0, %v1177
  %v1179 = vpop.f32.mrf.mxu0
  %1180 = vmatprep.mubr.bf16.mxu0 %v897
  %1181 = vmatmul.mubr.bf16.gmra.mxu0 %v896
  %v1182 = vpop.f32.mrf.mxu0
  %v1183 = vadd.f32 0.0, %v1182
  %v1184 = vpop.f32.mrf.mxu0
  %v1185 = vpop.f32.mrf.mxu0
  %v1186 = vadd.f32 0.0, %v1185
  %v1187 = vpop.f32.mrf.mxu0
  %1188 = vmatprep.mubr.bf16.mxu0 %v899
  %1189 = vmatmul.mubr.bf16.gmra.mxu0 %v898
  %v1190 = vpop.f32.mrf.mxu0
  %v1191 = vadd.f32 0.0, %v1190
  %v1192 = vpop.f32.mrf.mxu0
  %v1193 = vpop.f32.mrf.mxu0
  %v1194 = vadd.f32 0.0, %v1193
  %v1195 = vpop.f32.mrf.mxu0
  %1196 = vmatprep.mubr.bf16.mxu0 %v901
  %1197 = vmatmul.mubr.bf16.gmra.mxu0 %v900
  %v1198 = vpop.f32.mrf.mxu0
  %v1199 = vadd.f32 0.0, %v1198
  %v1200 = vpop.f32.mrf.mxu0
  %v1201 = vpop.f32.mrf.mxu0
  %v1202 = vadd.f32 0.0, %v1201
  %v1203 = vpop.f32.mrf.mxu0
  %1204 = vmatprep.mubr.bf16.mxu0 %v903
  %1205 = vmatmul.mubr.bf16.gmra.mxu0 %v902
  %v1206 = vpop.f32.mrf.mxu0
  %v1207 = vadd.f32 0.0, %v1206
  %v1208 = vpop.f32.mrf.mxu0
  %v1209 = vpop.f32.mrf.mxu0
  %v1210 = vadd.f32 0.0, %v1209
  %v1211 = vpop.f32.mrf.mxu0
  %1212 = vmatprep.mubr.bf16.mxu0 %v905
  %1213 = vmatmul.mubr.bf16.gmra.mxu0 %v904
  %v1214 = vpop.f32.mrf.mxu0
  %v1215 = vadd.f32 0.0, %v1214
  %v1216 = vpop.f32.mrf.mxu0
  %v1217 = vpop.f32.mrf.mxu0
  %v1218 = vadd.f32 0.0, %v1217
  %v1219 = vpop.f32.mrf.mxu0
  %1220 = vmatprep.mubr.bf16.mxu0 %v907
  %1221 = vmatmul.mubr.bf16.gmra.mxu0 %v906
  %v1222 = vpop.f32.mrf.mxu0
  %v1223 = vadd.f32 0.0, %v1222
  %v1224 = vpop.f32.mrf.mxu0
  %v1225 = vpop.f32.mrf.mxu0
  %v1226 = vadd.f32 0.0, %v1225
  %v1227 = vpop.f32.mrf.mxu0
  %1228 = vmatprep.mubr.bf16.mxu0 %v909
  %1229 = vmatmul.mubr.bf16.gmra.mxu0 %v908
  %v1230 = vpop.f32.mrf.mxu0
  %v1231 = vadd.f32 0.0, %v1230
  %v1232 = vpop.f32.mrf.mxu0
  %v1233 = vpop.f32.mrf.mxu0
  %v1234 = vadd.f32 0.0, %v1233
  %v1235 = vpop.f32.mrf.mxu0
  %1236 = vmatprep.mubr.bf16.mxu0 %v911
  %1237 = vmatmul.mubr.bf16.gmra.mxu0 %v910
  %v1238 = vpop.f32.mrf.mxu0
  %v1239 = vadd.f32 0.0, %v1238
  %v1240 = vpop.f32.mrf.mxu0
  %v1241 = vpop.f32.mrf.mxu0
  %v1242 = vadd.f32 0.0, %v1241
  %v1243 = vpop.f32.mrf.mxu0
  %1244 = vmatprep.mubr.bf16.mxu0 %v913
  %1245 = vmatmul.mubr.bf16.gmra.mxu0 %v912
  %v1246 = vpop.f32.mrf.mxu0
  %v1247 = vadd.f32 0.0, %v1246
  %v1248 = vpop.f32.mrf.mxu0
  %v1249 = vpop.f32.mrf.mxu0
  %v1250 = vadd.f32 0.0, %v1249
  %v1251 = vpop.f32.mrf.mxu0
  %1252 = vmatprep.mubr.bf16.mxu0 %v915
  %1253 = vmatmul.mubr.bf16.gmra.mxu0 %v914
  %v1254 = vpop.f32.mrf.mxu0
  %v1255 = vadd.f32 0.0, %v1254
  %v1256 = vpop.f32.mrf.mxu0
  %v1257 = vpop.f32.mrf.mxu0
  %v1258 = vadd.f32 0.0, %v1257
  %v1259 = vpop.f32.mrf.mxu0
  %1260 = vmatprep.mubr.bf16.mxu0 %v917
  %1261 = vmatmul.mubr.bf16.gmra.mxu0 %v916
  %v1262 = vpop.f32.mrf.mxu0
  %v1263 = vadd.f32 0.0, %v1262
  %v1264 = vpop.f32.mrf.mxu0
  %v1265 = vpop.f32.mrf.mxu0
  %v1266 = vadd.f32 0.0, %v1265
  %v1267 = vpop.f32.mrf.mxu0
  %1268 = vmatprep.mubr.bf16.mxu0 %v919
  %1269 = vmatmul.mubr.bf16.gmra.mxu0 %v918
  %v1270 = vpop.f32.mrf.mxu0
  %v1271 = vadd.f32 0.0, %v1270
  %v1272 = vpop.f32.mrf.mxu0
  %v1273 = vpop.f32.mrf.mxu0
  %v1274 = vadd.f32 0.0, %v1273
  %v1275 = vpop.f32.mrf.mxu0
  %1276 = vmatprep.mubr.bf16.mxu0 %v921
  %1277 = vmatmul.mubr.bf16.gmra.mxu0 %v920
  %v1278 = vpop.f32.mrf.mxu0
  %v1279 = vadd.f32 0.0, %v1278
  %v1280 = vpop.f32.mrf.mxu0
  %v1281 = vpop.f32.mrf.mxu0
  %v1282 = vadd.f32 0.0, %v1281
  %v1283 = vpop.f32.mrf.mxu0
  %1284 = vmatprep.mubr.bf16.mxu0 %v923
  %1285 = vmatmul.mubr.bf16.gmra.mxu0 %v922
  %v1286 = vpop.f32.mrf.mxu0
  %v1287 = vadd.f32 0.0, %v1286
  %v1288 = vpop.f32.mrf.mxu0
  %v1289 = vpop.f32.mrf.mxu0
  %v1290 = vadd.f32 0.0, %v1289
  %v1291 = vpop.f32.mrf.mxu0
  %1292 = vmatprep.mubr.bf16.mxu0 %v925
  %1293 = vmatmul.mubr.bf16.gmra.mxu0 %v924
  %v1294 = vpop.f32.mrf.mxu0
  %v1295 = vadd.f32 0.0, %v1294
  %v1296 = vpop.f32.mrf.mxu0
  %v1297 = vpop.f32.mrf.mxu0
  %v1298 = vadd.f32 0.0, %v1297
  %v1299 = vpop.f32.mrf.mxu0
  %1300 = vmatprep.mubr.bf16.mxu0 %v927
  %1301 = vmatmul.mubr.bf16.gmra.mxu0 %v926
  %v1302 = vpop.f32.mrf.mxu0
  %v1303 = vadd.f32 0.0, %v1302
  %v1304 = vpop.f32.mrf.mxu0
  %v1305 = vpop.f32.mrf.mxu0
  %v1306 = vadd.f32 0.0, %v1305
  %v1307 = vpop.f32.mrf.mxu0
  %1308 = vmatprep.mubr.bf16.mxu0 %v929
  %1309 = vmatmul.mubr.bf16.gmra.mxu0 %v928
  %v1310 = vpop.f32.mrf.mxu0
  %v1311 = vadd.f32 0.0, %v1310
  %v1312 = vpop.f32.mrf.mxu0
  %v1313 = vpop.f32.mrf.mxu0
  %v1314 = vadd.f32 0.0, %v1313
  %v1315 = vpop.f32.mrf.mxu0
  %1316 = vmatprep.mubr.bf16.mxu0 %v931
  %1317 = vmatmul.mubr.bf16.gmra.mxu0 %v930
  %v1318 = vpop.f32.mrf.mxu0
  %v1319 = vadd.f32 0.0, %v1318
  %v1320 = vpop.f32.mrf.mxu0
  %v1321 = vpop.f32.mrf.mxu0
  %v1322 = vadd.f32 0.0, %v1321
  %v1323 = vpop.f32.mrf.mxu0
  %1324 = vmatprep.mubr.bf16.mxu0 %v933
  %1325 = vmatmul.mubr.bf16.gmra.mxu0 %v932
  %v1326 = vpop.f32.mrf.mxu0
  %v1327 = vadd.f32 0.0, %v1326
  %v1328 = vpop.f32.mrf.mxu0
  %v1329 = vpop.f32.mrf.mxu0
  %v1330 = vadd.f32 0.0, %v1329
  %v1331 = vpop.f32.mrf.mxu0
  %1332 = vmatprep.mubr.bf16.mxu0 %v935
  %1333 = vmatmul.mubr.bf16.gmra.mxu0 %v934
  %v1334 = vpop.f32.mrf.mxu0
  %v1335 = vadd.f32 0.0, %v1334
  %v1336 = vpop.f32.mrf.mxu0
  %v1337 = vpop.f32.mrf.mxu0
  %v1338 = vadd.f32 0.0, %v1337
  %v1339 = vpop.f32.mrf.mxu0
  %1340 = vmatprep.mubr.bf16.mxu0 %v937
  %1341 = vmatmul.mubr.bf16.gmra.mxu0 %v936
  %v1342 = vpop.f32.mrf.mxu0
  %v1343 = vadd.f32 0.0, %v1342
  %v1344 = vpop.f32.mrf.mxu0
  %v1345 = vpop.f32.mrf.mxu0
  %v1346 = vadd.f32 0.0, %v1345
  %v1347 = vpop.f32.mrf.mxu0
  %1348 = vmatprep.mubr.bf16.mxu0 %v939
  %1349 = vmatmul.mubr.bf16.gmra.mxu0 %v938
  %v1350 = vpop.f32.mrf.mxu0
  %v1351 = vadd.f32 0.0, %v1350
  %v1352 = vpop.f32.mrf.mxu0
  %v1353 = vpop.f32.mrf.mxu0
  %v1354 = vadd.f32 0.0, %v1353
  %v1355 = vpop.f32.mrf.mxu0
  %1356 = vdwg.mxu0
  %v1357 = vpack.c.bf16 %v1106, %v1103
  %v1358 = vpack.c.bf16 %v1114, %v1111
  %v1359 = vpack.c.bf16 %v1122, %v1119
  %v1360 = vpack.c.bf16 %v1130, %v1127
  %v1361 = vpack.c.bf16 %v1138, %v1135
  %v1362 = vpack.c.bf16 %v1146, %v1143
  %v1363 = vpack.c.bf16 %v1154, %v1151
  %v1364 = vpack.c.bf16 %v1162, %v1159
  %v1365 = vpack.c.bf16 %v1170, %v1167
  %v1366 = vpack.c.bf16 %v1178, %v1175
  %v1367 = vpack.c.bf16 %v1186, %v1183
  %v1368 = vpack.c.bf16 %v1194, %v1191
  %v1369 = vpack.c.bf16 %v1202, %v1199
  %v1370 = vpack.c.bf16 %v1210, %v1207
  %v1371 = vpack.c.bf16 %v1218, %v1215
  %v1372 = vpack.c.bf16 %v1226, %v1223
  %v1373 = vpack.c.bf16 %v1234, %v1231
  %v1374 = vpack.c.bf16 %v1242, %v1239
  %v1375 = vpack.c.bf16 %v1250, %v1247
  %v1376 = vpack.c.bf16 %v1258, %v1255
  %v1377 = vpack.c.bf16 %v1266, %v1263
  %v1378 = vpack.c.bf16 %v1274, %v1271
  %v1379 = vpack.c.bf16 %v1282, %v1279
  %v1380 = vpack.c.bf16 %v1290, %v1287
  %v1381 = vpack.c.bf16 %v1298, %v1295
  %v1382 = vpack.c.bf16 %v1306, %v1303
  %v1383 = vpack.c.bf16 %v1314, %v1311
  %v1384 = vpack.c.bf16 %v1322, %v1319
  %v1385 = vpack.c.bf16 %v1330, %v1327
  %v1386 = vpack.c.bf16 %v1338, %v1335
  %v1387 = vpack.c.bf16 %v1346, %v1343
  %v1388 = vpack.c.bf16 %v1354, %v1351
  %v1421 = vunpack.c.l.b16 %v1357
  %v1422 = vunpack.c.h.b16 %v1357
  %v1423 = vunpack.c.l.b16 %v1358
  %v1424 = vunpack.c.h.b16 %v1358
  %v1425 = vunpack.c.l.b16 %v1359
  %v1426 = vunpack.c.h.b16 %v1359
  %v1427 = vunpack.c.l.b16 %v1360
  %v1428 = vunpack.c.h.b16 %v1360
  %v1429 = vunpack.c.l.b16 %v1361
  %v1430 = vunpack.c.h.b16 %v1361
  %v1431 = vunpack.c.l.b16 %v1362
  %v1432 = vunpack.c.h.b16 %v1362
  %v1433 = vunpack.c.l.b16 %v1363
  %v1434 = vunpack.c.h.b16 %v1363
  %v1435 = vunpack.c.l.b16 %v1364
  %v1436 = vunpack.c.h.b16 %v1364
  %v1437 = vunpack.c.l.b16 %v1365
  %v1438 = vunpack.c.h.b16 %v1365
  %v1439 = vunpack.c.l.b16 %v1366
  %v1440 = vunpack.c.h.b16 %v1366
  %v1441 = vunpack.c.l.b16 %v1367
  %v1442 = vunpack.c.h.b16 %v1367
  %v1443 = vunpack.c.l.b16 %v1368
  %v1444 = vunpack.c.h.b16 %v1368
  %v1445 = vunpack.c.l.b16 %v1369
  %v1446 = vunpack.c.h.b16 %v1369
  %v1447 = vunpack.c.l.b16 %v1370
  %v1448 = vunpack.c.h.b16 %v1370
  %v1449 = vunpack.c.l.b16 %v1371
  %v1450 = vunpack.c.h.b16 %v1371
  %v1451 = vunpack.c.l.b16 %v1372
  %v1452 = vunpack.c.h.b16 %v1372
  %v1453 = vunpack.c.l.b16 %v1373
  %v1454 = vunpack.c.h.b16 %v1373
  %v1455 = vunpack.c.l.b16 %v1374
  %v1456 = vunpack.c.h.b16 %v1374
  %v1457 = vunpack.c.l.b16 %v1375
  %v1458 = vunpack.c.h.b16 %v1375
  %v1459 = vunpack.c.l.b16 %v1376
  %v1460 = vunpack.c.h.b16 %v1376
  %v1461 = vunpack.c.l.b16 %v1377
  %v1462 = vunpack.c.h.b16 %v1377
  %v1463 = vunpack.c.l.b16 %v1378
  %v1464 = vunpack.c.h.b16 %v1378
  %v1465 = vunpack.c.l.b16 %v1379
  %v1466 = vunpack.c.h.b16 %v1379
  %v1467 = vunpack.c.l.b16 %v1380
  %v1468 = vunpack.c.h.b16 %v1380
  %v1469 = vunpack.c.l.b16 %v1381
  %v1470 = vunpack.c.h.b16 %v1381
  %v1471 = vunpack.c.l.b16 %v1382
  %v1472 = vunpack.c.h.b16 %v1382
  %v1473 = vunpack.c.l.b16 %v1383
  %v1474 = vunpack.c.h.b16 %v1383
  %v1475 = vunpack.c.l.b16 %v1384
  %v1476 = vunpack.c.h.b16 %v1384
  %v1477 = vunpack.c.l.b16 %v1385
  %v1478 = vunpack.c.h.b16 %v1385
  %v1479 = vunpack.c.l.b16 %v1386
  %v1480 = vunpack.c.h.b16 %v1386
  %v1481 = vunpack.c.l.b16 %v1387
  %v1482 = vunpack.c.h.b16 %v1387
  %v1483 = vunpack.c.l.b16 %v1388
  %v1484 = vunpack.c.h.b16 %v1388
  %v1485 = vpack.c.b16 %v1421, %v1421
  %v1486 = vpack.c.b16 %v1422, %v1422
  %v1487 = vpack.c.b16 %v1423, %v1423
  %v1488 = vpack.c.b16 %v1424, %v1424
  %v1489 = vpack.c.b16 %v1425, %v1425
  %v1490 = vpack.c.b16 %v1426, %v1426
  %v1491 = vpack.c.b16 %v1427, %v1427
  %v1492 = vpack.c.b16 %v1428, %v1428
  %v1493 = vpack.c.b16 %v1429, %v1429
  %v1494 = vpack.c.b16 %v1430, %v1430
  %v1495 = vpack.c.b16 %v1431, %v1431
  %v1496 = vpack.c.b16 %v1432, %v1432
  %v1497 = vpack.c.b16 %v1433, %v1433
  %v1498 = vpack.c.b16 %v1434, %v1434
  %v1499 = vpack.c.b16 %v1435, %v1435
  %v1500 = vpack.c.b16 %v1436, %v1436
  %v1501 = vpack.c.b16 %v1437, %v1437
  %v1502 = vpack.c.b16 %v1438, %v1438
  %v1503 = vpack.c.b16 %v1439, %v1439
  %v1504 = vpack.c.b16 %v1440, %v1440
  %v1505 = vpack.c.b16 %v1441, %v1441
  %v1506 = vpack.c.b16 %v1442, %v1442
  %v1507 = vpack.c.b16 %v1443, %v1443
  %v1508 = vpack.c.b16 %v1444, %v1444
  %v1509 = vpack.c.b16 %v1445, %v1445
  %v1510 = vpack.c.b16 %v1446, %v1446
  %v1511 = vpack.c.b16 %v1447, %v1447
  %v1512 = vpack.c.b16 %v1448, %v1448
  %v1513 = vpack.c.b16 %v1449, %v1449
  %v1514 = vpack.c.b16 %v1450, %v1450
  %v1515 = vpack.c.b16 %v1451, %v1451
  %v1516 = vpack.c.b16 %v1452, %v1452
  %v1517 = vpack.c.b16 %v1453, %v1453
  %v1518 = vpack.c.b16 %v1454, %v1454
  %v1519 = vpack.c.b16 %v1455, %v1455
  %v1520 = vpack.c.b16 %v1456, %v1456
  %v1521 = vpack.c.b16 %v1457, %v1457
  %v1522 = vpack.c.b16 %v1458, %v1458
  %v1523 = vpack.c.b16 %v1459, %v1459
  %v1524 = vpack.c.b16 %v1460, %v1460
  %v1525 = vpack.c.b16 %v1461, %v1461
  %v1526 = vpack.c.b16 %v1462, %v1462
  %v1527 = vpack.c.b16 %v1463, %v1463
  %v1528 = vpack.c.b16 %v1464, %v1464
  %v1529 = vpack.c.b16 %v1465, %v1465
  %v1530 = vpack.c.b16 %v1466, %v1466
  %v1531 = vpack.c.b16 %v1467, %v1467
  %v1532 = vpack.c.b16 %v1468, %v1468
  %v1533 = vpack.c.b16 %v1469, %v1469
  %v1534 = vpack.c.b16 %v1470, %v1470
  %v1535 = vpack.c.b16 %v1471, %v1471
  %v1536 = vpack.c.b16 %v1472, %v1472
  %v1537 = vpack.c.b16 %v1473, %v1473
  %v1538 = vpack.c.b16 %v1474, %v1474
  %v1539 = vpack.c.b16 %v1475, %v1475
  %v1540 = vpack.c.b16 %v1476, %v1476
  %v1541 = vpack.c.b16 %v1477, %v1477
  %v1542 = vpack.c.b16 %v1478, %v1478
  %v1543 = vpack.c.b16 %v1479, %v1479
  %v1544 = vpack.c.b16 %v1480, %v1480
  %v1545 = vpack.c.b16 %v1481, %v1481
  %v1546 = vpack.c.b16 %v1482, %v1482
  %v1547 = vpack.c.b16 %v1483, %v1483
  %v1548 = vpack.c.b16 %v1484, %v1484
  %1613 = vst [vmem:[%s4] sm:$0xf] %v1485
  %1614 = vst [vmem:[%s4 + $0x4] sm:$0xf] %v1486
  %1615 = vst [vmem:[%s4 + $0x8] sm:$0xf] %v1487
  %1616 = vst [vmem:[%s4 + $0xc] sm:$0xf] %v1488
  %1617 = vst [vmem:[%s4 + $0x10] sm:$0xf] %v1489
  %1618 = vst [vmem:[%s4 + $0x14] sm:$0xf] %v1490
  %1619 = vst [vmem:[%s4 + $0x18] sm:$0xf] %v1491
  %1620 = vst [vmem:[%s4 + $0x1c] sm:$0xf] %v1492
  %1621 = vst [vmem:[%s4 + $0x20] sm:$0xf] %v1493
  %1622 = vst [vmem:[%s4 + $0x24] sm:$0xf] %v1494
  %1623 = vst [vmem:[%s4 + $0x28] sm:$0xf] %v1495
  %1624 = vst [vmem:[%s4 + $0x2c] sm:$0xf] %v1496
  %1625 = vst [vmem:[%s4 + $0x30] sm:$0xf] %v1497
  %1626 = vst [vmem:[%s4 + $0x34] sm:$0xf] %v1498
  %1627 = vst [vmem:[%s4 + $0x38] sm:$0xf] %v1499
  %1628 = vst [vmem:[%s4 + $0x3c] sm:$0xf] %v1500
  %1629 = vst [vmem:[%s4 + $0x40] sm:$0xf] %v1501
  %1630 = vst [vmem:[%s4 + $0x44] sm:$0xf] %v1502
  %1631 = vst [vmem:[%s4 + $0x48] sm:$0xf] %v1503
  %1632 = vst [vmem:[%s4 + $0x4c] sm:$0xf] %v1504
  %1633 = vst [vmem:[%s4 + $0x50] sm:$0xf] %v1505
  %1634 = vst [vmem:[%s4 + $0x54] sm:$0xf] %v1506
  %1635 = vst [vmem:[%s4 + $0x58] sm:$0xf] %v1507
  %1636 = vst [vmem:[%s4 + $0x5c] sm:$0xf] %v1508
  %1637 = vst [vmem:[%s4 + $0x60] sm:$0xf] %v1509
  %1638 = vst [vmem:[%s4 + $0x64] sm:$0xf] %v1510
  %1639 = vst [vmem:[%s4 + $0x68] sm:$0xf] %v1511
  %1640 = vst [vmem:[%s4 + $0x6c] sm:$0xf] %v1512
  %1641 = vst [vmem:[%s4 + $0x70] sm:$0xf] %v1513
  %1642 = vst [vmem:[%s4 + $0x74] sm:$0xf] %v1514
  %1643 = vst [vmem:[%s4 + $0x78] sm:$0xf] %v1515
  %1644 = vst [vmem:[%s4 + $0x7c] sm:$0xf] %v1516
  %1645 = vst [vmem:[%s4 + $0x80] sm:$0xf] %v1517
  %1646 = vst [vmem:[%s4 + $0x84] sm:$0xf] %v1518
  %1647 = vst [vmem:[%s4 + $0x88] sm:$0xf] %v1519
  %1648 = vst [vmem:[%s4 + $0x8c] sm:$0xf] %v1520
  %1649 = vst [vmem:[%s4 + $0x90] sm:$0xf] %v1521
  %1650 = vst [vmem:[%s4 + $0x94] sm:$0xf] %v1522
  %1651 = vst [vmem:[%s4 + $0x98] sm:$0xf] %v1523
  %1652 = vst [vmem:[%s4 + $0x9c] sm:$0xf] %v1524
  %1653 = vst [vmem:[%s4 + $0xa0] sm:$0xf] %v1525
  %1654 = vst [vmem:[%s4 + $0xa4] sm:$0xf] %v1526
  %1655 = vst [vmem:[%s4 + $0xa8] sm:$0xf] %v1527
  %1656 = vst [vmem:[%s4 + $0xac] sm:$0xf] %v1528
  %1657 = vst [vmem:[%s4 + $0xb0] sm:$0xf] %v1529
  %1658 = vst [vmem:[%s4 + $0xb4] sm:$0xf] %v1530
  %1659 = vst [vmem:[%s4 + $0xb8] sm:$0xf] %v1531
  %1660 = vst [vmem:[%s4 + $0xbc] sm:$0xf] %v1532
  %1661 = vst [vmem:[%s4 + $0xc0] sm:$0xf] %v1533
  %1662 = vst [vmem:[%s4 + $0xc4] sm:$0xf] %v1534
  %1663 = vst [vmem:[%s4 + $0xc8] sm:$0xf] %v1535
  %1664 = vst [vmem:[%s4 + $0xcc] sm:$0xf] %v1536
  %1665 = vst [vmem:[%s4 + $0xd0] sm:$0xf] %v1537
  %1666 = vst [vmem:[%s4 + $0xd4] sm:$0xf] %v1538
  %1667 = vst [vmem:[%s4 + $0xd8] sm:$0xf] %v1539
  %1668 = vst [vmem:[%s4 + $0xdc] sm:$0xf] %v1540
  %1669 = vst [vmem:[%s4 + $0xe0] sm:$0xf] %v1541
  %1670 = vst [vmem:[%s4 + $0xe4] sm:$0xf] %v1542
  %1671 = vst [vmem:[%s4 + $0xe8] sm:$0xf] %v1543
  %1672 = vst [vmem:[%s4 + $0xec] sm:$0xf] %v1544
  %1673 = vst [vmem:[%s4 + $0xf0] sm:$0xf] %v1545
  %1674 = vst [vmem:[%s4 + $0xf4] sm:$0xf] %v1546
  %1675 = vst [vmem:[%s4 + $0xf8] sm:$0xf] %v1547
  %1676 = vst [vmem:[%s4 + $0xfc] sm:$0xf] %v1548
  %v1677 = vunpack.c.l.bf16 %v1357
  %v1678 = vunpack.c.h.bf16 %v1357
  %v1679 = vunpack.c.l.bf16 %v1358
  %v1680 = vunpack.c.h.bf16 %v1358
  %v1681 = vunpack.c.l.bf16 %v1359
  %v1682 = vunpack.c.h.bf16 %v1359
  %v1683 = vunpack.c.l.bf16 %v1360
  %v1684 = vunpack.c.h.bf16 %v1360
  %v1685 = vunpack.c.l.bf16 %v1361
  %v1686 = vunpack.c.h.bf16 %v1361
  %v1687 = vunpack.c.l.bf16 %v1362
  %v1688 = vunpack.c.h.bf16 %v1362
  %v1689 = vunpack.c.l.bf16 %v1363
  %v1690 = vunpack.c.h.bf16 %v1363
  %v1691 = vunpack.c.l.bf16 %v1364
  %v1692 = vunpack.c.h.bf16 %v1364
  %v1693 = vunpack.c.l.bf16 %v1365
  %v1694 = vunpack.c.h.bf16 %v1365
  %v1695 = vunpack.c.l.bf16 %v1366
  %v1696 = vunpack.c.h.bf16 %v1366
  %v1697 = vunpack.c.l.bf16 %v1367
  %v1698 = vunpack.c.h.bf16 %v1367
  %v1699 = vunpack.c.l.bf16 %v1368
  %v1700 = vunpack.c.h.bf16 %v1368
  %v1701 = vunpack.c.l.bf16 %v1369
  %v1702 = vunpack.c.h.bf16 %v1369
  %v1703 = vunpack.c.l.bf16 %v1370
  %v1704 = vunpack.c.h.bf16 %v1370
  %v1705 = vunpack.c.l.bf16 %v1371
  %v1706 = vunpack.c.h.bf16 %v1371
  %v1707 = vunpack.c.l.bf16 %v1372
  %v1708 = vunpack.c.h.bf16 %v1372
  %v1709 = vunpack.c.l.bf16 %v1373
  %v1710 = vunpack.c.h.bf16 %v1373
  %v1711 = vunpack.c.l.bf16 %v1374
  %v1712 = vunpack.c.h.bf16 %v1374
  %v1713 = vunpack.c.l.bf16 %v1375
  %v1714 = vunpack.c.h.bf16 %v1375
  %v1715 = vunpack.c.l.bf16 %v1376
  %v1716 = vunpack.c.h.bf16 %v1376
  %v1717 = vunpack.c.l.bf16 %v1377
  %v1718 = vunpack.c.h.bf16 %v1377
  %v1719 = vunpack.c.l.bf16 %v1378
  %v1720 = vunpack.c.h.bf16 %v1378
  %v1721 = vunpack.c.l.bf16 %v1379
  %v1722 = vunpack.c.h.bf16 %v1379
  %v1723 = vunpack.c.l.bf16 %v1380
  %v1724 = vunpack.c.h.bf16 %v1380
  %v1725 = vunpack.c.l.bf16 %v1381
  %v1726 = vunpack.c.h.bf16 %v1381
  %v1727 = vunpack.c.l.bf16 %v1382
  %v1728 = vunpack.c.h.bf16 %v1382
  %v1729 = vunpack.c.l.bf16 %v1383
  %v1730 = vunpack.c.h.bf16 %v1383
  %v1731 = vunpack.c.l.bf16 %v1384
  %v1732 = vunpack.c.h.bf16 %v1384
  %v1733 = vunpack.c.l.bf16 %v1385
  %v1734 = vunpack.c.h.bf16 %v1385
  %v1735 = vunpack.c.l.bf16 %v1386
  %v1736 = vunpack.c.h.bf16 %v1386
  %v1737 = vunpack.c.l.bf16 %v1387
  %v1738 = vunpack.c.h.bf16 %v1387
  %v1739 = vunpack.c.l.bf16 %v1388
  %v1740 = vunpack.c.h.bf16 %v1388
  %v1741 = vadd.f32 %v1677, %v1678
  %v1742 = vadd.f32 %v1741, %v1679
  %v1743 = vadd.f32 %v1742, %v1680
  %v1744 = vadd.f32 %v1743, %v1681
  %v1745 = vadd.f32 %v1744, %v1682
  %v1746 = vadd.f32 %v1745, %v1683
  %v1747 = vadd.f32 %v1746, %v1684
  %v1748 = vadd.f32 %v1747, %v1685
  %v1749 = vadd.f32 %v1748, %v1686
  %v1750 = vadd.f32 %v1749, %v1687
  %v1751 = vadd.f32 %v1750, %v1688
  %v1752 = vadd.f32 %v1751, %v1689
  %v1753 = vadd.f32 %v1752, %v1690
  %v1754 = vadd.f32 %v1753, %v1691
  %v1755 = vadd.f32 %v1754, %v1692
  %v1756 = vadd.f32 %v1755, %v1693
  %v1757 = vadd.f32 %v1756, %v1694
  %v1758 = vadd.f32 %v1757, %v1695
  %v1759 = vadd.f32 %v1758, %v1696
  %v1760 = vadd.f32 %v1759, %v1697
  %v1761 = vadd.f32 %v1760, %v1698
  %v1762 = vadd.f32 %v1761, %v1699
  %v1763 = vadd.f32 %v1762, %v1700
  %v1764 = vadd.f32 %v1763, %v1701
  %v1765 = vadd.f32 %v1764, %v1702
  %v1766 = vadd.f32 %v1765, %v1703
  %v1767 = vadd.f32 %v1766, %v1704
  %v1768 = vadd.f32 %v1767, %v1705
  %v1769 = vadd.f32 %v1768, %v1706
  %v1770 = vadd.f32 %v1769, %v1707
  %v1771 = vadd.f32 %v1770, %v1708
  %v1772 = vadd.f32 %v1771, %v1709
  %v1773 = vadd.f32 %v1772, %v1710
  %v1774 = vadd.f32 %v1773, %v1711
  %v1775 = vadd.f32 %v1774, %v1712
  %v1776 = vadd.f32 %v1775, %v1713
  %v1777 = vadd.f32 %v1776, %v1714
  %v1778 = vadd.f32 %v1777, %v1715
  %v1779 = vadd.f32 %v1778, %v1716
  %v1780 = vadd.f32 %v1779, %v1717
  %v1781 = vadd.f32 %v1780, %v1718
  %v1782 = vadd.f32 %v1781, %v1719
  %v1783 = vadd.f32 %v1782, %v1720
  %v1784 = vadd.f32 %v1783, %v1721
  %v1785 = vadd.f32 %v1784, %v1722
  %v1786 = vadd.f32 %v1785, %v1723
  %v1787 = vadd.f32 %v1786, %v1724
  %v1788 = vadd.f32 %v1787, %v1725
  %v1789 = vadd.f32 %v1788, %v1726
  %v1790 = vadd.f32 %v1789, %v1727
  %v1791 = vadd.f32 %v1790, %v1728
  %v1792 = vadd.f32 %v1791, %v1729
  %v1793 = vadd.f32 %v1792, %v1730
  %v1794 = vadd.f32 %v1793, %v1731
  %v1795 = vadd.f32 %v1794, %v1732
  %v1796 = vadd.f32 %v1795, %v1733
  %v1797 = vadd.f32 %v1796, %v1734
  %v1798 = vadd.f32 %v1797, %v1735
  %v1799 = vadd.f32 %v1798, %v1736
  %v1800 = vadd.f32 %v1799, %v1737
  %v1801 = vadd.f32 %v1800, %v1738
  %v1802 = vadd.f32 %v1801, %v1739
  %v1803 = vadd.f32 %v1802, %v1740
  %v1804 = vrot.slane %v1803, 4
  %v1805 = vadd.f32 %v1803, %v1804
  %v1806 = vrot.slane %v1805, 2
  %v1807 = vadd.f32 %v1805, %v1806
  %v1808 = vrot.slane %v1807, 1
  %v1809 = vadd.f32 %v1807, %v1808
  %1810 = vst [vmem:[%s5] sm:$0x1] %v1809
  %v1811 = vmul.f32 %v1677, %v1677
  %v1812 = vmul.f32 %v1678, %v1678
  %v1813 = vmul.f32 %v1679, %v1679
  %v1814 = vmul.f32 %v1680, %v1680
  %v1815 = vmul.f32 %v1681, %v1681
  %v1816 = vmul.f32 %v1682, %v1682
  %v1817 = vmul.f32 %v1683, %v1683
  %v1818 = vmul.f32 %v1684, %v1684
  %v1819 = vmul.f32 %v1685, %v1685
  %v1820 = vmul.f32 %v1686, %v1686
  %v1821 = vmul.f32 %v1687, %v1687
  %v1822 = vmul.f32 %v1688, %v1688
  %v1823 = vmul.f32 %v1689, %v1689
  %v1824 = vmul.f32 %v1690, %v1690
  %v1825 = vmul.f32 %v1691, %v1691
  %v1826 = vmul.f32 %v1692, %v1692
  %v1827 = vmul.f32 %v1693, %v1693
  %v1828 = vmul.f32 %v1694, %v1694
  %v1829 = vmul.f32 %v1695, %v1695
  %v1830 = vmul.f32 %v1696, %v1696
  %v1831 = vmul.f32 %v1697, %v1697
  %v1832 = vmul.f32 %v1698, %v1698
  %v1833 = vmul.f32 %v1699, %v1699
  %v1834 = vmul.f32 %v1700, %v1700
  %v1835 = vmul.f32 %v1701, %v1701
  %v1836 = vmul.f32 %v1702, %v1702
  %v1837 = vmul.f32 %v1703, %v1703
  %v1838 = vmul.f32 %v1704, %v1704
  %v1839 = vmul.f32 %v1705, %v1705
  %v1840 = vmul.f32 %v1706, %v1706
  %v1841 = vmul.f32 %v1707, %v1707
  %v1842 = vmul.f32 %v1708, %v1708
  %v1843 = vmul.f32 %v1709, %v1709
  %v1844 = vmul.f32 %v1710, %v1710
  %v1845 = vmul.f32 %v1711, %v1711
  %v1846 = vmul.f32 %v1712, %v1712
  %v1847 = vmul.f32 %v1713, %v1713
  %v1848 = vmul.f32 %v1714, %v1714
  %v1849 = vmul.f32 %v1715, %v1715
  %v1850 = vmul.f32 %v1716, %v1716
  %v1851 = vmul.f32 %v1717, %v1717
  %v1852 = vmul.f32 %v1718, %v1718
  %v1853 = vmul.f32 %v1719, %v1719
  %v1854 = vmul.f32 %v1720, %v1720
  %v1855 = vmul.f32 %v1721, %v1721
  %v1856 = vmul.f32 %v1722, %v1722
  %v1857 = vmul.f32 %v1723, %v1723
  %v1858 = vmul.f32 %v1724, %v1724
  %v1859 = vmul.f32 %v1725, %v1725
  %v1860 = vmul.f32 %v1726, %v1726
  %v1861 = vmul.f32 %v1727, %v1727
  %v1862 = vmul.f32 %v1728, %v1728
  %v1863 = vmul.f32 %v1729, %v1729
  %v1864 = vmul.f32 %v1730, %v1730
  %v1865 = vmul.f32 %v1731, %v1731
  %v1866 = vmul.f32 %v1732, %v1732
  %v1867 = vmul.f32 %v1733, %v1733
  %v1868 = vmul.f32 %v1734, %v1734
  %v1869 = vmul.f32 %v1735, %v1735
  %v1870 = vmul.f32 %v1736, %v1736
  %v1871 = vmul.f32 %v1737, %v1737
  %v1872 = vmul.f32 %v1738, %v1738
  %v1873 = vmul.f32 %v1739, %v1739
  %v1874 = vmul.f32 %v1740, %v1740
  %v1875 = vadd.f32 %v1811, %v1812
  %v1876 = vadd.f32 %v1875, %v1813
  %v1877 = vadd.f32 %v1876, %v1814
  %v1878 = vadd.f32 %v1877, %v1815
  %v1879 = vadd.f32 %v1878, %v1816
  %v1880 = vadd.f32 %v1879, %v1817
  %v1881 = vadd.f32 %v1880, %v1818
  %v1882 = vadd.f32 %v1881, %v1819
  %v1883 = vadd.f32 %v1882, %v1820
  %v1884 = vadd.f32 %v1883, %v1821
  %v1885 = vadd.f32 %v1884, %v1822
  %v1886 = vadd.f32 %v1885, %v1823
  %v1887 = vadd.f32 %v1886, %v1824
  %v1888 = vadd.f32 %v1887, %v1825
  %v1889 = vadd.f32 %v1888, %v1826
  %v1890 = vadd.f32 %v1889, %v1827
  %v1891 = vadd.f32 %v1890, %v1828
  %v1892 = vadd.f32 %v1891, %v1829
  %v1893 = vadd.f32 %v1892, %v1830
  %v1894 = vadd.f32 %v1893, %v1831
  %v1895 = vadd.f32 %v1894, %v1832
  %v1896 = vadd.f32 %v1895, %v1833
  %v1897 = vadd.f32 %v1896, %v1834
  %v1898 = vadd.f32 %v1897, %v1835
  %v1899 = vadd.f32 %v1898, %v1836
  %v1900 = vadd.f32 %v1899, %v1837
  %v1901 = vadd.f32 %v1900, %v1838
  %v1902 = vadd.f32 %v1901, %v1839
  %v1903 = vadd.f32 %v1902, %v1840
  %v1904 = vadd.f32 %v1903, %v1841
  %v1905 = vadd.f32 %v1904, %v1842
  %v1906 = vadd.f32 %v1905, %v1843
  %v1907 = vadd.f32 %v1906, %v1844
  %v1908 = vadd.f32 %v1907, %v1845
  %v1909 = vadd.f32 %v1908, %v1846
  %v1910 = vadd.f32 %v1909, %v1847
  %v1911 = vadd.f32 %v1910, %v1848
  %v1912 = vadd.f32 %v1911, %v1849
  %v1913 = vadd.f32 %v1912, %v1850
  %v1914 = vadd.f32 %v1913, %v1851
  %v1915 = vadd.f32 %v1914, %v1852
  %v1916 = vadd.f32 %v1915, %v1853
  %v1917 = vadd.f32 %v1916, %v1854
  %v1918 = vadd.f32 %v1917, %v1855
  %v1919 = vadd.f32 %v1918, %v1856
  %v1920 = vadd.f32 %v1919, %v1857
  %v1921 = vadd.f32 %v1920, %v1858
  %v1922 = vadd.f32 %v1921, %v1859
  %v1923 = vadd.f32 %v1922, %v1860
  %v1924 = vadd.f32 %v1923, %v1861
  %v1925 = vadd.f32 %v1924, %v1862
  %v1926 = vadd.f32 %v1925, %v1863
  %v1927 = vadd.f32 %v1926, %v1864
  %v1928 = vadd.f32 %v1927, %v1865
  %v1929 = vadd.f32 %v1928, %v1866
  %v1930 = vadd.f32 %v1929, %v1867
  %v1931 = vadd.f32 %v1930, %v1868
  %v1932 = vadd.f32 %v1931, %v1869
  %v1933 = vadd.f32 %v1932, %v1870
  %v1934 = vadd.f32 %v1933, %v1871
  %v1935 = vadd.f32 %v1934, %v1872
  %v1936 = vadd.f32 %v1935, %v1873
  %v1937 = vadd.f32 %v1936, %v1874
  %v1938 = vrot.slane %v1937, 4
  %v1939 = vadd.f32 %v1937, %v1938
  %v1940 = vrot.slane %v1939, 2
  %v1941 = vadd.f32 %v1939, %v1940
  %v1942 = vrot.slane %v1941, 1
  %v1943 = vadd.f32 %v1941, %v1942
  %1944 = vst [vmem:[%s5 + $0x1] sm:$0x1] %v1943
  // Predicated region
  $region18: #{dis_wgan_forward.4} parent=0 // pred_check
    _
  $region19: #{dis_wgan_forward.4} parent=0 // pred_check_branch
    %1946 = sbr.rel (0) target = $region21
  $region20: #{dis_wgan_forward.4} parent=0 // pred_region
    _
  $region21: #{dis_wgan_forward.4} parent=0 // pred_fallthru
    _
  // Predicated region
  $region22: #{dis_wgan_forward.4} parent=0 // pred_check
    _
  $region23: #{dis_wgan_forward.4} parent=0 // pred_check_branch
    %1948 = sbr.rel (0) target = $region25
  $region24: #{dis_wgan_forward.4} parent=0 // pred_region
    _
  $region25: #{dis_wgan_forward.4} parent=0 // pred_fallthru
    _
  // Predicated region
  $region26: #{dis_wgan_forward.4} parent=0 // pred_check
    _
  $region27: #{dis_wgan_forward.4} parent=0 // pred_check_branch
    %1950 = sbr.rel (0) target = $region29
  $region28: #{dis_wgan_forward.4} parent=0 // pred_region
    _
  $region29: #{dis_wgan_forward.4} parent=0 // pred_fallthru
    _
  // Predicated region
  $region30: #{dis_wgan_forward.4} parent=0 // pred_check
    _
  $region31: #{dis_wgan_forward.4} parent=0 // pred_check_branch
    %1952 = sbr.rel (0) target = $region33
  $region32: #{dis_wgan_forward.4} parent=0 // pred_region
    _
  $region33: #{dis_wgan_forward.4} parent=0 // pred_fallthru
    _

// kernel: dis_wgan_forward.3
$region0: #{dis_wgan_forward.3}
  #allocation0 [shape = 'u32[]', space=smem, size = 0x4, offset = 0x4, fixed_abs, tag = 'smem constant byte address 0x4 - core index']
  #allocation1 [shape = 'u32[144,128]{1,0:T(1,128)}', space=vmem, size = 0x12000, scoped, tag = 'internal scratch']
  %s0 = inlined_call_operand.hbm [shape: f32[512,512], index: 0, kind: input, shape index: {}]
  %s1 = inlined_call_operand.hbm [shape: bf16[512,256], index: 1, kind: input, shape index: {}]
  %s2 = inlined_call_operand.vmem [shape: bf16[512,256], index: 2, kind: output, shape index: {0}]
  %s3 = inlined_call_operand.vmem [shape: f32[1,2,256], index: 3, kind: output, shape index: {1}]
  %4 = xla_tuple %s2, %s3
  %s5 = sld [smem:[#allocation0]]
  $region34: #{dis_wgan_forward.3} parent=0
    _
  %s7 = ssub.s32 1, %s5
  %s8 = scalar_select 0, %s7, %s5
  $region1: #{dis_wgan_forward.3} parent=0
    #allocation2 [shape = 'u8[1048576]{0}', space=vmem, size = 0x100000, scoped, tag = 'input window, operand 0, single buffered']
    #allocation3 [shape = 's32[1]{0}', space=sflag, size = 0x4, scoped, tag = 'scoped memory for dis_wgan_forward.3']
    #allocation4 [shape = 'u8[262144]{0}', space=vmem, size = 0x40000, scoped, tag = 'input window, operand 1, single buffered']
    #allocation5 [shape = 's32[1]{0}', space=sflag, size = 0x4, scoped, tag = 'scoped memory for dis_wgan_forward.3']
    %9 = vsyncpa [#allocation3], 0
    %10 = vsyncpa [#allocation5], 0
    // Predicated region
    $region2: #{dis_wgan_forward.3} parent=1 // pred_check
      _
    $region3: #{dis_wgan_forward.3} parent=1 // pred_check_branch
      %12 = sbr.rel (0) target = $region5
    $region4: #{dis_wgan_forward.3} parent=1 // pred_region
      %s14 = ssub.s32 32768, 32768
      %15 = vsyncadd [#allocation3], %s14
      %s16 = sshll.u32 [#allocation2], 4
      %s17 = int_to_ptr.vmem [resolvable:$true] %s16
      %22 = dma.hbm_to_vmem [thread:$0]  %s0, 32768, %s17, [#allocation3], 512, 512, 32
    $region5: #{dis_wgan_forward.3} parent=1 // pred_fallthru
      _
    // Predicated region
    $region6: #{dis_wgan_forward.3} parent=1 // pred_check
      _
    $region7: #{dis_wgan_forward.3} parent=1 // pred_check_branch
      %24 = sbr.rel (0) target = $region9
    $region8: #{dis_wgan_forward.3} parent=1 // pred_region
      %s26 = ssub.s32 8192, 8192
      %27 = vsyncadd [#allocation5], %s26
      %s28 = sshll.u32 [#allocation4], 4
      %s29 = int_to_ptr.vmem [resolvable:$true] %s28
      %34 = dma.hbm_to_vmem [thread:$0]  %s1, 8192, %s29, [#allocation5], 128, 128, 8
    $region9: #{dis_wgan_forward.3} parent=1 // pred_fallthru
      _
    // Predicated region
    $region10: #{dis_wgan_forward.3} parent=1 // pred_check
      _
    $region11: #{dis_wgan_forward.3} parent=1 // pred_check_branch
      %36 = sbr.rel (0) target = $region13
    $region12: #{dis_wgan_forward.3} parent=1 // pred_region
      %37 = dma.done [#allocation3], 32768
    $region13: #{dis_wgan_forward.3} parent=1 // pred_fallthru
      _
    // Predicated region
    $region14: #{dis_wgan_forward.3} parent=1 // pred_check
      _
    $region15: #{dis_wgan_forward.3} parent=1 // pred_check_branch
      %39 = sbr.rel (0) target = $region17
    $region16: #{dis_wgan_forward.3} parent=1 // pred_region
      %40 = dma.done [#allocation5], 8192
    $region17: #{dis_wgan_forward.3} parent=1 // pred_fallthru
      _
    %v41 = vld [vmem:[#allocation2] sm:$0xff]
    %v42 = vld [vmem:[#allocation2 + $0x8] sm:$0xff]
    %v43 = vld [vmem:[#allocation2 + $0x10] sm:$0xff]
    %v44 = vld [vmem:[#allocation2 + $0x18] sm:$0xff]
    %v45 = vld [vmem:[#allocation2 + $0x20] sm:$0xff]
    %v46 = vld [vmem:[#allocation2 + $0x28] sm:$0xff]
    %v47 = vld [vmem:[#allocation2 + $0x30] sm:$0xff]
    %v48 = vld [vmem:[#allocation2 + $0x38] sm:$0xff]
    %v49 = vld [vmem:[#allocation2 + $0x40] sm:$0xff]
    %v50 = vld [vmem:[#allocation2 + $0x48] sm:$0xff]
    %v51 = vld [vmem:[#allocation2 + $0x50] sm:$0xff]
    %v52 = vld [vmem:[#allocation2 + $0x58] sm:$0xff]
    %v53 = vld [vmem:[#allocation2 + $0x60] sm:$0xff]
    %v54 = vld [vmem:[#allocation2 + $0x68] sm:$0xff]
    %v55 = vld [vmem:[#allocation2 + $0x70] sm:$0xff]
    %v56 = vld [vmem:[#allocation2 + $0x78] sm:$0xff]
    %v57 = vld [vmem:[#allocation2 + $0x80] sm:$0xff]
    %v58 = vld [vmem:[#allocation2 + $0x88] sm:$0xff]
    %v59 = vld [vmem:[#allocation2 + $0x90] sm:$0xff]
    %v60 = vld [vmem:[#allocation2 + $0x98] sm:$0xff]
    %v61 = vld [vmem:[#allocation2 + $0xa0] sm:$0xff]
    %v62 = vld [vmem:[#allocation2 + $0xa8] sm:$0xff]
    %v63 = vld [vmem:[#allocation2 + $0xb0] sm:$0xff]
    %v64 = vld [vmem:[#allocation2 + $0xb8] sm:$0xff]
    %v65 = vld [vmem:[#allocation2 + $0xc0] sm:$0xff]
    %v66 = vld [vmem:[#allocation2 + $0xc8] sm:$0xff]
    %v67 = vld [vmem:[#allocation2 + $0xd0] sm:$0xff]
    %v68 = vld [vmem:[#allocation2 + $0xd8] sm:$0xff]
    %v69 = vld [vmem:[#allocation2 + $0xe0] sm:$0xff]
    %v70 = vld [vmem:[#allocation2 + $0xe8] sm:$0xff]
    %v71 = vld [vmem:[#allocation2 + $0xf0] sm:$0xff]
    %v72 = vld [vmem:[#allocation2 + $0xf8] sm:$0xff]
    %v73 = vld [vmem:[#allocation2 + $0x100] sm:$0xff]
    %v74 = vld [vmem:[#allocation2 + $0x108] sm:$0xff]
    %v75 = vld [vmem:[#allocation2 + $0x110] sm:$0xff]
    %v76 = vld [vmem:[#allocation2 + $0x118] sm:$0xff]
    %v77 = vld [vmem:[#allocation2 + $0x120] sm:$0xff]
    %v78 = vld [vmem:[#allocation2 + $0x128] sm:$0xff]
    %v79 = vld [vmem:[#allocation2 + $0x130] sm:$0xff]
    %v80 = vld [vmem:[#allocation2 + $0x138] sm:$0xff]
    %v81 = vld [vmem:[#allocation2 + $0x140] sm:$0xff]
    %v82 = vld [vmem:[#allocation2 + $0x148] sm:$0xff]
    %v83 = vld [vmem:[#allocation2 + $0x150] sm:$0xff]
    %v84 = vld [vmem:[#allocation2 + $0x158] sm:$0xff]
    %v85 = vld [vmem:[#allocation2 + $0x160] sm:$0xff]
    %v86 = vld [vmem:[#allocation2 + $0x168] sm:$0xff]
    %v87 = vld [vmem:[#allocation2 + $0x170] sm:$0xff]
    %v88 = vld [vmem:[#allocation2 + $0x178] sm:$0xff]
    %v89 = vld [vmem:[#allocation2 + $0x180] sm:$0xff]
    %v90 = vld [vmem:[#allocation2 + $0x188] sm:$0xff]
    %v91 = vld [vmem:[#allocation2 + $0x190] sm:$0xff]
    %v92 = vld [vmem:[#allocation2 + $0x198] sm:$0xff]
    %v93 = vld [vmem:[#allocation2 + $0x1a0] sm:$0xff]
    %v94 = vld [vmem:[#allocation2 + $0x1a8] sm:$0xff]
    %v95 = vld [vmem:[#allocation2 + $0x1b0] sm:$0xff]
    %v96 = vld [vmem:[#allocation2 + $0x1b8] sm:$0xff]
    %v97 = vld [vmem:[#allocation2 + $0x1c0] sm:$0xff]
    %v98 = vld [vmem:[#allocation2 + $0x1c8] sm:$0xff]
    %v99 = vld [vmem:[#allocation2 + $0x1d0] sm:$0xff]
    %v100 = vld [vmem:[#allocation2 + $0x1d8] sm:$0xff]
    %v101 = vld [vmem:[#allocation2 + $0x1e0] sm:$0xff]
    %v102 = vld [vmem:[#allocation2 + $0x1e8] sm:$0xff]
    %v103 = vld [vmem:[#allocation2 + $0x1f0] sm:$0xff]
    %v104 = vld [vmem:[#allocation2 + $0x1f8] sm:$0xff]
    %v105 = vld [vmem:[#allocation2 + $0x200] sm:$0xff]
    %v106 = vld [vmem:[#allocation2 + $0x208] sm:$0xff]
    %v107 = vld [vmem:[#allocation2 + $0x210] sm:$0xff]
    %v108 = vld [vmem:[#allocation2 + $0x218] sm:$0xff]
    %v109 = vld [vmem:[#allocation2 + $0x220] sm:$0xff]
    %v110 = vld [vmem:[#allocation2 + $0x228] sm:$0xff]
    %v111 = vld [vmem:[#allocation2 + $0x230] sm:$0xff]
    %v112 = vld [vmem:[#allocation2 + $0x238] sm:$0xff]
    %v113 = vld [vmem:[#allocation2 + $0x240] sm:$0xff]
    %v114 = vld [vmem:[#allocation2 + $0x248] sm:$0xff]
    %v115 = vld [vmem:[#allocation2 + $0x250] sm:$0xff]
    %v116 = vld [vmem:[#allocation2 + $0x258] sm:$0xff]
    %v117 = vld [vmem:[#allocation2 + $0x260] sm:$0xff]
    %v118 = vld [vmem:[#allocation2 + $0x268] sm:$0xff]
    %v119 = vld [vmem:[#allocation2 + $0x270] sm:$0xff]
    %v120 = vld [vmem:[#allocation2 + $0x278] sm:$0xff]
    %v121 = vld [vmem:[#allocation2 + $0x280] sm:$0xff]
    %v122 = vld [vmem:[#allocation2 + $0x288] sm:$0xff]
    %v123 = vld [vmem:[#allocation2 + $0x290] sm:$0xff]
    %v124 = vld [vmem:[#allocation2 + $0x298] sm:$0xff]
    %v125 = vld [vmem:[#allocation2 + $0x2a0] sm:$0xff]
    %v126 = vld [vmem:[#allocation2 + $0x2a8] sm:$0xff]
    %v127 = vld [vmem:[#allocation2 + $0x2b0] sm:$0xff]
    %v128 = vld [vmem:[#allocation2 + $0x2b8] sm:$0xff]
    %v129 = vld [vmem:[#allocation2 + $0x2c0] sm:$0xff]
    %v130 = vld [vmem:[#allocation2 + $0x2c8] sm:$0xff]
    %v131 = vld [vmem:[#allocation2 + $0x2d0] sm:$0xff]
    %v132 = vld [vmem:[#allocation2 + $0x2d8] sm:$0xff]
    %v133 = vld [vmem:[#allocation2 + $0x2e0] sm:$0xff]
    %v134 = vld [vmem:[#allocation2 + $0x2e8] sm:$0xff]
    %v135 = vld [vmem:[#allocation2 + $0x2f0] sm:$0xff]
    %v136 = vld [vmem:[#allocation2 + $0x2f8] sm:$0xff]
    %v137 = vld [vmem:[#allocation2 + $0x300] sm:$0xff]
    %v138 = vld [vmem:[#allocation2 + $0x308] sm:$0xff]
    %v139 = vld [vmem:[#allocation2 + $0x310] sm:$0xff]
    %v140 = vld [vmem:[#allocation2 + $0x318] sm:$0xff]
    %v141 = vld [vmem:[#allocation2 + $0x320] sm:$0xff]
    %v142 = vld [vmem:[#allocation2 + $0x328] sm:$0xff]
    %v143 = vld [vmem:[#allocation2 + $0x330] sm:$0xff]
    %v144 = vld [vmem:[#allocation2 + $0x338] sm:$0xff]
    %v145 = vld [vmem:[#allocation2 + $0x340] sm:$0xff]
    %v146 = vld [vmem:[#allocation2 + $0x348] sm:$0xff]
    %v147 = vld [vmem:[#allocation2 + $0x350] sm:$0xff]
    %v148 = vld [vmem:[#allocation2 + $0x358] sm:$0xff]
    %v149 = vld [vmem:[#allocation2 + $0x360] sm:$0xff]
    %v150 = vld [vmem:[#allocation2 + $0x368] sm:$0xff]
    %v151 = vld [vmem:[#allocation2 + $0x370] sm:$0xff]
    %v152 = vld [vmem:[#allocation2 + $0x378] sm:$0xff]
    %v153 = vld [vmem:[#allocation2 + $0x380] sm:$0xff]
    %v154 = vld [vmem:[#allocation2 + $0x388] sm:$0xff]
    %v155 = vld [vmem:[#allocation2 + $0x390] sm:$0xff]
    %v156 = vld [vmem:[#allocation2 + $0x398] sm:$0xff]
    %v157 = vld [vmem:[#allocation2 + $0x3a0] sm:$0xff]
    %v158 = vld [vmem:[#allocation2 + $0x3a8] sm:$0xff]
    %v159 = vld [vmem:[#allocation2 + $0x3b0] sm:$0xff]
    %v160 = vld [vmem:[#allocation2 + $0x3b8] sm:$0xff]
    %v161 = vld [vmem:[#allocation2 + $0x3c0] sm:$0xff]
    %v162 = vld [vmem:[#allocation2 + $0x3c8] sm:$0xff]
    %v163 = vld [vmem:[#allocation2 + $0x3d0] sm:$0xff]
    %v164 = vld [vmem:[#allocation2 + $0x3d8] sm:$0xff]
    %v165 = vld [vmem:[#allocation2 + $0x3e0] sm:$0xff]
    %v166 = vld [vmem:[#allocation2 + $0x3e8] sm:$0xff]
    %v167 = vld [vmem:[#allocation2 + $0x3f0] sm:$0xff]
    %v168 = vld [vmem:[#allocation2 + $0x3f8] sm:$0xff]
    %v169 = vld [vmem:[#allocation2 + $0x400] sm:$0xff]
    %v170 = vld [vmem:[#allocation2 + $0x408] sm:$0xff]
    %v171 = vld [vmem:[#allocation2 + $0x410] sm:$0xff]
    %v172 = vld [vmem:[#allocation2 + $0x418] sm:$0xff]
    %v173 = vld [vmem:[#allocation2 + $0x420] sm:$0xff]
    %v174 = vld [vmem:[#allocation2 + $0x428] sm:$0xff]
    %v175 = vld [vmem:[#allocation2 + $0x430] sm:$0xff]
    %v176 = vld [vmem:[#allocation2 + $0x438] sm:$0xff]
    %v177 = vld [vmem:[#allocation2 + $0x440] sm:$0xff]
    %v178 = vld [vmem:[#allocation2 + $0x448] sm:$0xff]
    %v179 = vld [vmem:[#allocation2 + $0x450] sm:$0xff]
    %v180 = vld [vmem:[#allocation2 + $0x458] sm:$0xff]
    %v181 = vld [vmem:[#allocation2 + $0x460] sm:$0xff]
    %v182 = vld [vmem:[#allocation2 + $0x468] sm:$0xff]
    %v183 = vld [vmem:[#allocation2 + $0x470] sm:$0xff]
    %v184 = vld [vmem:[#allocation2 + $0x478] sm:$0xff]
    %v185 = vld [vmem:[#allocation2 + $0x480] sm:$0xff]
    %v186 = vld [vmem:[#allocation2 + $0x488] sm:$0xff]
    %v187 = vld [vmem:[#allocation2 + $0x490] sm:$0xff]
    %v188 = vld [vmem:[#allocation2 + $0x498] sm:$0xff]
    %v189 = vld [vmem:[#allocation2 + $0x4a0] sm:$0xff]
    %v190 = vld [vmem:[#allocation2 + $0x4a8] sm:$0xff]
    %v191 = vld [vmem:[#allocation2 + $0x4b0] sm:$0xff]
    %v192 = vld [vmem:[#allocation2 + $0x4b8] sm:$0xff]
    %v193 = vld [vmem:[#allocation2 + $0x4c0] sm:$0xff]
    %v194 = vld [vmem:[#allocation2 + $0x4c8] sm:$0xff]
    %v195 = vld [vmem:[#allocation2 + $0x4d0] sm:$0xff]
    %v196 = vld [vmem:[#allocation2 + $0x4d8] sm:$0xff]
    %v197 = vld [vmem:[#allocation2 + $0x4e0] sm:$0xff]
    %v198 = vld [vmem:[#allocation2 + $0x4e8] sm:$0xff]
    %v199 = vld [vmem:[#allocation2 + $0x4f0] sm:$0xff]
    %v200 = vld [vmem:[#allocation2 + $0x4f8] sm:$0xff]
    %v201 = vld [vmem:[#allocation2 + $0x500] sm:$0xff]
    %v202 = vld [vmem:[#allocation2 + $0x508] sm:$0xff]
    %v203 = vld [vmem:[#allocation2 + $0x510] sm:$0xff]
    %v204 = vld [vmem:[#allocation2 + $0x518] sm:$0xff]
    %v205 = vld [vmem:[#allocation2 + $0x520] sm:$0xff]
    %v206 = vld [vmem:[#allocation2 + $0x528] sm:$0xff]
    %v207 = vld [vmem:[#allocation2 + $0x530] sm:$0xff]
    %v208 = vld [vmem:[#allocation2 + $0x538] sm:$0xff]
    %v209 = vld [vmem:[#allocation2 + $0x540] sm:$0xff]
    %v210 = vld [vmem:[#allocation2 + $0x548] sm:$0xff]
    %v211 = vld [vmem:[#allocation2 + $0x550] sm:$0xff]
    %v212 = vld [vmem:[#allocation2 + $0x558] sm:$0xff]
    %v213 = vld [vmem:[#allocation2 + $0x560] sm:$0xff]
    %v214 = vld [vmem:[#allocation2 + $0x568] sm:$0xff]
    %v215 = vld [vmem:[#allocation2 + $0x570] sm:$0xff]
    %v216 = vld [vmem:[#allocation2 + $0x578] sm:$0xff]
    %v217 = vld [vmem:[#allocation2 + $0x580] sm:$0xff]
    %v218 = vld [vmem:[#allocation2 + $0x588] sm:$0xff]
    %v219 = vld [vmem:[#allocation2 + $0x590] sm:$0xff]
    %v220 = vld [vmem:[#allocation2 + $0x598] sm:$0xff]
    %v221 = vld [vmem:[#allocation2 + $0x5a0] sm:$0xff]
    %v222 = vld [vmem:[#allocation2 + $0x5a8] sm:$0xff]
    %v223 = vld [vmem:[#allocation2 + $0x5b0] sm:$0xff]
    %v224 = vld [vmem:[#allocation2 + $0x5b8] sm:$0xff]
    %v225 = vld [vmem:[#allocation2 + $0x5c0] sm:$0xff]
    %v226 = vld [vmem:[#allocation2 + $0x5c8] sm:$0xff]
    %v227 = vld [vmem:[#allocation2 + $0x5d0] sm:$0xff]
    %v228 = vld [vmem:[#allocation2 + $0x5d8] sm:$0xff]
    %v229 = vld [vmem:[#allocation2 + $0x5e0] sm:$0xff]
    %v230 = vld [vmem:[#allocation2 + $0x5e8] sm:$0xff]
    %v231 = vld [vmem:[#allocation2 + $0x5f0] sm:$0xff]
    %v232 = vld [vmem:[#allocation2 + $0x5f8] sm:$0xff]
    %v233 = vld [vmem:[#allocation2 + $0x600] sm:$0xff]
    %v234 = vld [vmem:[#allocation2 + $0x608] sm:$0xff]
    %v235 = vld [vmem:[#allocation2 + $0x610] sm:$0xff]
    %v236 = vld [vmem:[#allocation2 + $0x618] sm:$0xff]
    %v237 = vld [vmem:[#allocation2 + $0x620] sm:$0xff]
    %v238 = vld [vmem:[#allocation2 + $0x628] sm:$0xff]
    %v239 = vld [vmem:[#allocation2 + $0x630] sm:$0xff]
    %v240 = vld [vmem:[#allocation2 + $0x638] sm:$0xff]
    %v241 = vld [vmem:[#allocation2 + $0x640] sm:$0xff]
    %v242 = vld [vmem:[#allocation2 + $0x648] sm:$0xff]
    %v243 = vld [vmem:[#allocation2 + $0x650] sm:$0xff]
    %v244 = vld [vmem:[#allocation2 + $0x658] sm:$0xff]
    %v245 = vld [vmem:[#allocation2 + $0x660] sm:$0xff]
    %v246 = vld [vmem:[#allocation2 + $0x668] sm:$0xff]
    %v247 = vld [vmem:[#allocation2 + $0x670] sm:$0xff]
    %v248 = vld [vmem:[#allocation2 + $0x678] sm:$0xff]
    %v249 = vld [vmem:[#allocation2 + $0x680] sm:$0xff]
    %v250 = vld [vmem:[#allocation2 + $0x688] sm:$0xff]
    %v251 = vld [vmem:[#allocation2 + $0x690] sm:$0xff]
    %v252 = vld [vmem:[#allocation2 + $0x698] sm:$0xff]
    %v253 = vld [vmem:[#allocation2 + $0x6a0] sm:$0xff]
    %v254 = vld [vmem:[#allocation2 + $0x6a8] sm:$0xff]
    %v255 = vld [vmem:[#allocation2 + $0x6b0] sm:$0xff]
    %v256 = vld [vmem:[#allocation2 + $0x6b8] sm:$0xff]
    %v257 = vld [vmem:[#allocation2 + $0x6c0] sm:$0xff]
    %v258 = vld [vmem:[#allocation2 + $0x6c8] sm:$0xff]
    %v259 = vld [vmem:[#allocation2 + $0x6d0] sm:$0xff]
    %v260 = vld [vmem:[#allocation2 + $0x6d8] sm:$0xff]
    %v261 = vld [vmem:[#allocation2 + $0x6e0] sm:$0xff]
    %v262 = vld [vmem:[#allocation2 + $0x6e8] sm:$0xff]
    %v263 = vld [vmem:[#allocation2 + $0x6f0] sm:$0xff]
    %v264 = vld [vmem:[#allocation2 + $0x6f8] sm:$0xff]
    %v265 = vld [vmem:[#allocation2 + $0x700] sm:$0xff]
    %v266 = vld [vmem:[#allocation2 + $0x708] sm:$0xff]
    %v267 = vld [vmem:[#allocation2 + $0x710] sm:$0xff]
    %v268 = vld [vmem:[#allocation2 + $0x718] sm:$0xff]
    %v269 = vld [vmem:[#allocation2 + $0x720] sm:$0xff]
    %v270 = vld [vmem:[#allocation2 + $0x728] sm:$0xff]
    %v271 = vld [vmem:[#allocation2 + $0x730] sm:$0xff]
    %v272 = vld [vmem:[#allocation2 + $0x738] sm:$0xff]
    %v273 = vld [vmem:[#allocation2 + $0x740] sm:$0xff]
    %v274 = vld [vmem:[#allocation2 + $0x748] sm:$0xff]
    %v275 = vld [vmem:[#allocation2 + $0x750] sm:$0xff]
    %v276 = vld [vmem:[#allocation2 + $0x758] sm:$0xff]
    %v277 = vld [vmem:[#allocation2 + $0x760] sm:$0xff]
    %v278 = vld [vmem:[#allocation2 + $0x768] sm:$0xff]
    %v279 = vld [vmem:[#allocation2 + $0x770] sm:$0xff]
    %v280 = vld [vmem:[#allocation2 + $0x778] sm:$0xff]
    %v281 = vld [vmem:[#allocation2 + $0x780] sm:$0xff]
    %v282 = vld [vmem:[#allocation2 + $0x788] sm:$0xff]
    %v283 = vld [vmem:[#allocation2 + $0x790] sm:$0xff]
    %v284 = vld [vmem:[#allocation2 + $0x798] sm:$0xff]
    %v285 = vld [vmem:[#allocation2 + $0x7a0] sm:$0xff]
    %v286 = vld [vmem:[#allocation2 + $0x7a8] sm:$0xff]
    %v287 = vld [vmem:[#allocation2 + $0x7b0] sm:$0xff]
    %v288 = vld [vmem:[#allocation2 + $0x7b8] sm:$0xff]
    %v289 = vld [vmem:[#allocation2 + $0x7c0] sm:$0xff]
    %v290 = vld [vmem:[#allocation2 + $0x7c8] sm:$0xff]
    %v291 = vld [vmem:[#allocation2 + $0x7d0] sm:$0xff]
    %v292 = vld [vmem:[#allocation2 + $0x7d8] sm:$0xff]
    %v293 = vld [vmem:[#allocation2 + $0x7e0] sm:$0xff]
    %v294 = vld [vmem:[#allocation2 + $0x7e8] sm:$0xff]
    %v295 = vld [vmem:[#allocation2 + $0x7f0] sm:$0xff]
    %v296 = vld [vmem:[#allocation2 + $0x7f8] sm:$0xff]
    %v297 = vpack.c.bf16 %v45, %v41
    %v298 = vpack.c.bf16 %v46, %v42
    %v299 = vpack.c.bf16 %v47, %v43
    %v300 = vpack.c.bf16 %v48, %v44
    %v301 = vpack.c.bf16 %v53, %v49
    %v302 = vpack.c.bf16 %v54, %v50
    %v303 = vpack.c.bf16 %v55, %v51
    %v304 = vpack.c.bf16 %v56, %v52
    %v305 = vpack.c.bf16 %v61, %v57
    %v306 = vpack.c.bf16 %v62, %v58
    %v307 = vpack.c.bf16 %v63, %v59
    %v308 = vpack.c.bf16 %v64, %v60
    %v309 = vpack.c.bf16 %v69, %v65
    %v310 = vpack.c.bf16 %v70, %v66
    %v311 = vpack.c.bf16 %v71, %v67
    %v312 = vpack.c.bf16 %v72, %v68
    %v313 = vpack.c.bf16 %v77, %v73
    %v314 = vpack.c.bf16 %v78, %v74
    %v315 = vpack.c.bf16 %v79, %v75
    %v316 = vpack.c.bf16 %v80, %v76
    %v317 = vpack.c.bf16 %v85, %v81
    %v318 = vpack.c.bf16 %v86, %v82
    %v319 = vpack.c.bf16 %v87, %v83
    %v320 = vpack.c.bf16 %v88, %v84
    %v321 = vpack.c.bf16 %v93, %v89
    %v322 = vpack.c.bf16 %v94, %v90
    %v323 = vpack.c.bf16 %v95, %v91
    %v324 = vpack.c.bf16 %v96, %v92
    %v325 = vpack.c.bf16 %v101, %v97
    %v326 = vpack.c.bf16 %v102, %v98
    %v327 = vpack.c.bf16 %v103, %v99
    %v328 = vpack.c.bf16 %v104, %v100
    %v329 = vpack.c.bf16 %v109, %v105
    %v330 = vpack.c.bf16 %v110, %v106
    %v331 = vpack.c.bf16 %v111, %v107
    %v332 = vpack.c.bf16 %v112, %v108
    %v333 = vpack.c.bf16 %v117, %v113
    %v334 = vpack.c.bf16 %v118, %v114
    %v335 = vpack.c.bf16 %v119, %v115
    %v336 = vpack.c.bf16 %v120, %v116
    %v337 = vpack.c.bf16 %v125, %v121
    %v338 = vpack.c.bf16 %v126, %v122
    %v339 = vpack.c.bf16 %v127, %v123
    %v340 = vpack.c.bf16 %v128, %v124
    %v341 = vpack.c.bf16 %v133, %v129
    %v342 = vpack.c.bf16 %v134, %v130
    %v343 = vpack.c.bf16 %v135, %v131
    %v344 = vpack.c.bf16 %v136, %v132
    %v345 = vpack.c.bf16 %v141, %v137
    %v346 = vpack.c.bf16 %v142, %v138
    %v347 = vpack.c.bf16 %v143, %v139
    %v348 = vpack.c.bf16 %v144, %v140
    %v349 = vpack.c.bf16 %v149, %v145
    %v350 = vpack.c.bf16 %v150, %v146
    %v351 = vpack.c.bf16 %v151, %v147
    %v352 = vpack.c.bf16 %v152, %v148
    %v353 = vpack.c.bf16 %v157, %v153
    %v354 = vpack.c.bf16 %v158, %v154
    %v355 = vpack.c.bf16 %v159, %v155
    %v356 = vpack.c.bf16 %v160, %v156
    %v357 = vpack.c.bf16 %v165, %v161
    %v358 = vpack.c.bf16 %v166, %v162
    %v359 = vpack.c.bf16 %v167, %v163
    %v360 = vpack.c.bf16 %v168, %v164
    %v361 = vpack.c.bf16 %v173, %v169
    %v362 = vpack.c.bf16 %v174, %v170
    %v363 = vpack.c.bf16 %v175, %v171
    %v364 = vpack.c.bf16 %v176, %v172
    %v365 = vpack.c.bf16 %v181, %v177
    %v366 = vpack.c.bf16 %v182, %v178
    %v367 = vpack.c.bf16 %v183, %v179
    %v368 = vpack.c.bf16 %v184, %v180
    %v369 = vpack.c.bf16 %v189, %v185
    %v370 = vpack.c.bf16 %v190, %v186
    %v371 = vpack.c.bf16 %v191, %v187
    %v372 = vpack.c.bf16 %v192, %v188
    %v373 = vpack.c.bf16 %v197, %v193
    %v374 = vpack.c.bf16 %v198, %v194
    %v375 = vpack.c.bf16 %v199, %v195
    %v376 = vpack.c.bf16 %v200, %v196
    %v377 = vpack.c.bf16 %v205, %v201
    %v378 = vpack.c.bf16 %v206, %v202
    %v379 = vpack.c.bf16 %v207, %v203
    %v380 = vpack.c.bf16 %v208, %v204
    %v381 = vpack.c.bf16 %v213, %v209
    %v382 = vpack.c.bf16 %v214, %v210
    %v383 = vpack.c.bf16 %v215, %v211
    %v384 = vpack.c.bf16 %v216, %v212
    %v385 = vpack.c.bf16 %v221, %v217
    %v386 = vpack.c.bf16 %v222, %v218
    %v387 = vpack.c.bf16 %v223, %v219
    %v388 = vpack.c.bf16 %v224, %v220
    %v389 = vpack.c.bf16 %v229, %v225
    %v390 = vpack.c.bf16 %v230, %v226
    %v391 = vpack.c.bf16 %v231, %v227
    %v392 = vpack.c.bf16 %v232, %v228
    %v393 = vpack.c.bf16 %v237, %v233
    %v394 = vpack.c.bf16 %v238, %v234
    %v395 = vpack.c.bf16 %v239, %v235
    %v396 = vpack.c.bf16 %v240, %v236
    %v397 = vpack.c.bf16 %v245, %v241
    %v398 = vpack.c.bf16 %v246, %v242
    %v399 = vpack.c.bf16 %v247, %v243
    %v400 = vpack.c.bf16 %v248, %v244
    %v401 = vpack.c.bf16 %v253, %v249
    %v402 = vpack.c.bf16 %v254, %v250
    %v403 = vpack.c.bf16 %v255, %v251
    %v404 = vpack.c.bf16 %v256, %v252
    %v405 = vpack.c.bf16 %v261, %v257
    %v406 = vpack.c.bf16 %v262, %v258
    %v407 = vpack.c.bf16 %v263, %v259
    %v408 = vpack.c.bf16 %v264, %v260
    %v409 = vpack.c.bf16 %v269, %v265
    %v410 = vpack.c.bf16 %v270, %v266
    %v411 = vpack.c.bf16 %v271, %v267
    %v412 = vpack.c.bf16 %v272, %v268
    %v413 = vpack.c.bf16 %v277, %v273
    %v414 = vpack.c.bf16 %v278, %v274
    %v415 = vpack.c.bf16 %v279, %v275
    %v416 = vpack.c.bf16 %v280, %v276
    %v417 = vpack.c.bf16 %v285, %v281
    %v418 = vpack.c.bf16 %v286, %v282
    %v419 = vpack.c.bf16 %v287, %v283
    %v420 = vpack.c.bf16 %v288, %v284
    %v421 = vpack.c.bf16 %v293, %v289
    %v422 = vpack.c.bf16 %v294, %v290
    %v423 = vpack.c.bf16 %v295, %v291
    %v424 = vpack.c.bf16 %v296, %v292
    %v425 = vld [vmem:[#allocation4] sm:$0xff]
    %v426 = vld [vmem:[#allocation4 + $0x8] sm:$0xff]
    %v427 = vld [vmem:[#allocation4 + $0x10] sm:$0xff]
    %v428 = vld [vmem:[#allocation4 + $0x18] sm:$0xff]
    %v429 = vld [vmem:[#allocation4 + $0x20] sm:$0xff]
    %v430 = vld [vmem:[#allocation4 + $0x28] sm:$0xff]
    %v431 = vld [vmem:[#allocation4 + $0x30] sm:$0xff]
    %v432 = vld [vmem:[#allocation4 + $0x38] sm:$0xff]
    %v433 = vld [vmem:[#allocation4 + $0x40] sm:$0xff]
    %v434 = vld [vmem:[#allocation4 + $0x48] sm:$0xff]
    %v435 = vld [vmem:[#allocation4 + $0x50] sm:$0xff]
    %v436 = vld [vmem:[#allocation4 + $0x58] sm:$0xff]
    %v437 = vld [vmem:[#allocation4 + $0x60] sm:$0xff]
    %v438 = vld [vmem:[#allocation4 + $0x68] sm:$0xff]
    %v439 = vld [vmem:[#allocation4 + $0x70] sm:$0xff]
    %v440 = vld [vmem:[#allocation4 + $0x78] sm:$0xff]
    %v441 = vld [vmem:[#allocation4 + $0x80] sm:$0xff]
    %v442 = vld [vmem:[#allocation4 + $0x88] sm:$0xff]
    %v443 = vld [vmem:[#allocation4 + $0x90] sm:$0xff]
    %v444 = vld [vmem:[#allocation4 + $0x98] sm:$0xff]
    %v445 = vld [vmem:[#allocation4 + $0xa0] sm:$0xff]
    %v446 = vld [vmem:[#allocation4 + $0xa8] sm:$0xff]
    %v447 = vld [vmem:[#allocation4 + $0xb0] sm:$0xff]
    %v448 = vld [vmem:[#allocation4 + $0xb8] sm:$0xff]
    %v449 = vld [vmem:[#allocation4 + $0xc0] sm:$0xff]
    %v450 = vld [vmem:[#allocation4 + $0xc8] sm:$0xff]
    %v451 = vld [vmem:[#allocation4 + $0xd0] sm:$0xff]
    %v452 = vld [vmem:[#allocation4 + $0xd8] sm:$0xff]
    %v453 = vld [vmem:[#allocation4 + $0xe0] sm:$0xff]
    %v454 = vld [vmem:[#allocation4 + $0xe8] sm:$0xff]
    %v455 = vld [vmem:[#allocation4 + $0xf0] sm:$0xff]
    %v456 = vld [vmem:[#allocation4 + $0xf8] sm:$0xff]
    %v457 = vld [vmem:[#allocation4 + $0x100] sm:$0xff]
    %v458 = vld [vmem:[#allocation4 + $0x108] sm:$0xff]
    %v459 = vld [vmem:[#allocation4 + $0x110] sm:$0xff]
    %v460 = vld [vmem:[#allocation4 + $0x118] sm:$0xff]
    %v461 = vld [vmem:[#allocation4 + $0x120] sm:$0xff]
    %v462 = vld [vmem:[#allocation4 + $0x128] sm:$0xff]
    %v463 = vld [vmem:[#allocation4 + $0x130] sm:$0xff]
    %v464 = vld [vmem:[#allocation4 + $0x138] sm:$0xff]
    %v465 = vld [vmem:[#allocation4 + $0x140] sm:$0xff]
    %v466 = vld [vmem:[#allocation4 + $0x148] sm:$0xff]
    %v467 = vld [vmem:[#allocation4 + $0x150] sm:$0xff]
    %v468 = vld [vmem:[#allocation4 + $0x158] sm:$0xff]
    %v469 = vld [vmem:[#allocation4 + $0x160] sm:$0xff]
    %v470 = vld [vmem:[#allocation4 + $0x168] sm:$0xff]
    %v471 = vld [vmem:[#allocation4 + $0x170] sm:$0xff]
    %v472 = vld [vmem:[#allocation4 + $0x178] sm:$0xff]
    %v473 = vld [vmem:[#allocation4 + $0x180] sm:$0xff]
    %v474 = vld [vmem:[#allocation4 + $0x188] sm:$0xff]
    %v475 = vld [vmem:[#allocation4 + $0x190] sm:$0xff]
    %v476 = vld [vmem:[#allocation4 + $0x198] sm:$0xff]
    %v477 = vld [vmem:[#allocation4 + $0x1a0] sm:$0xff]
    %v478 = vld [vmem:[#allocation4 + $0x1a8] sm:$0xff]
    %v479 = vld [vmem:[#allocation4 + $0x1b0] sm:$0xff]
    %v480 = vld [vmem:[#allocation4 + $0x1b8] sm:$0xff]
    %v481 = vld [vmem:[#allocation4 + $0x1c0] sm:$0xff]
    %v482 = vld [vmem:[#allocation4 + $0x1c8] sm:$0xff]
    %v483 = vld [vmem:[#allocation4 + $0x1d0] sm:$0xff]
    %v484 = vld [vmem:[#allocation4 + $0x1d8] sm:$0xff]
    %v485 = vld [vmem:[#allocation4 + $0x1e0] sm:$0xff]
    %v486 = vld [vmem:[#allocation4 + $0x1e8] sm:$0xff]
    %v487 = vld [vmem:[#allocation4 + $0x1f0] sm:$0xff]
    %v488 = vld [vmem:[#allocation4 + $0x1f8] sm:$0xff]
    %v553 = vunpack.c.l.b16 %v425
    %v554 = vunpack.c.h.b16 %v425
    %v555 = vunpack.c.l.b16 %v426
    %v556 = vunpack.c.h.b16 %v426
    %v557 = vunpack.c.l.b16 %v427
    %v558 = vunpack.c.h.b16 %v427
    %v559 = vunpack.c.l.b16 %v428
    %v560 = vunpack.c.h.b16 %v428
    %v561 = vunpack.c.l.b16 %v429
    %v562 = vunpack.c.h.b16 %v429
    %v563 = vunpack.c.l.b16 %v430
    %v564 = vunpack.c.h.b16 %v430
    %v565 = vunpack.c.l.b16 %v431
    %v566 = vunpack.c.h.b16 %v431
    %v567 = vunpack.c.l.b16 %v432
    %v568 = vunpack.c.h.b16 %v432
    %v569 = vunpack.c.l.b16 %v433
    %v570 = vunpack.c.h.b16 %v433
    %v571 = vunpack.c.l.b16 %v434
    %v572 = vunpack.c.h.b16 %v434
    %v573 = vunpack.c.l.b16 %v435
    %v574 = vunpack.c.h.b16 %v435
    %v575 = vunpack.c.l.b16 %v436
    %v576 = vunpack.c.h.b16 %v436
    %v577 = vunpack.c.l.b16 %v437
    %v578 = vunpack.c.h.b16 %v437
    %v579 = vunpack.c.l.b16 %v438
    %v580 = vunpack.c.h.b16 %v438
    %v581 = vunpack.c.l.b16 %v439
    %v582 = vunpack.c.h.b16 %v439
    %v583 = vunpack.c.l.b16 %v440
    %v584 = vunpack.c.h.b16 %v440
    %v585 = vunpack.c.l.b16 %v441
    %v586 = vunpack.c.h.b16 %v441
    %v587 = vunpack.c.l.b16 %v442
    %v588 = vunpack.c.h.b16 %v442
    %v589 = vunpack.c.l.b16 %v443
    %v590 = vunpack.c.h.b16 %v443
    %v591 = vunpack.c.l.b16 %v444
    %v592 = vunpack.c.h.b16 %v444
    %v593 = vunpack.c.l.b16 %v445
    %v594 = vunpack.c.h.b16 %v445
    %v595 = vunpack.c.l.b16 %v446
    %v596 = vunpack.c.h.b16 %v446
    %v597 = vunpack.c.l.b16 %v447
    %v598 = vunpack.c.h.b16 %v447
    %v599 = vunpack.c.l.b16 %v448
    %v600 = vunpack.c.h.b16 %v448
    %v601 = vunpack.c.l.b16 %v449
    %v602 = vunpack.c.h.b16 %v449
    %v603 = vunpack.c.l.b16 %v450
    %v604 = vunpack.c.h.b16 %v450
    %v605 = vunpack.c.l.b16 %v451
    %v606 = vunpack.c.h.b16 %v451
    %v607 = vunpack.c.l.b16 %v452
    %v608 = vunpack.c.h.b16 %v452
    %v609 = vunpack.c.l.b16 %v453
    %v610 = vunpack.c.h.b16 %v453
    %v611 = vunpack.c.l.b16 %v454
    %v612 = vunpack.c.h.b16 %v454
    %v613 = vunpack.c.l.b16 %v455
    %v614 = vunpack.c.h.b16 %v455
    %v615 = vunpack.c.l.b16 %v456
    %v616 = vunpack.c.h.b16 %v456
    %v617 = vunpack.c.l.b16 %v457
    %v618 = vunpack.c.h.b16 %v457
    %v619 = vunpack.c.l.b16 %v458
    %v620 = vunpack.c.h.b16 %v458
    %v621 = vunpack.c.l.b16 %v459
    %v622 = vunpack.c.h.b16 %v459
    %v623 = vunpack.c.l.b16 %v460
    %v624 = vunpack.c.h.b16 %v460
    %v625 = vunpack.c.l.b16 %v461
    %v626 = vunpack.c.h.b16 %v461
    %v627 = vunpack.c.l.b16 %v462
    %v628 = vunpack.c.h.b16 %v462
    %v629 = vunpack.c.l.b16 %v463
    %v630 = vunpack.c.h.b16 %v463
    %v631 = vunpack.c.l.b16 %v464
    %v632 = vunpack.c.h.b16 %v464
    %v633 = vunpack.c.l.b16 %v465
    %v634 = vunpack.c.h.b16 %v465
    %v635 = vunpack.c.l.b16 %v466
    %v636 = vunpack.c.h.b16 %v466
    %v637 = vunpack.c.l.b16 %v467
    %v638 = vunpack.c.h.b16 %v467
    %v639 = vunpack.c.l.b16 %v468
    %v640 = vunpack.c.h.b16 %v468
    %v641 = vunpack.c.l.b16 %v469
    %v642 = vunpack.c.h.b16 %v469
    %v643 = vunpack.c.l.b16 %v470
    %v644 = vunpack.c.h.b16 %v470
    %v645 = vunpack.c.l.b16 %v471
    %v646 = vunpack.c.h.b16 %v471
    %v647 = vunpack.c.l.b16 %v472
    %v648 = vunpack.c.h.b16 %v472
    %v649 = vunpack.c.l.b16 %v473
    %v650 = vunpack.c.h.b16 %v473
    %v651 = vunpack.c.l.b16 %v474
    %v652 = vunpack.c.h.b16 %v474
    %v653 = vunpack.c.l.b16 %v475
    %v654 = vunpack.c.h.b16 %v475
    %v655 = vunpack.c.l.b16 %v476
    %v656 = vunpack.c.h.b16 %v476
    %v657 = vunpack.c.l.b16 %v477
    %v658 = vunpack.c.h.b16 %v477
    %v659 = vunpack.c.l.b16 %v478
    %v660 = vunpack.c.h.b16 %v478
    %v661 = vunpack.c.l.b16 %v479
    %v662 = vunpack.c.h.b16 %v479
    %v663 = vunpack.c.l.b16 %v480
    %v664 = vunpack.c.h.b16 %v480
    %v665 = vunpack.c.l.b16 %v481
    %v666 = vunpack.c.h.b16 %v481
    %v667 = vunpack.c.l.b16 %v482
    %v668 = vunpack.c.h.b16 %v482
    %v669 = vunpack.c.l.b16 %v483
    %v670 = vunpack.c.h.b16 %v483
    %v671 = vunpack.c.l.b16 %v484
    %v672 = vunpack.c.h.b16 %v484
    %v673 = vunpack.c.l.b16 %v485
    %v674 = vunpack.c.h.b16 %v485
    %v675 = vunpack.c.l.b16 %v486
    %v676 = vunpack.c.h.b16 %v486
    %v677 = vunpack.c.l.b16 %v487
    %v678 = vunpack.c.h.b16 %v487
    %v679 = vunpack.c.l.b16 %v488
    %v680 = vunpack.c.h.b16 %v488
    %v681 = vpack.c.b16 %v555, %v553
    %v682 = vpack.c.b16 %v556, %v554
    %v683 = vpack.c.b16 %v559, %v557
    %v684 = vpack.c.b16 %v560, %v558
    %v685 = vpack.c.b16 %v563, %v561
    %v686 = vpack.c.b16 %v564, %v562
    %v687 = vpack.c.b16 %v567, %v565
    %v688 = vpack.c.b16 %v568, %v566
    %v689 = vpack.c.b16 %v571, %v569
    %v690 = vpack.c.b16 %v572, %v570
    %v691 = vpack.c.b16 %v575, %v573
    %v692 = vpack.c.b16 %v576, %v574
    %v693 = vpack.c.b16 %v579, %v577
    %v694 = vpack.c.b16 %v580, %v578
    %v695 = vpack.c.b16 %v583, %v581
    %v696 = vpack.c.b16 %v584, %v582
    %v697 = vpack.c.b16 %v587, %v585
    %v698 = vpack.c.b16 %v588, %v586
    %v699 = vpack.c.b16 %v591, %v589
    %v700 = vpack.c.b16 %v592, %v590
    %v701 = vpack.c.b16 %v595, %v593
    %v702 = vpack.c.b16 %v596, %v594
    %v703 = vpack.c.b16 %v599, %v597
    %v704 = vpack.c.b16 %v600, %v598
    %v705 = vpack.c.b16 %v603, %v601
    %v706 = vpack.c.b16 %v604, %v602
    %v707 = vpack.c.b16 %v607, %v605
    %v708 = vpack.c.b16 %v608, %v606
    %v709 = vpack.c.b16 %v611, %v609
    %v710 = vpack.c.b16 %v612, %v610
    %v711 = vpack.c.b16 %v615, %v613
    %v712 = vpack.c.b16 %v616, %v614
    %v713 = vpack.c.b16 %v619, %v617
    %v714 = vpack.c.b16 %v620, %v618
    %v715 = vpack.c.b16 %v623, %v621
    %v716 = vpack.c.b16 %v624, %v622
    %v717 = vpack.c.b16 %v627, %v625
    %v718 = vpack.c.b16 %v628, %v626
    %v719 = vpack.c.b16 %v631, %v629
    %v720 = vpack.c.b16 %v632, %v630
    %v721 = vpack.c.b16 %v635, %v633
    %v722 = vpack.c.b16 %v636, %v634
    %v723 = vpack.c.b16 %v639, %v637
    %v724 = vpack.c.b16 %v640, %v638
    %v725 = vpack.c.b16 %v643, %v641
    %v726 = vpack.c.b16 %v644, %v642
    %v727 = vpack.c.b16 %v647, %v645
    %v728 = vpack.c.b16 %v648, %v646
    %v729 = vpack.c.b16 %v651, %v649
    %v730 = vpack.c.b16 %v652, %v650
    %v731 = vpack.c.b16 %v655, %v653
    %v732 = vpack.c.b16 %v656, %v654
    %v733 = vpack.c.b16 %v659, %v657
    %v734 = vpack.c.b16 %v660, %v658
    %v735 = vpack.c.b16 %v663, %v661
    %v736 = vpack.c.b16 %v664, %v662
    %v737 = vpack.c.b16 %v667, %v665
    %v738 = vpack.c.b16 %v668, %v666
    %v739 = vpack.c.b16 %v671, %v669
    %v740 = vpack.c.b16 %v672, %v670
    %v741 = vpack.c.b16 %v675, %v673
    %v742 = vpack.c.b16 %v676, %v674
    %v743 = vpack.c.b16 %v679, %v677
    %v744 = vpack.c.b16 %v680, %v678
    %809 = vmatprep.subr.bf16.mxu0 %v696
    %810 = vmatpush1.bf16.msra.mxu0 %v695
    %811 = vmatprep.subr.bf16.mxu0 %v694
    %812 = vmatpush1.bf16.msra.mxu0 %v693
    %813 = vmatprep.subr.bf16.mxu0 %v692
    %814 = vmatpush1.bf16.msra.mxu0 %v691
    %815 = vmatprep.subr.bf16.mxu0 %v690
    %816 = vmatpush1.bf16.msra.mxu0 %v689
    %817 = vmatprep.subr.bf16.mxu0 %v688
    %818 = vmatpush1.bf16.msra.mxu0 %v687
    %819 = vmatprep.subr.bf16.mxu0 %v686
    %820 = vmatpush1.bf16.msra.mxu0 %v685
    %821 = vmatprep.subr.bf16.mxu0 %v684
    %822 = vmatpush1.bf16.msra.mxu0 %v683
    %823 = vmatprep.subr.bf16.mxu0 %v682
    %824 = vmatpush1.bf16.msra.mxu0 %v681
    %825 = vmatprep.subr.bf16.mxu0 %v712
    %826 = vmatpush2.bf16.msra.mxu0 %v711
    %827 = vmatprep.subr.bf16.mxu0 %v710
    %828 = vmatpush2.bf16.msra.mxu0 %v709
    %829 = vmatprep.subr.bf16.mxu0 %v708
    %830 = vmatpush2.bf16.msra.mxu0 %v707
    %831 = vmatprep.subr.bf16.mxu0 %v706
    %832 = vmatpush2.bf16.msra.mxu0 %v705
    %833 = vmatprep.subr.bf16.mxu0 %v704
    %834 = vmatpush2.bf16.msra.mxu0 %v703
    %835 = vmatprep.subr.bf16.mxu0 %v702
    %836 = vmatpush2.bf16.msra.mxu0 %v701
    %837 = vmatprep.subr.bf16.mxu0 %v700
    %838 = vmatpush2.bf16.msra.mxu0 %v699
    %839 = vmatprep.subr.bf16.mxu0 %v698
    %840 = vmatpush2.bf16.msra.mxu0 %v697
    %841 = vmatprep.mubr.bf16.mxu0 %v298
    %842 = vmatmul.mubr.bf16.gmra.mxu0 %v297
    %v843 = vpop.f32.mrf.mxu0
    %v844 = vadd.f32 0.0, %v843
    %v845 = vpop.f32.mrf.mxu0
    %v846 = vadd.f32 0.0, %v845
    %v847 = vpop.f32.mrf.mxu0
    %v848 = vadd.f32 0.0, %v847
    %v849 = vpop.f32.mrf.mxu0
    %v850 = vadd.f32 0.0, %v849
    %851 = vmatprep.mubr.bf16.mxu0 %v302
    %852 = vmatmul.mubr.bf16.gmra.mxu0 %v301
    %v853 = vpop.f32.mrf.mxu0
    %v854 = vadd.f32 0.0, %v853
    %v855 = vpop.f32.mrf.mxu0
    %v856 = vadd.f32 0.0, %v855
    %v857 = vpop.f32.mrf.mxu0
    %v858 = vadd.f32 0.0, %v857
    %v859 = vpop.f32.mrf.mxu0
    %v860 = vadd.f32 0.0, %v859
    %861 = vmatprep.mubr.bf16.mxu0 %v306
    %862 = vmatmul.mubr.bf16.gmra.mxu0 %v305
    %v863 = vpop.f32.mrf.mxu0
    %v864 = vadd.f32 0.0, %v863
    %v865 = vpop.f32.mrf.mxu0
    %v866 = vadd.f32 0.0, %v865
    %v867 = vpop.f32.mrf.mxu0
    %v868 = vadd.f32 0.0, %v867
    %v869 = vpop.f32.mrf.mxu0
    %v870 = vadd.f32 0.0, %v869
    %871 = vmatprep.mubr.bf16.mxu0 %v310
    %872 = vmatmul.mubr.bf16.gmra.mxu0 %v309
    %v873 = vpop.f32.mrf.mxu0
    %v874 = vadd.f32 0.0, %v873
    %v875 = vpop.f32.mrf.mxu0
    %v876 = vadd.f32 0.0, %v875
    %v877 = vpop.f32.mrf.mxu0
    %v878 = vadd.f32 0.0, %v877
    %v879 = vpop.f32.mrf.mxu0
    %v880 = vadd.f32 0.0, %v879
    %881 = vmatprep.mubr.bf16.mxu0 %v314
    %882 = vmatmul.mubr.bf16.gmra.mxu0 %v313
    %v883 = vpop.f32.mrf.mxu0
    %v884 = vadd.f32 0.0, %v883
    %v885 = vpop.f32.mrf.mxu0
    %v886 = vadd.f32 0.0, %v885
    %v887 = vpop.f32.mrf.mxu0
    %v888 = vadd.f32 0.0, %v887
    %v889 = vpop.f32.mrf.mxu0
    %v890 = vadd.f32 0.0, %v889
    %891 = vmatprep.mubr.bf16.mxu0 %v318
    %892 = vmatmul.mubr.bf16.gmra.mxu0 %v317
    %v893 = vpop.f32.mrf.mxu0
    %v894 = vadd.f32 0.0, %v893
    %v895 = vpop.f32.mrf.mxu0
    %v896 = vadd.f32 0.0, %v895
    %v897 = vpop.f32.mrf.mxu0
    %v898 = vadd.f32 0.0, %v897
    %v899 = vpop.f32.mrf.mxu0
    %v900 = vadd.f32 0.0, %v899
    %901 = vmatprep.mubr.bf16.mxu0 %v322
    %902 = vmatmul.mubr.bf16.gmra.mxu0 %v321
    %v903 = vpop.f32.mrf.mxu0
    %v904 = vadd.f32 0.0, %v903
    %v905 = vpop.f32.mrf.mxu0
    %v906 = vadd.f32 0.0, %v905
    %v907 = vpop.f32.mrf.mxu0
    %v908 = vadd.f32 0.0, %v907
    %v909 = vpop.f32.mrf.mxu0
    %v910 = vadd.f32 0.0, %v909
    %911 = vmatprep.mubr.bf16.mxu0 %v326
    %912 = vmatmul.mubr.bf16.gmra.mxu0 %v325
    %v913 = vpop.f32.mrf.mxu0
    %v914 = vadd.f32 0.0, %v913
    %v915 = vpop.f32.mrf.mxu0
    %v916 = vadd.f32 0.0, %v915
    %v917 = vpop.f32.mrf.mxu0
    %v918 = vadd.f32 0.0, %v917
    %v919 = vpop.f32.mrf.mxu0
    %v920 = vadd.f32 0.0, %v919
    %921 = vmatprep.mubr.bf16.mxu0 %v330
    %922 = vmatmul.mubr.bf16.gmra.mxu0 %v329
    %v923 = vpop.f32.mrf.mxu0
    %v924 = vadd.f32 0.0, %v923
    %v925 = vpop.f32.mrf.mxu0
    %v926 = vadd.f32 0.0, %v925
    %v927 = vpop.f32.mrf.mxu0
    %v928 = vadd.f32 0.0, %v927
    %v929 = vpop.f32.mrf.mxu0
    %v930 = vadd.f32 0.0, %v929
    %931 = vmatprep.mubr.bf16.mxu0 %v334
    %932 = vmatmul.mubr.bf16.gmra.mxu0 %v333
    %v933 = vpop.f32.mrf.mxu0
    %v934 = vadd.f32 0.0, %v933
    %v935 = vpop.f32.mrf.mxu0
    %v936 = vadd.f32 0.0, %v935
    %v937 = vpop.f32.mrf.mxu0
    %v938 = vadd.f32 0.0, %v937
    %v939 = vpop.f32.mrf.mxu0
    %v940 = vadd.f32 0.0, %v939
    %941 = vmatprep.mubr.bf16.mxu0 %v338
    %942 = vmatmul.mubr.bf16.gmra.mxu0 %v337
    %v943 = vpop.f32.mrf.mxu0
    %v944 = vadd.f32 0.0, %v943
    %v945 = vpop.f32.mrf.mxu0
    %v946 = vadd.f32 0.0, %v945
    %v947 = vpop.f32.mrf.mxu0
    %v948 = vadd.f32 0.0, %v947
    %v949 = vpop.f32.mrf.mxu0
    %v950 = vadd.f32 0.0, %v949
    %951 = vmatprep.mubr.bf16.mxu0 %v342
    %952 = vmatmul.mubr.bf16.gmra.mxu0 %v341
    %v953 = vpop.f32.mrf.mxu0
    %v954 = vadd.f32 0.0, %v953
    %v955 = vpop.f32.mrf.mxu0
    %v956 = vadd.f32 0.0, %v955
    %v957 = vpop.f32.mrf.mxu0
    %v958 = vadd.f32 0.0, %v957
    %v959 = vpop.f32.mrf.mxu0
    %v960 = vadd.f32 0.0, %v959
    %961 = vmatprep.mubr.bf16.mxu0 %v346
    %962 = vmatmul.mubr.bf16.gmra.mxu0 %v345
    %v963 = vpop.f32.mrf.mxu0
    %v964 = vadd.f32 0.0, %v963
    %v965 = vpop.f32.mrf.mxu0
    %v966 = vadd.f32 0.0, %v965
    %v967 = vpop.f32.mrf.mxu0
    %v968 = vadd.f32 0.0, %v967
    %v969 = vpop.f32.mrf.mxu0
    %v970 = vadd.f32 0.0, %v969
    %971 = vmatprep.mubr.bf16.mxu0 %v350
    %972 = vmatmul.mubr.bf16.gmra.mxu0 %v349
    %v973 = vpop.f32.mrf.mxu0
    %v974 = vadd.f32 0.0, %v973
    %v975 = vpop.f32.mrf.mxu0
    %v976 = vadd.f32 0.0, %v975
    %v977 = vpop.f32.mrf.mxu0
    %v978 = vadd.f32 0.0, %v977
    %v979 = vpop.f32.mrf.mxu0
    %v980 = vadd.f32 0.0, %v979
    %981 = vmatprep.mubr.bf16.mxu0 %v354
    %982 = vmatmul.mubr.bf16.gmra.mxu0 %v353
    %v983 = vpop.f32.mrf.mxu0
    %v984 = vadd.f32 0.0, %v983
    %v985 = vpop.f32.mrf.mxu0
    %v986 = vadd.f32 0.0, %v985
    %v987 = vpop.f32.mrf.mxu0
    %v988 = vadd.f32 0.0, %v987
    %v989 = vpop.f32.mrf.mxu0
    %v990 = vadd.f32 0.0, %v989
    %991 = vmatprep.mubr.bf16.mxu0 %v358
    %992 = vmatmul.mubr.bf16.gmra.mxu0 %v357
    %v993 = vpop.f32.mrf.mxu0
    %v994 = vadd.f32 0.0, %v993
    %v995 = vpop.f32.mrf.mxu0
    %v996 = vadd.f32 0.0, %v995
    %v997 = vpop.f32.mrf.mxu0
    %v998 = vadd.f32 0.0, %v997
    %v999 = vpop.f32.mrf.mxu0
    %v1000 = vadd.f32 0.0, %v999
    %1001 = vmatprep.mubr.bf16.mxu0 %v362
    %1002 = vmatmul.mubr.bf16.gmra.mxu0 %v361
    %v1003 = vpop.f32.mrf.mxu0
    %v1004 = vadd.f32 0.0, %v1003
    %v1005 = vpop.f32.mrf.mxu0
    %v1006 = vadd.f32 0.0, %v1005
    %v1007 = vpop.f32.mrf.mxu0
    %v1008 = vadd.f32 0.0, %v1007
    %v1009 = vpop.f32.mrf.mxu0
    %v1010 = vadd.f32 0.0, %v1009
    %1011 = vmatprep.mubr.bf16.mxu0 %v366
    %1012 = vmatmul.mubr.bf16.gmra.mxu0 %v365
    %v1013 = vpop.f32.mrf.mxu0
    %v1014 = vadd.f32 0.0, %v1013
    %v1015 = vpop.f32.mrf.mxu0
    %v1016 = vadd.f32 0.0, %v1015
    %v1017 = vpop.f32.mrf.mxu0
    %v1018 = vadd.f32 0.0, %v1017
    %v1019 = vpop.f32.mrf.mxu0
    %v1020 = vadd.f32 0.0, %v1019
    %1021 = vmatprep.mubr.bf16.mxu0 %v370
    %1022 = vmatmul.mubr.bf16.gmra.mxu0 %v369
    %v1023 = vpop.f32.mrf.mxu0
    %v1024 = vadd.f32 0.0, %v1023
    %v1025 = vpop.f32.mrf.mxu0
    %v1026 = vadd.f32 0.0, %v1025
    %v1027 = vpop.f32.mrf.mxu0
    %v1028 = vadd.f32 0.0, %v1027
    %v1029 = vpop.f32.mrf.mxu0
    %v1030 = vadd.f32 0.0, %v1029
    %1031 = vmatprep.mubr.bf16.mxu0 %v374
    %1032 = vmatmul.mubr.bf16.gmra.mxu0 %v373
    %v1033 = vpop.f32.mrf.mxu0
    %v1034 = vadd.f32 0.0, %v1033
    %v1035 = vpop.f32.mrf.mxu0
    %v1036 = vadd.f32 0.0, %v1035
    %v1037 = vpop.f32.mrf.mxu0
    %v1038 = vadd.f32 0.0, %v1037
    %v1039 = vpop.f32.mrf.mxu0
    %v1040 = vadd.f32 0.0, %v1039
    %1041 = vmatprep.mubr.bf16.mxu0 %v378
    %1042 = vmatmul.mubr.bf16.gmra.mxu0 %v377
    %v1043 = vpop.f32.mrf.mxu0
    %v1044 = vadd.f32 0.0, %v1043
    %v1045 = vpop.f32.mrf.mxu0
    %v1046 = vadd.f32 0.0, %v1045
    %v1047 = vpop.f32.mrf.mxu0
    %v1048 = vadd.f32 0.0, %v1047
    %v1049 = vpop.f32.mrf.mxu0
    %v1050 = vadd.f32 0.0, %v1049
    %1051 = vmatprep.mubr.bf16.mxu0 %v382
    %1052 = vmatmul.mubr.bf16.gmra.mxu0 %v381
    %v1053 = vpop.f32.mrf.mxu0
    %v1054 = vadd.f32 0.0, %v1053
    %v1055 = vpop.f32.mrf.mxu0
    %v1056 = vadd.f32 0.0, %v1055
    %v1057 = vpop.f32.mrf.mxu0
    %v1058 = vadd.f32 0.0, %v1057
    %v1059 = vpop.f32.mrf.mxu0
    %v1060 = vadd.f32 0.0, %v1059
    %1061 = vmatprep.mubr.bf16.mxu0 %v386
    %1062 = vmatmul.mubr.bf16.gmra.mxu0 %v385
    %v1063 = vpop.f32.mrf.mxu0
    %v1064 = vadd.f32 0.0, %v1063
    %v1065 = vpop.f32.mrf.mxu0
    %v1066 = vadd.f32 0.0, %v1065
    %v1067 = vpop.f32.mrf.mxu0
    %v1068 = vadd.f32 0.0, %v1067
    %v1069 = vpop.f32.mrf.mxu0
    %v1070 = vadd.f32 0.0, %v1069
    %1071 = vmatprep.mubr.bf16.mxu0 %v390
    %1072 = vmatmul.mubr.bf16.gmra.mxu0 %v389
    %v1073 = vpop.f32.mrf.mxu0
    %v1074 = vadd.f32 0.0, %v1073
    %v1075 = vpop.f32.mrf.mxu0
    %v1076 = vadd.f32 0.0, %v1075
    %v1077 = vpop.f32.mrf.mxu0
    %v1078 = vadd.f32 0.0, %v1077
    %v1079 = vpop.f32.mrf.mxu0
    %v1080 = vadd.f32 0.0, %v1079
    %1081 = vmatprep.mubr.bf16.mxu0 %v394
    %1082 = vmatmul.mubr.bf16.gmra.mxu0 %v393
    %v1083 = vpop.f32.mrf.mxu0
    %v1084 = vadd.f32 0.0, %v1083
    %v1085 = vpop.f32.mrf.mxu0
    %v1086 = vadd.f32 0.0, %v1085
    %v1087 = vpop.f32.mrf.mxu0
    %v1088 = vadd.f32 0.0, %v1087
    %v1089 = vpop.f32.mrf.mxu0
    %v1090 = vadd.f32 0.0, %v1089
    %1091 = vmatprep.mubr.bf16.mxu0 %v398
    %1092 = vmatmul.mubr.bf16.gmra.mxu0 %v397
    %v1093 = vpop.f32.mrf.mxu0
    %v1094 = vadd.f32 0.0, %v1093
    %v1095 = vpop.f32.mrf.mxu0
    %v1096 = vadd.f32 0.0, %v1095
    %v1097 = vpop.f32.mrf.mxu0
    %v1098 = vadd.f32 0.0, %v1097
    %v1099 = vpop.f32.mrf.mxu0
    %v1100 = vadd.f32 0.0, %v1099
    %1101 = vmatprep.mubr.bf16.mxu0 %v402
    %1102 = vmatmul.mubr.bf16.gmra.mxu0 %v401
    %v1103 = vpop.f32.mrf.mxu0
    %v1104 = vadd.f32 0.0, %v1103
    %v1105 = vpop.f32.mrf.mxu0
    %v1106 = vadd.f32 0.0, %v1105
    %v1107 = vpop.f32.mrf.mxu0
    %v1108 = vadd.f32 0.0, %v1107
    %v1109 = vpop.f32.mrf.mxu0
    %v1110 = vadd.f32 0.0, %v1109
    %1111 = vmatprep.mubr.bf16.mxu0 %v406
    %1112 = vmatmul.mubr.bf16.gmra.mxu0 %v405
    %v1113 = vpop.f32.mrf.mxu0
    %v1114 = vadd.f32 0.0, %v1113
    %v1115 = vpop.f32.mrf.mxu0
    %v1116 = vadd.f32 0.0, %v1115
    %v1117 = vpop.f32.mrf.mxu0
    %v1118 = vadd.f32 0.0, %v1117
    %v1119 = vpop.f32.mrf.mxu0
    %v1120 = vadd.f32 0.0, %v1119
    %1121 = vmatprep.mubr.bf16.mxu0 %v410
    %1122 = vmatmul.mubr.bf16.gmra.mxu0 %v409
    %v1123 = vpop.f32.mrf.mxu0
    %v1124 = vadd.f32 0.0, %v1123
    %v1125 = vpop.f32.mrf.mxu0
    %v1126 = vadd.f32 0.0, %v1125
    %v1127 = vpop.f32.mrf.mxu0
    %v1128 = vadd.f32 0.0, %v1127
    %v1129 = vpop.f32.mrf.mxu0
    %v1130 = vadd.f32 0.0, %v1129
    %1131 = vmatprep.mubr.bf16.mxu0 %v414
    %1132 = vmatmul.mubr.bf16.gmra.mxu0 %v413
    %v1133 = vpop.f32.mrf.mxu0
    %v1134 = vadd.f32 0.0, %v1133
    %v1135 = vpop.f32.mrf.mxu0
    %v1136 = vadd.f32 0.0, %v1135
    %v1137 = vpop.f32.mrf.mxu0
    %v1138 = vadd.f32 0.0, %v1137
    %v1139 = vpop.f32.mrf.mxu0
    %v1140 = vadd.f32 0.0, %v1139
    %1141 = vmatprep.mubr.bf16.mxu0 %v418
    %1142 = vmatmul.mubr.bf16.gmra.mxu0 %v417
    %v1143 = vpop.f32.mrf.mxu0
    %v1144 = vadd.f32 0.0, %v1143
    %v1145 = vpop.f32.mrf.mxu0
    %v1146 = vadd.f32 0.0, %v1145
    %v1147 = vpop.f32.mrf.mxu0
    %v1148 = vadd.f32 0.0, %v1147
    %v1149 = vpop.f32.mrf.mxu0
    %v1150 = vadd.f32 0.0, %v1149
    %1151 = vmatprep.mubr.bf16.mxu0 %v422
    %1152 = vmatmul.mubr.bf16.gmra.mxu0 %v421
    %v1153 = vpop.f32.mrf.mxu0
    %v1154 = vadd.f32 0.0, %v1153
    %v1155 = vpop.f32.mrf.mxu0
    %v1156 = vadd.f32 0.0, %v1155
    %v1157 = vpop.f32.mrf.mxu0
    %v1158 = vadd.f32 0.0, %v1157
    %v1159 = vpop.f32.mrf.mxu0
    %v1160 = vadd.f32 0.0, %v1159
    %1161 = vdwg.mxu0
    %1162 = vmatprep.subr.bf16.mxu0 %v728
    %1163 = vmatpush1.bf16.msra.mxu0 %v727
    %1164 = vmatprep.subr.bf16.mxu0 %v726
    %1165 = vmatpush1.bf16.msra.mxu0 %v725
    %1166 = vmatprep.subr.bf16.mxu0 %v724
    %1167 = vmatpush1.bf16.msra.mxu0 %v723
    %1168 = vmatprep.subr.bf16.mxu0 %v722
    %1169 = vmatpush1.bf16.msra.mxu0 %v721
    %1170 = vmatprep.subr.bf16.mxu0 %v720
    %1171 = vmatpush1.bf16.msra.mxu0 %v719
    %1172 = vmatprep.subr.bf16.mxu0 %v718
    %1173 = vmatpush1.bf16.msra.mxu0 %v717
    %1174 = vmatprep.subr.bf16.mxu0 %v716
    %1175 = vmatpush1.bf16.msra.mxu0 %v715
    %1176 = vmatprep.subr.bf16.mxu0 %v714
    %1177 = vmatpush1.bf16.msra.mxu0 %v713
    %1178 = vmatprep.subr.bf16.mxu0 %v744
    %1179 = vmatpush2.bf16.msra.mxu0 %v743
    %1180 = vmatprep.subr.bf16.mxu0 %v742
    %1181 = vmatpush2.bf16.msra.mxu0 %v741
    %1182 = vmatprep.subr.bf16.mxu0 %v740
    %1183 = vmatpush2.bf16.msra.mxu0 %v739
    %1184 = vmatprep.subr.bf16.mxu0 %v738
    %1185 = vmatpush2.bf16.msra.mxu0 %v737
    %1186 = vmatprep.subr.bf16.mxu0 %v736
    %1187 = vmatpush2.bf16.msra.mxu0 %v735
    %1188 = vmatprep.subr.bf16.mxu0 %v734
    %1189 = vmatpush2.bf16.msra.mxu0 %v733
    %1190 = vmatprep.subr.bf16.mxu0 %v732
    %1191 = vmatpush2.bf16.msra.mxu0 %v731
    %1192 = vmatprep.subr.bf16.mxu0 %v730
    %1193 = vmatpush2.bf16.msra.mxu0 %v729
    %1194 = vmatprep.mubr.bf16.mxu0 %v300
    %1195 = vmatmul.mubr.bf16.gmra.mxu0 %v299
    %v1196 = vpop.f32.mrf.mxu0
    %v1197 = vadd.f32 %v844, %v1196
    %v1198 = vpop.f32.mrf.mxu0
    %v1199 = vadd.f32 %v846, %v1198
    %v1200 = vpop.f32.mrf.mxu0
    %v1201 = vadd.f32 %v848, %v1200
    %v1202 = vpop.f32.mrf.mxu0
    %v1203 = vadd.f32 %v850, %v1202
    %1204 = vmatprep.mubr.bf16.mxu0 %v304
    %1205 = vmatmul.mubr.bf16.gmra.mxu0 %v303
    %v1206 = vpop.f32.mrf.mxu0
    %v1207 = vadd.f32 %v854, %v1206
    %v1208 = vpop.f32.mrf.mxu0
    %v1209 = vadd.f32 %v856, %v1208
    %v1210 = vpop.f32.mrf.mxu0
    %v1211 = vadd.f32 %v858, %v1210
    %v1212 = vpop.f32.mrf.mxu0
    %v1213 = vadd.f32 %v860, %v1212
    %1214 = vmatprep.mubr.bf16.mxu0 %v308
    %1215 = vmatmul.mubr.bf16.gmra.mxu0 %v307
    %v1216 = vpop.f32.mrf.mxu0
    %v1217 = vadd.f32 %v864, %v1216
    %v1218 = vpop.f32.mrf.mxu0
    %v1219 = vadd.f32 %v866, %v1218
    %v1220 = vpop.f32.mrf.mxu0
    %v1221 = vadd.f32 %v868, %v1220
    %v1222 = vpop.f32.mrf.mxu0
    %v1223 = vadd.f32 %v870, %v1222
    %1224 = vmatprep.mubr.bf16.mxu0 %v312
    %1225 = vmatmul.mubr.bf16.gmra.mxu0 %v311
    %v1226 = vpop.f32.mrf.mxu0
    %v1227 = vadd.f32 %v874, %v1226
    %v1228 = vpop.f32.mrf.mxu0
    %v1229 = vadd.f32 %v876, %v1228
    %v1230 = vpop.f32.mrf.mxu0
    %v1231 = vadd.f32 %v878, %v1230
    %v1232 = vpop.f32.mrf.mxu0
    %v1233 = vadd.f32 %v880, %v1232
    %1234 = vmatprep.mubr.bf16.mxu0 %v316
    %1235 = vmatmul.mubr.bf16.gmra.mxu0 %v315
    %v1236 = vpop.f32.mrf.mxu0
    %v1237 = vadd.f32 %v884, %v1236
    %v1238 = vpop.f32.mrf.mxu0
    %v1239 = vadd.f32 %v886, %v1238
    %v1240 = vpop.f32.mrf.mxu0
    %v1241 = vadd.f32 %v888, %v1240
    %v1242 = vpop.f32.mrf.mxu0
    %v1243 = vadd.f32 %v890, %v1242
    %1244 = vmatprep.mubr.bf16.mxu0 %v320
    %1245 = vmatmul.mubr.bf16.gmra.mxu0 %v319
    %v1246 = vpop.f32.mrf.mxu0
    %v1247 = vadd.f32 %v894, %v1246
    %v1248 = vpop.f32.mrf.mxu0
    %v1249 = vadd.f32 %v896, %v1248
    %v1250 = vpop.f32.mrf.mxu0
    %v1251 = vadd.f32 %v898, %v1250
    %v1252 = vpop.f32.mrf.mxu0
    %v1253 = vadd.f32 %v900, %v1252
    %1254 = vmatprep.mubr.bf16.mxu0 %v324
    %1255 = vmatmul.mubr.bf16.gmra.mxu0 %v323
    %v1256 = vpop.f32.mrf.mxu0
    %v1257 = vadd.f32 %v904, %v1256
    %v1258 = vpop.f32.mrf.mxu0
    %v1259 = vadd.f32 %v906, %v1258
    %v1260 = vpop.f32.mrf.mxu0
    %v1261 = vadd.f32 %v908, %v1260
    %v1262 = vpop.f32.mrf.mxu0
    %v1263 = vadd.f32 %v910, %v1262
    %1264 = vmatprep.mubr.bf16.mxu0 %v328
    %1265 = vmatmul.mubr.bf16.gmra.mxu0 %v327
    %v1266 = vpop.f32.mrf.mxu0
    %v1267 = vadd.f32 %v914, %v1266
    %v1268 = vpop.f32.mrf.mxu0
    %v1269 = vadd.f32 %v916, %v1268
    %v1270 = vpop.f32.mrf.mxu0
    %v1271 = vadd.f32 %v918, %v1270
    %v1272 = vpop.f32.mrf.mxu0
    %v1273 = vadd.f32 %v920, %v1272
    %1274 = vmatprep.mubr.bf16.mxu0 %v332
    %1275 = vmatmul.mubr.bf16.gmra.mxu0 %v331
    %v1276 = vpop.f32.mrf.mxu0
    %v1277 = vadd.f32 %v924, %v1276
    %v1278 = vpop.f32.mrf.mxu0
    %v1279 = vadd.f32 %v926, %v1278
    %v1280 = vpop.f32.mrf.mxu0
    %v1281 = vadd.f32 %v928, %v1280
    %v1282 = vpop.f32.mrf.mxu0
    %v1283 = vadd.f32 %v930, %v1282
    %1284 = vmatprep.mubr.bf16.mxu0 %v336
    %1285 = vmatmul.mubr.bf16.gmra.mxu0 %v335
    %v1286 = vpop.f32.mrf.mxu0
    %v1287 = vadd.f32 %v934, %v1286
    %v1288 = vpop.f32.mrf.mxu0
    %v1289 = vadd.f32 %v936, %v1288
    %v1290 = vpop.f32.mrf.mxu0
    %v1291 = vadd.f32 %v938, %v1290
    %v1292 = vpop.f32.mrf.mxu0
    %v1293 = vadd.f32 %v940, %v1292
    %1294 = vmatprep.mubr.bf16.mxu0 %v340
    %1295 = vmatmul.mubr.bf16.gmra.mxu0 %v339
    %v1296 = vpop.f32.mrf.mxu0
    %v1297 = vadd.f32 %v944, %v1296
    %v1298 = vpop.f32.mrf.mxu0
    %v1299 = vadd.f32 %v946, %v1298
    %v1300 = vpop.f32.mrf.mxu0
    %v1301 = vadd.f32 %v948, %v1300
    %v1302 = vpop.f32.mrf.mxu0
    %v1303 = vadd.f32 %v950, %v1302
    %1304 = vmatprep.mubr.bf16.mxu0 %v344
    %1305 = vmatmul.mubr.bf16.gmra.mxu0 %v343
    %v1306 = vpop.f32.mrf.mxu0
    %v1307 = vadd.f32 %v954, %v1306
    %v1308 = vpop.f32.mrf.mxu0
    %v1309 = vadd.f32 %v956, %v1308
    %v1310 = vpop.f32.mrf.mxu0
    %v1311 = vadd.f32 %v958, %v1310
    %v1312 = vpop.f32.mrf.mxu0
    %v1313 = vadd.f32 %v960, %v1312
    %1314 = vmatprep.mubr.bf16.mxu0 %v348
    %1315 = vmatmul.mubr.bf16.gmra.mxu0 %v347
    %v1316 = vpop.f32.mrf.mxu0
    %v1317 = vadd.f32 %v964, %v1316
    %v1318 = vpop.f32.mrf.mxu0
    %v1319 = vadd.f32 %v966, %v1318
    %v1320 = vpop.f32.mrf.mxu0
    %v1321 = vadd.f32 %v968, %v1320
    %v1322 = vpop.f32.mrf.mxu0
    %v1323 = vadd.f32 %v970, %v1322
    %1324 = vmatprep.mubr.bf16.mxu0 %v352
    %1325 = vmatmul.mubr.bf16.gmra.mxu0 %v351
    %v1326 = vpop.f32.mrf.mxu0
    %v1327 = vadd.f32 %v974, %v1326
    %v1328 = vpop.f32.mrf.mxu0
    %v1329 = vadd.f32 %v976, %v1328
    %v1330 = vpop.f32.mrf.mxu0
    %v1331 = vadd.f32 %v978, %v1330
    %v1332 = vpop.f32.mrf.mxu0
    %v1333 = vadd.f32 %v980, %v1332
    %1334 = vmatprep.mubr.bf16.mxu0 %v356
    %1335 = vmatmul.mubr.bf16.gmra.mxu0 %v355
    %v1336 = vpop.f32.mrf.mxu0
    %v1337 = vadd.f32 %v984, %v1336
    %v1338 = vpop.f32.mrf.mxu0
    %v1339 = vadd.f32 %v986, %v1338
    %v1340 = vpop.f32.mrf.mxu0
    %v1341 = vadd.f32 %v988, %v1340
    %v1342 = vpop.f32.mrf.mxu0
    %v1343 = vadd.f32 %v990, %v1342
    %1344 = vmatprep.mubr.bf16.mxu0 %v360
    %1345 = vmatmul.mubr.bf16.gmra.mxu0 %v359
    %v1346 = vpop.f32.mrf.mxu0
    %v1347 = vadd.f32 %v994, %v1346
    %v1348 = vpop.f32.mrf.mxu0
    %v1349 = vadd.f32 %v996, %v1348
    %v1350 = vpop.f32.mrf.mxu0
    %v1351 = vadd.f32 %v998, %v1350
    %v1352 = vpop.f32.mrf.mxu0
    %v1353 = vadd.f32 %v1000, %v1352
    %1354 = vmatprep.mubr.bf16.mxu0 %v364
    %1355 = vmatmul.mubr.bf16.gmra.mxu0 %v363
    %v1356 = vpop.f32.mrf.mxu0
    %v1357 = vadd.f32 %v1004, %v1356
    %v1358 = vpop.f32.mrf.mxu0
    %v1359 = vadd.f32 %v1006, %v1358
    %v1360 = vpop.f32.mrf.mxu0
    %v1361 = vadd.f32 %v1008, %v1360
    %v1362 = vpop.f32.mrf.mxu0
    %v1363 = vadd.f32 %v1010, %v1362
    %1364 = vmatprep.mubr.bf16.mxu0 %v368
    %1365 = vmatmul.mubr.bf16.gmra.mxu0 %v367
    %v1366 = vpop.f32.mrf.mxu0
    %v1367 = vadd.f32 %v1014, %v1366
    %v1368 = vpop.f32.mrf.mxu0
    %v1369 = vadd.f32 %v1016, %v1368
    %v1370 = vpop.f32.mrf.mxu0
    %v1371 = vadd.f32 %v1018, %v1370
    %v1372 = vpop.f32.mrf.mxu0
    %v1373 = vadd.f32 %v1020, %v1372
    %1374 = vmatprep.mubr.bf16.mxu0 %v372
    %1375 = vmatmul.mubr.bf16.gmra.mxu0 %v371
    %v1376 = vpop.f32.mrf.mxu0
    %v1377 = vadd.f32 %v1024, %v1376
    %v1378 = vpop.f32.mrf.mxu0
    %v1379 = vadd.f32 %v1026, %v1378
    %v1380 = vpop.f32.mrf.mxu0
    %v1381 = vadd.f32 %v1028, %v1380
    %v1382 = vpop.f32.mrf.mxu0
    %v1383 = vadd.f32 %v1030, %v1382
    %1384 = vmatprep.mubr.bf16.mxu0 %v376
    %1385 = vmatmul.mubr.bf16.gmra.mxu0 %v375
    %v1386 = vpop.f32.mrf.mxu0
    %v1387 = vadd.f32 %v1034, %v1386
    %v1388 = vpop.f32.mrf.mxu0
    %v1389 = vadd.f32 %v1036, %v1388
    %v1390 = vpop.f32.mrf.mxu0
    %v1391 = vadd.f32 %v1038, %v1390
    %v1392 = vpop.f32.mrf.mxu0
    %v1393 = vadd.f32 %v1040, %v1392
    %1394 = vmatprep.mubr.bf16.mxu0 %v380
    %1395 = vmatmul.mubr.bf16.gmra.mxu0 %v379
    %v1396 = vpop.f32.mrf.mxu0
    %v1397 = vadd.f32 %v1044, %v1396
    %v1398 = vpop.f32.mrf.mxu0
    %v1399 = vadd.f32 %v1046, %v1398
    %v1400 = vpop.f32.mrf.mxu0
    %v1401 = vadd.f32 %v1048, %v1400
    %v1402 = vpop.f32.mrf.mxu0
    %v1403 = vadd.f32 %v1050, %v1402
    %1404 = vmatprep.mubr.bf16.mxu0 %v384
    %1405 = vmatmul.mubr.bf16.gmra.mxu0 %v383
    %v1406 = vpop.f32.mrf.mxu0
    %v1407 = vadd.f32 %v1054, %v1406
    %v1408 = vpop.f32.mrf.mxu0
    %v1409 = vadd.f32 %v1056, %v1408
    %v1410 = vpop.f32.mrf.mxu0
    %v1411 = vadd.f32 %v1058, %v1410
    %v1412 = vpop.f32.mrf.mxu0
    %v1413 = vadd.f32 %v1060, %v1412
    %1414 = vmatprep.mubr.bf16.mxu0 %v388
    %1415 = vmatmul.mubr.bf16.gmra.mxu0 %v387
    %v1416 = vpop.f32.mrf.mxu0
    %v1417 = vadd.f32 %v1064, %v1416
    %v1418 = vpop.f32.mrf.mxu0
    %v1419 = vadd.f32 %v1066, %v1418
    %v1420 = vpop.f32.mrf.mxu0
    %v1421 = vadd.f32 %v1068, %v1420
    %v1422 = vpop.f32.mrf.mxu0
    %v1423 = vadd.f32 %v1070, %v1422
    %1424 = vmatprep.mubr.bf16.mxu0 %v392
    %1425 = vmatmul.mubr.bf16.gmra.mxu0 %v391
    %v1426 = vpop.f32.mrf.mxu0
    %v1427 = vadd.f32 %v1074, %v1426
    %v1428 = vpop.f32.mrf.mxu0
    %v1429 = vadd.f32 %v1076, %v1428
    %v1430 = vpop.f32.mrf.mxu0
    %v1431 = vadd.f32 %v1078, %v1430
    %v1432 = vpop.f32.mrf.mxu0
    %v1433 = vadd.f32 %v1080, %v1432
    %1434 = vmatprep.mubr.bf16.mxu0 %v396
    %1435 = vmatmul.mubr.bf16.gmra.mxu0 %v395
    %v1436 = vpop.f32.mrf.mxu0
    %v1437 = vadd.f32 %v1084, %v1436
    %v1438 = vpop.f32.mrf.mxu0
    %v1439 = vadd.f32 %v1086, %v1438
    %v1440 = vpop.f32.mrf.mxu0
    %v1441 = vadd.f32 %v1088, %v1440
    %v1442 = vpop.f32.mrf.mxu0
    %v1443 = vadd.f32 %v1090, %v1442
    %1444 = vmatprep.mubr.bf16.mxu0 %v400
    %1445 = vmatmul.mubr.bf16.gmra.mxu0 %v399
    %v1446 = vpop.f32.mrf.mxu0
    %v1447 = vadd.f32 %v1094, %v1446
    %v1448 = vpop.f32.mrf.mxu0
    %v1449 = vadd.f32 %v1096, %v1448
    %v1450 = vpop.f32.mrf.mxu0
    %v1451 = vadd.f32 %v1098, %v1450
    %v1452 = vpop.f32.mrf.mxu0
    %v1453 = vadd.f32 %v1100, %v1452
    %1454 = vmatprep.mubr.bf16.mxu0 %v404
    %1455 = vmatmul.mubr.bf16.gmra.mxu0 %v403
    %v1456 = vpop.f32.mrf.mxu0
    %v1457 = vadd.f32 %v1104, %v1456
    %v1458 = vpop.f32.mrf.mxu0
    %v1459 = vadd.f32 %v1106, %v1458
    %v1460 = vpop.f32.mrf.mxu0
    %v1461 = vadd.f32 %v1108, %v1460
    %v1462 = vpop.f32.mrf.mxu0
    %v1463 = vadd.f32 %v1110, %v1462
    %1464 = vmatprep.mubr.bf16.mxu0 %v408
    %1465 = vmatmul.mubr.bf16.gmra.mxu0 %v407
    %v1466 = vpop.f32.mrf.mxu0
    %v1467 = vadd.f32 %v1114, %v1466
    %v1468 = vpop.f32.mrf.mxu0
    %v1469 = vadd.f32 %v1116, %v1468
    %v1470 = vpop.f32.mrf.mxu0
    %v1471 = vadd.f32 %v1118, %v1470
    %v1472 = vpop.f32.mrf.mxu0
    %v1473 = vadd.f32 %v1120, %v1472
    %1474 = vmatprep.mubr.bf16.mxu0 %v412
    %1475 = vmatmul.mubr.bf16.gmra.mxu0 %v411
    %v1476 = vpop.f32.mrf.mxu0
    %v1477 = vadd.f32 %v1124, %v1476
    %v1478 = vpop.f32.mrf.mxu0
    %v1479 = vadd.f32 %v1126, %v1478
    %v1480 = vpop.f32.mrf.mxu0
    %v1481 = vadd.f32 %v1128, %v1480
    %v1482 = vpop.f32.mrf.mxu0
    %v1483 = vadd.f32 %v1130, %v1482
    %1484 = vmatprep.mubr.bf16.mxu0 %v416
    %1485 = vmatmul.mubr.bf16.gmra.mxu0 %v415
    %v1486 = vpop.f32.mrf.mxu0
    %v1487 = vadd.f32 %v1134, %v1486
    %v1488 = vpop.f32.mrf.mxu0
    %v1489 = vadd.f32 %v1136, %v1488
    %v1490 = vpop.f32.mrf.mxu0
    %v1491 = vadd.f32 %v1138, %v1490
    %v1492 = vpop.f32.mrf.mxu0
    %v1493 = vadd.f32 %v1140, %v1492
    %1494 = vmatprep.mubr.bf16.mxu0 %v420
    %1495 = vmatmul.mubr.bf16.gmra.mxu0 %v419
    %v1496 = vpop.f32.mrf.mxu0
    %v1497 = vadd.f32 %v1144, %v1496
    %v1498 = vpop.f32.mrf.mxu0
    %v1499 = vadd.f32 %v1146, %v1498
    %v1500 = vpop.f32.mrf.mxu0
    %v1501 = vadd.f32 %v1148, %v1500
    %v1502 = vpop.f32.mrf.mxu0
    %v1503 = vadd.f32 %v1150, %v1502
    %1504 = vmatprep.mubr.bf16.mxu0 %v424
    %1505 = vmatmul.mubr.bf16.gmra.mxu0 %v423
    %v1506 = vpop.f32.mrf.mxu0
    %v1507 = vadd.f32 %v1154, %v1506
    %v1508 = vpop.f32.mrf.mxu0
    %v1509 = vadd.f32 %v1156, %v1508
    %v1510 = vpop.f32.mrf.mxu0
    %v1511 = vadd.f32 %v1158, %v1510
    %v1512 = vpop.f32.mrf.mxu0
    %v1513 = vadd.f32 %v1160, %v1512
    %1514 = vdwg.mxu0
    %v1515 = vpack.c.bf16 %v1201, %v1197
    %v1516 = vpack.c.bf16 %v1203, %v1199
    %v1517 = vpack.c.bf16 %v1211, %v1207
    %v1518 = vpack.c.bf16 %v1213, %v1209
    %v1519 = vpack.c.bf16 %v1221, %v1217
    %v1520 = vpack.c.bf16 %v1223, %v1219
    %v1521 = vpack.c.bf16 %v1231, %v1227
    %v1522 = vpack.c.bf16 %v1233, %v1229
    %v1523 = vpack.c.bf16 %v1241, %v1237
    %v1524 = vpack.c.bf16 %v1243, %v1239
    %v1525 = vpack.c.bf16 %v1251, %v1247
    %v1526 = vpack.c.bf16 %v1253, %v1249
    %v1527 = vpack.c.bf16 %v1261, %v1257
    %v1528 = vpack.c.bf16 %v1263, %v1259
    %v1529 = vpack.c.bf16 %v1271, %v1267
    %v1530 = vpack.c.bf16 %v1273, %v1269
    %v1531 = vpack.c.bf16 %v1281, %v1277
    %v1532 = vpack.c.bf16 %v1283, %v1279
    %v1533 = vpack.c.bf16 %v1291, %v1287
    %v1534 = vpack.c.bf16 %v1293, %v1289
    %v1535 = vpack.c.bf16 %v1301, %v1297
    %v1536 = vpack.c.bf16 %v1303, %v1299
    %v1537 = vpack.c.bf16 %v1311, %v1307
    %v1538 = vpack.c.bf16 %v1313, %v1309
    %v1539 = vpack.c.bf16 %v1321, %v1317
    %v1540 = vpack.c.bf16 %v1323, %v1319
    %v1541 = vpack.c.bf16 %v1331, %v1327
    %v1542 = vpack.c.bf16 %v1333, %v1329
    %v1543 = vpack.c.bf16 %v1341, %v1337
    %v1544 = vpack.c.bf16 %v1343, %v1339
    %v1545 = vpack.c.bf16 %v1351, %v1347
    %v1546 = vpack.c.bf16 %v1353, %v1349
    %v1547 = vpack.c.bf16 %v1361, %v1357
    %v1548 = vpack.c.bf16 %v1363, %v1359
    %v1549 = vpack.c.bf16 %v1371, %v1367
    %v1550 = vpack.c.bf16 %v1373, %v1369
    %v1551 = vpack.c.bf16 %v1381, %v1377
    %v1552 = vpack.c.bf16 %v1383, %v1379
    %v1553 = vpack.c.bf16 %v1391, %v1387
    %v1554 = vpack.c.bf16 %v1393, %v1389
    %v1555 = vpack.c.bf16 %v1401, %v1397
    %v1556 = vpack.c.bf16 %v1403, %v1399
    %v1557 = vpack.c.bf16 %v1411, %v1407
    %v1558 = vpack.c.bf16 %v1413, %v1409
    %v1559 = vpack.c.bf16 %v1421, %v1417
    %v1560 = vpack.c.bf16 %v1423, %v1419
    %v1561 = vpack.c.bf16 %v1431, %v1427
    %v1562 = vpack.c.bf16 %v1433, %v1429
    %v1563 = vpack.c.bf16 %v1441, %v1437
    %v1564 = vpack.c.bf16 %v1443, %v1439
    %v1565 = vpack.c.bf16 %v1451, %v1447
    %v1566 = vpack.c.bf16 %v1453, %v1449
    %v1567 = vpack.c.bf16 %v1461, %v1457
    %v1568 = vpack.c.bf16 %v1463, %v1459
    %v1569 = vpack.c.bf16 %v1471, %v1467
    %v1570 = vpack.c.bf16 %v1473, %v1469
    %v1571 = vpack.c.bf16 %v1481, %v1477
    %v1572 = vpack.c.bf16 %v1483, %v1479
    %v1573 = vpack.c.bf16 %v1491, %v1487
    %v1574 = vpack.c.bf16 %v1493, %v1489
    %v1575 = vpack.c.bf16 %v1501, %v1497
    %v1576 = vpack.c.bf16 %v1503, %v1499
    %v1577 = vpack.c.bf16 %v1511, %v1507
    %v1578 = vpack.c.bf16 %v1513, %v1509
    %v1643 = vunpack.c.l.b16 %v1515
    %v1644 = vunpack.c.l.b16 %v1516
    %v1645 = vunpack.c.h.b16 %v1515
    %v1646 = vunpack.c.h.b16 %v1516
    %v1647 = vunpack.c.l.b16 %v1517
    %v1648 = vunpack.c.l.b16 %v1518
    %v1649 = vunpack.c.h.b16 %v1517
    %v1650 = vunpack.c.h.b16 %v1518
    %v1651 = vunpack.c.l.b16 %v1519
    %v1652 = vunpack.c.l.b16 %v1520
    %v1653 = vunpack.c.h.b16 %v1519
    %v1654 = vunpack.c.h.b16 %v1520
    %v1655 = vunpack.c.l.b16 %v1521
    %v1656 = vunpack.c.l.b16 %v1522
    %v1657 = vunpack.c.h.b16 %v1521
    %v1658 = vunpack.c.h.b16 %v1522
    %v1659 = vunpack.c.l.b16 %v1523
    %v1660 = vunpack.c.l.b16 %v1524
    %v1661 = vunpack.c.h.b16 %v1523
    %v1662 = vunpack.c.h.b16 %v1524
    %v1663 = vunpack.c.l.b16 %v1525
    %v1664 = vunpack.c.l.b16 %v1526
    %v1665 = vunpack.c.h.b16 %v1525
    %v1666 = vunpack.c.h.b16 %v1526
    %v1667 = vunpack.c.l.b16 %v1527
    %v1668 = vunpack.c.l.b16 %v1528
    %v1669 = vunpack.c.h.b16 %v1527
    %v1670 = vunpack.c.h.b16 %v1528
    %v1671 = vunpack.c.l.b16 %v1529
    %v1672 = vunpack.c.l.b16 %v1530
    %v1673 = vunpack.c.h.b16 %v1529
    %v1674 = vunpack.c.h.b16 %v1530
    %v1675 = vunpack.c.l.b16 %v1531
    %v1676 = vunpack.c.l.b16 %v1532
    %v1677 = vunpack.c.h.b16 %v1531
    %v1678 = vunpack.c.h.b16 %v1532
    %v1679 = vunpack.c.l.b16 %v1533
    %v1680 = vunpack.c.l.b16 %v1534
    %v1681 = vunpack.c.h.b16 %v1533
    %v1682 = vunpack.c.h.b16 %v1534
    %v1683 = vunpack.c.l.b16 %v1535
    %v1684 = vunpack.c.l.b16 %v1536
    %v1685 = vunpack.c.h.b16 %v1535
    %v1686 = vunpack.c.h.b16 %v1536
    %v1687 = vunpack.c.l.b16 %v1537
    %v1688 = vunpack.c.l.b16 %v1538
    %v1689 = vunpack.c.h.b16 %v1537
    %v1690 = vunpack.c.h.b16 %v1538
    %v1691 = vunpack.c.l.b16 %v1539
    %v1692 = vunpack.c.l.b16 %v1540
    %v1693 = vunpack.c.h.b16 %v1539
    %v1694 = vunpack.c.h.b16 %v1540
    %v1695 = vunpack.c.l.b16 %v1541
    %v1696 = vunpack.c.l.b16 %v1542
    %v1697 = vunpack.c.h.b16 %v1541
    %v1698 = vunpack.c.h.b16 %v1542
    %v1699 = vunpack.c.l.b16 %v1543
    %v1700 = vunpack.c.l.b16 %v1544
    %v1701 = vunpack.c.h.b16 %v1543
    %v1702 = vunpack.c.h.b16 %v1544
    %v1703 = vunpack.c.l.b16 %v1545
    %v1704 = vunpack.c.l.b16 %v1546
    %v1705 = vunpack.c.h.b16 %v1545
    %v1706 = vunpack.c.h.b16 %v1546
    %v1707 = vunpack.c.l.b16 %v1547
    %v1708 = vunpack.c.l.b16 %v1548
    %v1709 = vunpack.c.h.b16 %v1547
    %v1710 = vunpack.c.h.b16 %v1548
    %v1711 = vunpack.c.l.b16 %v1549
    %v1712 = vunpack.c.l.b16 %v1550
    %v1713 = vunpack.c.h.b16 %v1549
    %v1714 = vunpack.c.h.b16 %v1550
    %v1715 = vunpack.c.l.b16 %v1551
    %v1716 = vunpack.c.l.b16 %v1552
    %v1717 = vunpack.c.h.b16 %v1551
    %v1718 = vunpack.c.h.b16 %v1552
    %v1719 = vunpack.c.l.b16 %v1553
    %v1720 = vunpack.c.l.b16 %v1554
    %v1721 = vunpack.c.h.b16 %v1553
    %v1722 = vunpack.c.h.b16 %v1554
    %v1723 = vunpack.c.l.b16 %v1555
    %v1724 = vunpack.c.l.b16 %v1556
    %v1725 = vunpack.c.h.b16 %v1555
    %v1726 = vunpack.c.h.b16 %v1556
    %v1727 = vunpack.c.l.b16 %v1557
    %v1728 = vunpack.c.l.b16 %v1558
    %v1729 = vunpack.c.h.b16 %v1557
    %v1730 = vunpack.c.h.b16 %v1558
    %v1731 = vunpack.c.l.b16 %v1559
    %v1732 = vunpack.c.l.b16 %v1560
    %v1733 = vunpack.c.h.b16 %v1559
    %v1734 = vunpack.c.h.b16 %v1560
    %v1735 = vunpack.c.l.b16 %v1561
    %v1736 = vunpack.c.l.b16 %v1562
    %v1737 = vunpack.c.h.b16 %v1561
    %v1738 = vunpack.c.h.b16 %v1562
    %v1739 = vunpack.c.l.b16 %v1563
    %v1740 = vunpack.c.l.b16 %v1564
    %v1741 = vunpack.c.h.b16 %v1563
    %v1742 = vunpack.c.h.b16 %v1564
    %v1743 = vunpack.c.l.b16 %v1565
    %v1744 = vunpack.c.l.b16 %v1566
    %v1745 = vunpack.c.h.b16 %v1565
    %v1746 = vunpack.c.h.b16 %v1566
    %v1747 = vunpack.c.l.b16 %v1567
    %v1748 = vunpack.c.l.b16 %v1568
    %v1749 = vunpack.c.h.b16 %v1567
    %v1750 = vunpack.c.h.b16 %v1568
    %v1751 = vunpack.c.l.b16 %v1569
    %v1752 = vunpack.c.l.b16 %v1570
    %v1753 = vunpack.c.h.b16 %v1569
    %v1754 = vunpack.c.h.b16 %v1570
    %v1755 = vunpack.c.l.b16 %v1571
    %v1756 = vunpack.c.l.b16 %v1572
    %v1757 = vunpack.c.h.b16 %v1571
    %v1758 = vunpack.c.h.b16 %v1572
    %v1759 = vunpack.c.l.b16 %v1573
    %v1760 = vunpack.c.l.b16 %v1574
    %v1761 = vunpack.c.h.b16 %v1573
    %v1762 = vunpack.c.h.b16 %v1574
    %v1763 = vunpack.c.l.b16 %v1575
    %v1764 = vunpack.c.l.b16 %v1576
    %v1765 = vunpack.c.h.b16 %v1575
    %v1766 = vunpack.c.h.b16 %v1576
    %v1767 = vunpack.c.l.b16 %v1577
    %v1768 = vunpack.c.l.b16 %v1578
    %v1769 = vunpack.c.h.b16 %v1577
    %v1770 = vunpack.c.h.b16 %v1578
    %v1771 = vpack.c.b16 %v1644, %v1643
    %v1772 = vpack.c.b16 %v1646, %v1645
    %v1773 = vpack.c.b16 %v1648, %v1647
    %v1774 = vpack.c.b16 %v1650, %v1649
    %v1775 = vpack.c.b16 %v1652, %v1651
    %v1776 = vpack.c.b16 %v1654, %v1653
    %v1777 = vpack.c.b16 %v1656, %v1655
    %v1778 = vpack.c.b16 %v1658, %v1657
    %v1779 = vpack.c.b16 %v1660, %v1659
    %v1780 = vpack.c.b16 %v1662, %v1661
    %v1781 = vpack.c.b16 %v1664, %v1663
    %v1782 = vpack.c.b16 %v1666, %v1665
    %v1783 = vpack.c.b16 %v1668, %v1667
    %v1784 = vpack.c.b16 %v1670, %v1669
    %v1785 = vpack.c.b16 %v1672, %v1671
    %v1786 = vpack.c.b16 %v1674, %v1673
    %v1787 = vpack.c.b16 %v1676, %v1675
    %v1788 = vpack.c.b16 %v1678, %v1677
    %v1789 = vpack.c.b16 %v1680, %v1679
    %v1790 = vpack.c.b16 %v1682, %v1681
    %v1791 = vpack.c.b16 %v1684, %v1683
    %v1792 = vpack.c.b16 %v1686, %v1685
    %v1793 = vpack.c.b16 %v1688, %v1687
    %v1794 = vpack.c.b16 %v1690, %v1689
    %v1795 = vpack.c.b16 %v1692, %v1691
    %v1796 = vpack.c.b16 %v1694, %v1693
    %v1797 = vpack.c.b16 %v1696, %v1695
    %v1798 = vpack.c.b16 %v1698, %v1697
    %v1799 = vpack.c.b16 %v1700, %v1699
    %v1800 = vpack.c.b16 %v1702, %v1701
    %v1801 = vpack.c.b16 %v1704, %v1703
    %v1802 = vpack.c.b16 %v1706, %v1705
    %v1803 = vpack.c.b16 %v1708, %v1707
    %v1804 = vpack.c.b16 %v1710, %v1709
    %v1805 = vpack.c.b16 %v1712, %v1711
    %v1806 = vpack.c.b16 %v1714, %v1713
    %v1807 = vpack.c.b16 %v1716, %v1715
    %v1808 = vpack.c.b16 %v1718, %v1717
    %v1809 = vpack.c.b16 %v1720, %v1719
    %v1810 = vpack.c.b16 %v1722, %v1721
    %v1811 = vpack.c.b16 %v1724, %v1723
    %v1812 = vpack.c.b16 %v1726, %v1725
    %v1813 = vpack.c.b16 %v1728, %v1727
    %v1814 = vpack.c.b16 %v1730, %v1729
    %v1815 = vpack.c.b16 %v1732, %v1731
    %v1816 = vpack.c.b16 %v1734, %v1733
    %v1817 = vpack.c.b16 %v1736, %v1735
    %v1818 = vpack.c.b16 %v1738, %v1737
    %v1819 = vpack.c.b16 %v1740, %v1739
    %v1820 = vpack.c.b16 %v1742, %v1741
    %v1821 = vpack.c.b16 %v1744, %v1743
    %v1822 = vpack.c.b16 %v1746, %v1745
    %v1823 = vpack.c.b16 %v1748, %v1747
    %v1824 = vpack.c.b16 %v1750, %v1749
    %v1825 = vpack.c.b16 %v1752, %v1751
    %v1826 = vpack.c.b16 %v1754, %v1753
    %v1827 = vpack.c.b16 %v1756, %v1755
    %v1828 = vpack.c.b16 %v1758, %v1757
    %v1829 = vpack.c.b16 %v1760, %v1759
    %v1830 = vpack.c.b16 %v1762, %v1761
    %v1831 = vpack.c.b16 %v1764, %v1763
    %v1832 = vpack.c.b16 %v1766, %v1765
    %v1833 = vpack.c.b16 %v1768, %v1767
    %v1834 = vpack.c.b16 %v1770, %v1769
    %1899 = vst [vmem:[%s2] sm:$0xff] %v1771
    %1900 = vst [vmem:[%s2 + $0x8] sm:$0xff] %v1772
    %1901 = vst [vmem:[%s2 + $0x10] sm:$0xff] %v1773
    %1902 = vst [vmem:[%s2 + $0x18] sm:$0xff] %v1774
    %1903 = vst [vmem:[%s2 + $0x20] sm:$0xff] %v1775
    %1904 = vst [vmem:[%s2 + $0x28] sm:$0xff] %v1776
    %1905 = vst [vmem:[%s2 + $0x30] sm:$0xff] %v1777
    %1906 = vst [vmem:[%s2 + $0x38] sm:$0xff] %v1778
    %1907 = vst [vmem:[%s2 + $0x40] sm:$0xff] %v1779
    %1908 = vst [vmem:[%s2 + $0x48] sm:$0xff] %v1780
    %1909 = vst [vmem:[%s2 + $0x50] sm:$0xff] %v1781
    %1910 = vst [vmem:[%s2 + $0x58] sm:$0xff] %v1782
    %1911 = vst [vmem:[%s2 + $0x60] sm:$0xff] %v1783
    %1912 = vst [vmem:[%s2 + $0x68] sm:$0xff] %v1784
    %1913 = vst [vmem:[%s2 + $0x70] sm:$0xff] %v1785
    %1914 = vst [vmem:[%s2 + $0x78] sm:$0xff] %v1786
    %1915 = vst [vmem:[%s2 + $0x80] sm:$0xff] %v1787
    %1916 = vst [vmem:[%s2 + $0x88] sm:$0xff] %v1788
    %1917 = vst [vmem:[%s2 + $0x90] sm:$0xff] %v1789
    %1918 = vst [vmem:[%s2 + $0x98] sm:$0xff] %v1790
    %1919 = vst [vmem:[%s2 + $0xa0] sm:$0xff] %v1791
    %1920 = vst [vmem:[%s2 + $0xa8] sm:$0xff] %v1792
    %1921 = vst [vmem:[%s2 + $0xb0] sm:$0xff] %v1793
    %1922 = vst [vmem:[%s2 + $0xb8] sm:$0xff] %v1794
    %1923 = vst [vmem:[%s2 + $0xc0] sm:$0xff] %v1795
    %1924 = vst [vmem:[%s2 + $0xc8] sm:$0xff] %v1796
    %1925 = vst [vmem:[%s2 + $0xd0] sm:$0xff] %v1797
    %1926 = vst [vmem:[%s2 + $0xd8] sm:$0xff] %v1798
    %1927 = vst [vmem:[%s2 + $0xe0] sm:$0xff] %v1799
    %1928 = vst [vmem:[%s2 + $0xe8] sm:$0xff] %v1800
    %1929 = vst [vmem:[%s2 + $0xf0] sm:$0xff] %v1801
    %1930 = vst [vmem:[%s2 + $0xf8] sm:$0xff] %v1802
    %1931 = vst [vmem:[%s2 + $0x100] sm:$0xff] %v1803
    %1932 = vst [vmem:[%s2 + $0x108] sm:$0xff] %v1804
    %1933 = vst [vmem:[%s2 + $0x110] sm:$0xff] %v1805
    %1934 = vst [vmem:[%s2 + $0x118] sm:$0xff] %v1806
    %1935 = vst [vmem:[%s2 + $0x120] sm:$0xff] %v1807
    %1936 = vst [vmem:[%s2 + $0x128] sm:$0xff] %v1808
    %1937 = vst [vmem:[%s2 + $0x130] sm:$0xff] %v1809
    %1938 = vst [vmem:[%s2 + $0x138] sm:$0xff] %v1810
    %1939 = vst [vmem:[%s2 + $0x140] sm:$0xff] %v1811
    %1940 = vst [vmem:[%s2 + $0x148] sm:$0xff] %v1812
    %1941 = vst [vmem:[%s2 + $0x150] sm:$0xff] %v1813
    %1942 = vst [vmem:[%s2 + $0x158] sm:$0xff] %v1814
    %1943 = vst [vmem:[%s2 + $0x160] sm:$0xff] %v1815
    %1944 = vst [vmem:[%s2 + $0x168] sm:$0xff] %v1816
    %1945 = vst [vmem:[%s2 + $0x170] sm:$0xff] %v1817
    %1946 = vst [vmem:[%s2 + $0x178] sm:$0xff] %v1818
    %1947 = vst [vmem:[%s2 + $0x180] sm:$0xff] %v1819
    %1948 = vst [vmem:[%s2 + $0x188] sm:$0xff] %v1820
    %1949 = vst [vmem:[%s2 + $0x190] sm:$0xff] %v1821
    %1950 = vst [vmem:[%s2 + $0x198] sm:$0xff] %v1822
    %1951 = vst [vmem:[%s2 + $0x1a0] sm:$0xff] %v1823
    %1952 = vst [vmem:[%s2 + $0x1a8] sm:$0xff] %v1824
    %1953 = vst [vmem:[%s2 + $0x1b0] sm:$0xff] %v1825
    %1954 = vst [vmem:[%s2 + $0x1b8] sm:$0xff] %v1826
    %1955 = vst [vmem:[%s2 + $0x1c0] sm:$0xff] %v1827
    %1956 = vst [vmem:[%s2 + $0x1c8] sm:$0xff] %v1828
    %1957 = vst [vmem:[%s2 + $0x1d0] sm:$0xff] %v1829
    %1958 = vst [vmem:[%s2 + $0x1d8] sm:$0xff] %v1830
    %1959 = vst [vmem:[%s2 + $0x1e0] sm:$0xff] %v1831
    %1960 = vst [vmem:[%s2 + $0x1e8] sm:$0xff] %v1832
    %1961 = vst [vmem:[%s2 + $0x1f0] sm:$0xff] %v1833
    %1962 = vst [vmem:[%s2 + $0x1f8] sm:$0xff] %v1834
    %v1963 = vunpack.c.l.bf16 %v1515
    %v1964 = vunpack.c.l.bf16 %v1516
    %v1965 = vunpack.c.h.bf16 %v1515
    %v1966 = vunpack.c.h.bf16 %v1516
    %v1967 = vunpack.c.l.bf16 %v1517
    %v1968 = vunpack.c.l.bf16 %v1518
    %v1969 = vunpack.c.h.bf16 %v1517
    %v1970 = vunpack.c.h.bf16 %v1518
    %v1971 = vunpack.c.l.bf16 %v1519
    %v1972 = vunpack.c.l.bf16 %v1520
    %v1973 = vunpack.c.h.bf16 %v1519
    %v1974 = vunpack.c.h.bf16 %v1520
    %v1975 = vunpack.c.l.bf16 %v1521
    %v1976 = vunpack.c.l.bf16 %v1522
    %v1977 = vunpack.c.h.bf16 %v1521
    %v1978 = vunpack.c.h.bf16 %v1522
    %v1979 = vunpack.c.l.bf16 %v1523
    %v1980 = vunpack.c.l.bf16 %v1524
    %v1981 = vunpack.c.h.bf16 %v1523
    %v1982 = vunpack.c.h.bf16 %v1524
    %v1983 = vunpack.c.l.bf16 %v1525
    %v1984 = vunpack.c.l.bf16 %v1526
    %v1985 = vunpack.c.h.bf16 %v1525
    %v1986 = vunpack.c.h.bf16 %v1526
    %v1987 = vunpack.c.l.bf16 %v1527
    %v1988 = vunpack.c.l.bf16 %v1528
    %v1989 = vunpack.c.h.bf16 %v1527
    %v1990 = vunpack.c.h.bf16 %v1528
    %v1991 = vunpack.c.l.bf16 %v1529
    %v1992 = vunpack.c.l.bf16 %v1530
    %v1993 = vunpack.c.h.bf16 %v1529
    %v1994 = vunpack.c.h.bf16 %v1530
    %v1995 = vunpack.c.l.bf16 %v1531
    %v1996 = vunpack.c.l.bf16 %v1532
    %v1997 = vunpack.c.h.bf16 %v1531
    %v1998 = vunpack.c.h.bf16 %v1532
    %v1999 = vunpack.c.l.bf16 %v1533
    %v2000 = vunpack.c.l.bf16 %v1534
    %v2001 = vunpack.c.h.bf16 %v1533
    %v2002 = vunpack.c.h.bf16 %v1534
    %v2003 = vunpack.c.l.bf16 %v1535
    %v2004 = vunpack.c.l.bf16 %v1536
    %v2005 = vunpack.c.h.bf16 %v1535
    %v2006 = vunpack.c.h.bf16 %v1536
    %v2007 = vunpack.c.l.bf16 %v1537
    %v2008 = vunpack.c.l.bf16 %v1538
    %v2009 = vunpack.c.h.bf16 %v1537
    %v2010 = vunpack.c.h.bf16 %v1538
    %v2011 = vunpack.c.l.bf16 %v1539
    %v2012 = vunpack.c.l.bf16 %v1540
    %v2013 = vunpack.c.h.bf16 %v1539
    %v2014 = vunpack.c.h.bf16 %v1540
    %v2015 = vunpack.c.l.bf16 %v1541
    %v2016 = vunpack.c.l.bf16 %v1542
    %v2017 = vunpack.c.h.bf16 %v1541
    %v2018 = vunpack.c.h.bf16 %v1542
    %v2019 = vunpack.c.l.bf16 %v1543
    %v2020 = vunpack.c.l.bf16 %v1544
    %v2021 = vunpack.c.h.bf16 %v1543
    %v2022 = vunpack.c.h.bf16 %v1544
    %v2023 = vunpack.c.l.bf16 %v1545
    %v2024 = vunpack.c.l.bf16 %v1546
    %v2025 = vunpack.c.h.bf16 %v1545
    %v2026 = vunpack.c.h.bf16 %v1546
    %v2027 = vunpack.c.l.bf16 %v1547
    %v2028 = vunpack.c.l.bf16 %v1548
    %v2029 = vunpack.c.h.bf16 %v1547
    %v2030 = vunpack.c.h.bf16 %v1548
    %v2031 = vunpack.c.l.bf16 %v1549
    %v2032 = vunpack.c.l.bf16 %v1550
    %v2033 = vunpack.c.h.bf16 %v1549
    %v2034 = vunpack.c.h.bf16 %v1550
    %v2035 = vunpack.c.l.bf16 %v1551
    %v2036 = vunpack.c.l.bf16 %v1552
    %v2037 = vunpack.c.h.bf16 %v1551
    %v2038 = vunpack.c.h.bf16 %v1552
    %v2039 = vunpack.c.l.bf16 %v1553
    %v2040 = vunpack.c.l.bf16 %v1554
    %v2041 = vunpack.c.h.bf16 %v1553
    %v2042 = vunpack.c.h.bf16 %v1554
    %v2043 = vunpack.c.l.bf16 %v1555
    %v2044 = vunpack.c.l.bf16 %v1556
    %v2045 = vunpack.c.h.bf16 %v1555
    %v2046 = vunpack.c.h.bf16 %v1556
    %v2047 = vunpack.c.l.bf16 %v1557
    %v2048 = vunpack.c.l.bf16 %v1558
    %v2049 = vunpack.c.h.bf16 %v1557
    %v2050 = vunpack.c.h.bf16 %v1558
    %v2051 = vunpack.c.l.bf16 %v1559
    %v2052 = vunpack.c.l.bf16 %v1560
    %v2053 = vunpack.c.h.bf16 %v1559
    %v2054 = vunpack.c.h.bf16 %v1560
    %v2055 = vunpack.c.l.bf16 %v1561
    %v2056 = vunpack.c.l.bf16 %v1562
    %v2057 = vunpack.c.h.bf16 %v1561
    %v2058 = vunpack.c.h.bf16 %v1562
    %v2059 = vunpack.c.l.bf16 %v1563
    %v2060 = vunpack.c.l.bf16 %v1564
    %v2061 = vunpack.c.h.bf16 %v1563
    %v2062 = vunpack.c.h.bf16 %v1564
    %v2063 = vunpack.c.l.bf16 %v1565
    %v2064 = vunpack.c.l.bf16 %v1566
    %v2065 = vunpack.c.h.bf16 %v1565
    %v2066 = vunpack.c.h.bf16 %v1566
    %v2067 = vunpack.c.l.bf16 %v1567
    %v2068 = vunpack.c.l.bf16 %v1568
    %v2069 = vunpack.c.h.bf16 %v1567
    %v2070 = vunpack.c.h.bf16 %v1568
    %v2071 = vunpack.c.l.bf16 %v1569
    %v2072 = vunpack.c.l.bf16 %v1570
    %v2073 = vunpack.c.h.bf16 %v1569
    %v2074 = vunpack.c.h.bf16 %v1570
    %v2075 = vunpack.c.l.bf16 %v1571
    %v2076 = vunpack.c.l.bf16 %v1572
    %v2077 = vunpack.c.h.bf16 %v1571
    %v2078 = vunpack.c.h.bf16 %v1572
    %v2079 = vunpack.c.l.bf16 %v1573
    %v2080 = vunpack.c.l.bf16 %v1574
    %v2081 = vunpack.c.h.bf16 %v1573
    %v2082 = vunpack.c.h.bf16 %v1574
    %v2083 = vunpack.c.l.bf16 %v1575
    %v2084 = vunpack.c.l.bf16 %v1576
    %v2085 = vunpack.c.h.bf16 %v1575
    %v2086 = vunpack.c.h.bf16 %v1576
    %v2087 = vunpack.c.l.bf16 %v1577
    %v2088 = vunpack.c.l.bf16 %v1578
    %v2089 = vunpack.c.h.bf16 %v1577
    %v2090 = vunpack.c.h.bf16 %v1578
    %v2091 = vadd.f32 %v1963, %v1965
    %v2092 = vadd.f32 %v2091, %v1967
    %v2093 = vadd.f32 %v2092, %v1969
    %v2094 = vadd.f32 %v2093, %v1971
    %v2095 = vadd.f32 %v2094, %v1973
    %v2096 = vadd.f32 %v2095, %v1975
    %v2097 = vadd.f32 %v2096, %v1977
    %v2098 = vadd.f32 %v2097, %v1979
    %v2099 = vadd.f32 %v2098, %v1981
    %v2100 = vadd.f32 %v2099, %v1983
    %v2101 = vadd.f32 %v2100, %v1985
    %v2102 = vadd.f32 %v2101, %v1987
    %v2103 = vadd.f32 %v2102, %v1989
    %v2104 = vadd.f32 %v2103, %v1991
    %v2105 = vadd.f32 %v2104, %v1993
    %v2106 = vadd.f32 %v2105, %v1995
    %v2107 = vadd.f32 %v2106, %v1997
    %v2108 = vadd.f32 %v2107, %v1999
    %v2109 = vadd.f32 %v2108, %v2001
    %v2110 = vadd.f32 %v2109, %v2003
    %v2111 = vadd.f32 %v2110, %v2005
    %v2112 = vadd.f32 %v2111, %v2007
    %v2113 = vadd.f32 %v2112, %v2009
    %v2114 = vadd.f32 %v2113, %v2011
    %v2115 = vadd.f32 %v2114, %v2013
    %v2116 = vadd.f32 %v2115, %v2015
    %v2117 = vadd.f32 %v2116, %v2017
    %v2118 = vadd.f32 %v2117, %v2019
    %v2119 = vadd.f32 %v2118, %v2021
    %v2120 = vadd.f32 %v2119, %v2023
    %v2121 = vadd.f32 %v2120, %v2025
    %v2122 = vadd.f32 %v2121, %v2027
    %v2123 = vadd.f32 %v2122, %v2029
    %v2124 = vadd.f32 %v2123, %v2031
    %v2125 = vadd.f32 %v2124, %v2033
    %v2126 = vadd.f32 %v2125, %v2035
    %v2127 = vadd.f32 %v2126, %v2037
    %v2128 = vadd.f32 %v2127, %v2039
    %v2129 = vadd.f32 %v2128, %v2041
    %v2130 = vadd.f32 %v2129, %v2043
    %v2131 = vadd.f32 %v2130, %v2045
    %v2132 = vadd.f32 %v2131, %v2047
    %v2133 = vadd.f32 %v2132, %v2049
    %v2134 = vadd.f32 %v2133, %v2051
    %v2135 = vadd.f32 %v2134, %v2053
    %v2136 = vadd.f32 %v2135, %v2055
    %v2137 = vadd.f32 %v2136, %v2057
    %v2138 = vadd.f32 %v2137, %v2059
    %v2139 = vadd.f32 %v2138, %v2061
    %v2140 = vadd.f32 %v2139, %v2063
    %v2141 = vadd.f32 %v2140, %v2065
    %v2142 = vadd.f32 %v2141, %v2067
    %v2143 = vadd.f32 %v2142, %v2069
    %v2144 = vadd.f32 %v2143, %v2071
    %v2145 = vadd.f32 %v2144, %v2073
    %v2146 = vadd.f32 %v2145, %v2075
    %v2147 = vadd.f32 %v2146, %v2077
    %v2148 = vadd.f32 %v2147, %v2079
    %v2149 = vadd.f32 %v2148, %v2081
    %v2150 = vadd.f32 %v2149, %v2083
    %v2151 = vadd.f32 %v2150, %v2085
    %v2152 = vadd.f32 %v2151, %v2087
    %v2153 = vadd.f32 %v2152, %v2089
    %v2154 = vrot.slane %v2153, 4
    %v2155 = vadd.f32 %v2153, %v2154
    %v2156 = vrot.slane %v2155, 2
    %v2157 = vadd.f32 %v2155, %v2156
    %v2158 = vrot.slane %v2157, 1
    %v2159 = vadd.f32 %v2157, %v2158
    %v2160 = vadd.f32 %v1964, %v1966
    %v2161 = vadd.f32 %v2160, %v1968
    %v2162 = vadd.f32 %v2161, %v1970
    %v2163 = vadd.f32 %v2162, %v1972
    %v2164 = vadd.f32 %v2163, %v1974
    %v2165 = vadd.f32 %v2164, %v1976
    %v2166 = vadd.f32 %v2165, %v1978
    %v2167 = vadd.f32 %v2166, %v1980
    %v2168 = vadd.f32 %v2167, %v1982
    %v2169 = vadd.f32 %v2168, %v1984
    %v2170 = vadd.f32 %v2169, %v1986
    %v2171 = vadd.f32 %v2170, %v1988
    %v2172 = vadd.f32 %v2171, %v1990
    %v2173 = vadd.f32 %v2172, %v1992
    %v2174 = vadd.f32 %v2173, %v1994
    %v2175 = vadd.f32 %v2174, %v1996
    %v2176 = vadd.f32 %v2175, %v1998
    %v2177 = vadd.f32 %v2176, %v2000
    %v2178 = vadd.f32 %v2177, %v2002
    %v2179 = vadd.f32 %v2178, %v2004
    %v2180 = vadd.f32 %v2179, %v2006
    %v2181 = vadd.f32 %v2180, %v2008
    %v2182 = vadd.f32 %v2181, %v2010
    %v2183 = vadd.f32 %v2182, %v2012
    %v2184 = vadd.f32 %v2183, %v2014
    %v2185 = vadd.f32 %v2184, %v2016
    %v2186 = vadd.f32 %v2185, %v2018
    %v2187 = vadd.f32 %v2186, %v2020
    %v2188 = vadd.f32 %v2187, %v2022
    %v2189 = vadd.f32 %v2188, %v2024
    %v2190 = vadd.f32 %v2189, %v2026
    %v2191 = vadd.f32 %v2190, %v2028
    %v2192 = vadd.f32 %v2191, %v2030
    %v2193 = vadd.f32 %v2192, %v2032
    %v2194 = vadd.f32 %v2193, %v2034
    %v2195 = vadd.f32 %v2194, %v2036
    %v2196 = vadd.f32 %v2195, %v2038
    %v2197 = vadd.f32 %v2196, %v2040
    %v2198 = vadd.f32 %v2197, %v2042
    %v2199 = vadd.f32 %v2198, %v2044
    %v2200 = vadd.f32 %v2199, %v2046
    %v2201 = vadd.f32 %v2200, %v2048
    %v2202 = vadd.f32 %v2201, %v2050
    %v2203 = vadd.f32 %v2202, %v2052
    %v2204 = vadd.f32 %v2203, %v2054
    %v2205 = vadd.f32 %v2204, %v2056
    %v2206 = vadd.f32 %v2205, %v2058
    %v2207 = vadd.f32 %v2206, %v2060
    %v2208 = vadd.f32 %v2207, %v2062
    %v2209 = vadd.f32 %v2208, %v2064
    %v2210 = vadd.f32 %v2209, %v2066
    %v2211 = vadd.f32 %v2210, %v2068
    %v2212 = vadd.f32 %v2211, %v2070
    %v2213 = vadd.f32 %v2212, %v2072
    %v2214 = vadd.f32 %v2213, %v2074
    %v2215 = vadd.f32 %v2214, %v2076
    %v2216 = vadd.f32 %v2215, %v2078
    %v2217 = vadd.f32 %v2216, %v2080
    %v2218 = vadd.f32 %v2217, %v2082
    %v2219 = vadd.f32 %v2218, %v2084
    %v2220 = vadd.f32 %v2219, %v2086
    %v2221 = vadd.f32 %v2220, %v2088
    %v2222 = vadd.f32 %v2221, %v2090
    %v2223 = vrot.slane %v2222, 4
    %v2224 = vadd.f32 %v2222, %v2223
    %v2225 = vrot.slane %v2224, 2
    %v2226 = vadd.f32 %v2224, %v2225
    %v2227 = vrot.slane %v2226, 1
    %v2228 = vadd.f32 %v2226, %v2227
    %v2231 = vcombine.low %v2159, %v2228
    %v2233 = vunpack.c.l.s4 1966171168
    %v2234 = vunpack.c.0.s8 %v2233
    %v2235 = vlaneseq
    %v2236 = vshrl.u32 %v2235, 7
    %v2237 = vsub.s32 %v2234, %v2236
    %v2238 = vrot.slane %v2231, %v2237
    %v2240 = vunpack.c.l.s4 1966171168
    %v2241 = vunpack.c.0.s8 %v2240
    %v2242 = vlaneseq
    %v2243 = vshrl.u32 %v2242, 7
    %v2244 = vsub.s32 %v2241, %v2243
    %v2245 = vrot.slane %v2238, %v2244
    %v2247 = vlaneseq
    %vm2248 = vcmp.ge.s32.totalorder %v2247, 0
    %vm2249 = vcmp.lt.s32.totalorder %v2247, 256
    %vm2250 = vmand %vm2248, %vm2249
    %2251 = vst.msk [vmem:[%s3] ss:$2 sm:$0x3] %vm2250, %v2245
    %v2252 = vmul.f32 %v1963, %v1963
    %v2253 = vmul.f32 %v1964, %v1964
    %v2254 = vmul.f32 %v1965, %v1965
    %v2255 = vmul.f32 %v1966, %v1966
    %v2256 = vmul.f32 %v1967, %v1967
    %v2257 = vmul.f32 %v1968, %v1968
    %v2258 = vmul.f32 %v1969, %v1969
    %v2259 = vmul.f32 %v1970, %v1970
    %v2260 = vmul.f32 %v1971, %v1971
    %v2261 = vmul.f32 %v1972, %v1972
    %v2262 = vmul.f32 %v1973, %v1973
    %v2263 = vmul.f32 %v1974, %v1974
    %v2264 = vmul.f32 %v1975, %v1975
    %v2265 = vmul.f32 %v1976, %v1976
    %v2266 = vmul.f32 %v1977, %v1977
    %v2267 = vmul.f32 %v1978, %v1978
    %v2268 = vmul.f32 %v1979, %v1979
    %v2269 = vmul.f32 %v1980, %v1980
    %v2270 = vmul.f32 %v1981, %v1981
    %v2271 = vmul.f32 %v1982, %v1982
    %v2272 = vmul.f32 %v1983, %v1983
    %v2273 = vmul.f32 %v1984, %v1984
    %v2274 = vmul.f32 %v1985, %v1985
    %v2275 = vmul.f32 %v1986, %v1986
    %v2276 = vmul.f32 %v1987, %v1987
    %v2277 = vmul.f32 %v1988, %v1988
    %v2278 = vmul.f32 %v1989, %v1989
    %v2279 = vmul.f32 %v1990, %v1990
    %v2280 = vmul.f32 %v1991, %v1991
    %v2281 = vmul.f32 %v1992, %v1992
    %v2282 = vmul.f32 %v1993, %v1993
    %v2283 = vmul.f32 %v1994, %v1994
    %v2284 = vmul.f32 %v1995, %v1995
    %v2285 = vmul.f32 %v1996, %v1996
    %v2286 = vmul.f32 %v1997, %v1997
    %v2287 = vmul.f32 %v1998, %v1998
    %v2288 = vmul.f32 %v1999, %v1999
    %v2289 = vmul.f32 %v2000, %v2000
    %v2290 = vmul.f32 %v2001, %v2001
    %v2291 = vmul.f32 %v2002, %v2002
    %v2292 = vmul.f32 %v2003, %v2003
    %v2293 = vmul.f32 %v2004, %v2004
    %v2294 = vmul.f32 %v2005, %v2005
    %v2295 = vmul.f32 %v2006, %v2006
    %v2296 = vmul.f32 %v2007, %v2007
    %v2297 = vmul.f32 %v2008, %v2008
    %v2298 = vmul.f32 %v2009, %v2009
    %v2299 = vmul.f32 %v2010, %v2010
    %v2300 = vmul.f32 %v2011, %v2011
    %v2301 = vmul.f32 %v2012, %v2012
    %v2302 = vmul.f32 %v2013, %v2013
    %v2303 = vmul.f32 %v2014, %v2014
    %v2304 = vmul.f32 %v2015, %v2015
    %v2305 = vmul.f32 %v2016, %v2016
    %v2306 = vmul.f32 %v2017, %v2017
    %v2307 = vmul.f32 %v2018, %v2018
    %v2308 = vmul.f32 %v2019, %v2019
    %v2309 = vmul.f32 %v2020, %v2020
    %v2310 = vmul.f32 %v2021, %v2021
    %v2311 = vmul.f32 %v2022, %v2022
    %v2312 = vmul.f32 %v2023, %v2023
    %v2313 = vmul.f32 %v2024, %v2024
    %v2314 = vmul.f32 %v2025, %v2025
    %v2315 = vmul.f32 %v2026, %v2026
    %v2316 = vmul.f32 %v2027, %v2027
    %v2317 = vmul.f32 %v2028, %v2028
    %v2318 = vmul.f32 %v2029, %v2029
    %v2319 = vmul.f32 %v2030, %v2030
    %v2320 = vmul.f32 %v2031, %v2031
    %v2321 = vmul.f32 %v2032, %v2032
    %v2322 = vmul.f32 %v2033, %v2033
    %v2323 = vmul.f32 %v2034, %v2034
    %v2324 = vmul.f32 %v2035, %v2035
    %v2325 = vmul.f32 %v2036, %v2036
    %v2326 = vmul.f32 %v2037, %v2037
    %v2327 = vmul.f32 %v2038, %v2038
    %v2328 = vmul.f32 %v2039, %v2039
    %v2329 = vmul.f32 %v2040, %v2040
    %v2330 = vmul.f32 %v2041, %v2041
    %v2331 = vmul.f32 %v2042, %v2042
    %v2332 = vmul.f32 %v2043, %v2043
    %v2333 = vmul.f32 %v2044, %v2044
    %v2334 = vmul.f32 %v2045, %v2045
    %v2335 = vmul.f32 %v2046, %v2046
    %v2336 = vmul.f32 %v2047, %v2047
    %v2337 = vmul.f32 %v2048, %v2048
    %v2338 = vmul.f32 %v2049, %v2049
    %v2339 = vmul.f32 %v2050, %v2050
    %v2340 = vmul.f32 %v2051, %v2051
    %v2341 = vmul.f32 %v2052, %v2052
    %v2342 = vmul.f32 %v2053, %v2053
    %v2343 = vmul.f32 %v2054, %v2054
    %v2344 = vmul.f32 %v2055, %v2055
    %v2345 = vmul.f32 %v2056, %v2056
    %v2346 = vmul.f32 %v2057, %v2057
    %v2347 = vmul.f32 %v2058, %v2058
    %v2348 = vmul.f32 %v2059, %v2059
    %v2349 = vmul.f32 %v2060, %v2060
    %v2350 = vmul.f32 %v2061, %v2061
    %v2351 = vmul.f32 %v2062, %v2062
    %v2352 = vmul.f32 %v2063, %v2063
    %v2353 = vmul.f32 %v2064, %v2064
    %v2354 = vmul.f32 %v2065, %v2065
    %v2355 = vmul.f32 %v2066, %v2066
    %v2356 = vmul.f32 %v2067, %v2067
    %v2357 = vmul.f32 %v2068, %v2068
    %v2358 = vmul.f32 %v2069, %v2069
    %v2359 = vmul.f32 %v2070, %v2070
    %v2360 = vmul.f32 %v2071, %v2071
    %v2361 = vmul.f32 %v2072, %v2072
    %v2362 = vmul.f32 %v2073, %v2073
    %v2363 = vmul.f32 %v2074, %v2074
    %v2364 = vmul.f32 %v2075, %v2075
    %v2365 = vmul.f32 %v2076, %v2076
    %v2366 = vmul.f32 %v2077, %v2077
    %v2367 = vmul.f32 %v2078, %v2078
    %v2368 = vmul.f32 %v2079, %v2079
    %v2369 = vmul.f32 %v2080, %v2080
    %v2370 = vmul.f32 %v2081, %v2081
    %v2371 = vmul.f32 %v2082, %v2082
    %v2372 = vmul.f32 %v2083, %v2083
    %v2373 = vmul.f32 %v2084, %v2084
    %v2374 = vmul.f32 %v2085, %v2085
    %v2375 = vmul.f32 %v2086, %v2086
    %v2376 = vmul.f32 %v2087, %v2087
    %v2377 = vmul.f32 %v2088, %v2088
    %v2378 = vmul.f32 %v2089, %v2089
    %v2379 = vmul.f32 %v2090, %v2090
    %v2380 = vadd.f32 %v2252, %v2254
    %v2381 = vadd.f32 %v2380, %v2256
    %v2382 = vadd.f32 %v2381, %v2258
    %v2383 = vadd.f32 %v2382, %v2260
    %v2384 = vadd.f32 %v2383, %v2262
    %v2385 = vadd.f32 %v2384, %v2264
    %v2386 = vadd.f32 %v2385, %v2266
    %v2387 = vadd.f32 %v2386, %v2268
    %v2388 = vadd.f32 %v2387, %v2270
    %v2389 = vadd.f32 %v2388, %v2272
    %v2390 = vadd.f32 %v2389, %v2274
    %v2391 = vadd.f32 %v2390, %v2276
    %v2392 = vadd.f32 %v2391, %v2278
    %v2393 = vadd.f32 %v2392, %v2280
    %v2394 = vadd.f32 %v2393, %v2282
    %v2395 = vadd.f32 %v2394, %v2284
    %v2396 = vadd.f32 %v2395, %v2286
    %v2397 = vadd.f32 %v2396, %v2288
    %v2398 = vadd.f32 %v2397, %v2290
    %v2399 = vadd.f32 %v2398, %v2292
    %v2400 = vadd.f32 %v2399, %v2294
    %v2401 = vadd.f32 %v2400, %v2296
    %v2402 = vadd.f32 %v2401, %v2298
    %v2403 = vadd.f32 %v2402, %v2300
    %v2404 = vadd.f32 %v2403, %v2302
    %v2405 = vadd.f32 %v2404, %v2304
    %v2406 = vadd.f32 %v2405, %v2306
    %v2407 = vadd.f32 %v2406, %v2308
    %v2408 = vadd.f32 %v2407, %v2310
    %v2409 = vadd.f32 %v2408, %v2312
    %v2410 = vadd.f32 %v2409, %v2314
    %v2411 = vadd.f32 %v2410, %v2316
    %v2412 = vadd.f32 %v2411, %v2318
    %v2413 = vadd.f32 %v2412, %v2320
    %v2414 = vadd.f32 %v2413, %v2322
    %v2415 = vadd.f32 %v2414, %v2324
    %v2416 = vadd.f32 %v2415, %v2326
    %v2417 = vadd.f32 %v2416, %v2328
    %v2418 = vadd.f32 %v2417, %v2330
    %v2419 = vadd.f32 %v2418, %v2332
    %v2420 = vadd.f32 %v2419, %v2334
    %v2421 = vadd.f32 %v2420, %v2336
    %v2422 = vadd.f32 %v2421, %v2338
    %v2423 = vadd.f32 %v2422, %v2340
    %v2424 = vadd.f32 %v2423, %v2342
    %v2425 = vadd.f32 %v2424, %v2344
    %v2426 = vadd.f32 %v2425, %v2346
    %v2427 = vadd.f32 %v2426, %v2348
    %v2428 = vadd.f32 %v2427, %v2350
    %v2429 = vadd.f32 %v2428, %v2352
    %v2430 = vadd.f32 %v2429, %v2354
    %v2431 = vadd.f32 %v2430, %v2356
    %v2432 = vadd.f32 %v2431, %v2358
    %v2433 = vadd.f32 %v2432, %v2360
    %v2434 = vadd.f32 %v2433, %v2362
    %v2435 = vadd.f32 %v2434, %v2364
    %v2436 = vadd.f32 %v2435, %v2366
    %v2437 = vadd.f32 %v2436, %v2368
    %v2438 = vadd.f32 %v2437, %v2370
    %v2439 = vadd.f32 %v2438, %v2372
    %v2440 = vadd.f32 %v2439, %v2374
    %v2441 = vadd.f32 %v2440, %v2376
    %v2442 = vadd.f32 %v2441, %v2378
    %v2443 = vrot.slane %v2442, 4
    %v2444 = vadd.f32 %v2442, %v2443
    %v2445 = vrot.slane %v2444, 2
    %v2446 = vadd.f32 %v2444, %v2445
    %v2447 = vrot.slane %v2446, 1
    %v2448 = vadd.f32 %v2446, %v2447
    %v2449 = vadd.f32 %v2253, %v2255
    %v2450 = vadd.f32 %v2449, %v2257
    %v2451 = vadd.f32 %v2450, %v2259
    %v2452 = vadd.f32 %v2451, %v2261
    %v2453 = vadd.f32 %v2452, %v2263
    %v2454 = vadd.f32 %v2453, %v2265
    %v2455 = vadd.f32 %v2454, %v2267
    %v2456 = vadd.f32 %v2455, %v2269
    %v2457 = vadd.f32 %v2456, %v2271
    %v2458 = vadd.f32 %v2457, %v2273
    %v2459 = vadd.f32 %v2458, %v2275
    %v2460 = vadd.f32 %v2459, %v2277
    %v2461 = vadd.f32 %v2460, %v2279
    %v2462 = vadd.f32 %v2461, %v2281
    %v2463 = vadd.f32 %v2462, %v2283
    %v2464 = vadd.f32 %v2463, %v2285
    %v2465 = vadd.f32 %v2464, %v2287
    %v2466 = vadd.f32 %v2465, %v2289
    %v2467 = vadd.f32 %v2466, %v2291
    %v2468 = vadd.f32 %v2467, %v2293
    %v2469 = vadd.f32 %v2468, %v2295
    %v2470 = vadd.f32 %v2469, %v2297
    %v2471 = vadd.f32 %v2470, %v2299
    %v2472 = vadd.f32 %v2471, %v2301
    %v2473 = vadd.f32 %v2472, %v2303
    %v2474 = vadd.f32 %v2473, %v2305
    %v2475 = vadd.f32 %v2474, %v2307
    %v2476 = vadd.f32 %v2475, %v2309
    %v2477 = vadd.f32 %v2476, %v2311
    %v2478 = vadd.f32 %v2477, %v2313
    %v2479 = vadd.f32 %v2478, %v2315
    %v2480 = vadd.f32 %v2479, %v2317
    %v2481 = vadd.f32 %v2480, %v2319
    %v2482 = vadd.f32 %v2481, %v2321
    %v2483 = vadd.f32 %v2482, %v2323
    %v2484 = vadd.f32 %v2483, %v2325
    %v2485 = vadd.f32 %v2484, %v2327
    %v2486 = vadd.f32 %v2485, %v2329
    %v2487 = vadd.f32 %v2486, %v2331
    %v2488 = vadd.f32 %v2487, %v2333
    %v2489 = vadd.f32 %v2488, %v2335
    %v2490 = vadd.f32 %v2489, %v2337
    %v2491 = vadd.f32 %v2490, %v2339
    %v2492 = vadd.f32 %v2491, %v2341
    %v2493 = vadd.f32 %v2492, %v2343
    %v2494 = vadd.f32 %v2493, %v2345
    %v2495 = vadd.f32 %v2494, %v2347
    %v2496 = vadd.f32 %v2495, %v2349
    %v2497 = vadd.f32 %v2496, %v2351
    %v2498 = vadd.f32 %v2497, %v2353
    %v2499 = vadd.f32 %v2498, %v2355
    %v2500 = vadd.f32 %v2499, %v2357
    %v2501 = vadd.f32 %v2500, %v2359
    %v2502 = vadd.f32 %v2501, %v2361
    %v2503 = vadd.f32 %v2502, %v2363
    %v2504 = vadd.f32 %v2503, %v2365
    %v2505 = vadd.f32 %v2504, %v2367
    %v2506 = vadd.f32 %v2505, %v2369
    %v2507 = vadd.f32 %v2506, %v2371
    %v2508 = vadd.f32 %v2507, %v2373
    %v2509 = vadd.f32 %v2508, %v2375
    %v2510 = vadd.f32 %v2509, %v2377
    %v2511 = vadd.f32 %v2510, %v2379
    %v2512 = vrot.slane %v2511, 4
    %v2513 = vadd.f32 %v2511, %v2512
    %v2514 = vrot.slane %v2513, 2
    %v2515 = vadd.f32 %v2513, %v2514
    %v2516 = vrot.slane %v2515, 1
    %v2517 = vadd.f32 %v2515, %v2516
    %v2520 = vcombine.low %v2448, %v2517
    %v2522 = vunpack.c.l.s4 1966171168
    %v2523 = vunpack.c.0.s8 %v2522
    %v2524 = vlaneseq
    %v2525 = vshrl.u32 %v2524, 7
    %v2526 = vsub.s32 %v2523, %v2525
    %v2527 = vrot.slane %v2520, %v2526
    %v2529 = vunpack.c.l.s4 1966171168
    %v2530 = vunpack.c.0.s8 %v2529
    %v2531 = vlaneseq
    %v2532 = vshrl.u32 %v2531, 7
    %v2533 = vsub.s32 %v2530, %v2532
    %v2534 = vrot.slane %v2527, %v2533
    %s2536 = scalar_lea.vmem %s3, 1
    %2537 = vst.msk [vmem:[%s2536] ss:$2 sm:$0x3] %vm2250, %v2534
    // Predicated region
    $region18: #{dis_wgan_forward.3} parent=1 // pred_check
      _
    $region19: #{dis_wgan_forward.3} parent=1 // pred_check_branch
      %2539 = sbr.rel (0) target = $region21
    $region20: #{dis_wgan_forward.3} parent=1 // pred_region
      _
    $region21: #{dis_wgan_forward.3} parent=1 // pred_fallthru
      _
    // Predicated region
    $region22: #{dis_wgan_forward.3} parent=1 // pred_check
      _
    $region23: #{dis_wgan_forward.3} parent=1 // pred_check_branch
      %2541 = sbr.rel (0) target = $region25
    $region24: #{dis_wgan_forward.3} parent=1 // pred_region
      _
    $region25: #{dis_wgan_forward.3} parent=1 // pred_fallthru
      _
    // Predicated region
    $region26: #{dis_wgan_forward.3} parent=1 // pred_check
      _
    $region27: #{dis_wgan_forward.3} parent=1 // pred_check_branch
      %2543 = sbr.rel (0) target = $region29
    $region28: #{dis_wgan_forward.3} parent=1 // pred_region
      _
    $region29: #{dis_wgan_forward.3} parent=1 // pred_fallthru
      _
    // Predicated region
    $region30: #{dis_wgan_forward.3} parent=1 // pred_check
      _
    $region31: #{dis_wgan_forward.3} parent=1 // pred_check_branch
      %2545 = sbr.rel (0) target = $region33
    $region32: #{dis_wgan_forward.3} parent=1 // pred_region
      _
    $region33: #{dis_wgan_forward.3} parent=1 // pred_fallthru
      _
    %2546 = vsyncpa [#allocation3], 1
    %2547 = vsyncpa [#allocation5], 1

</llo_original>
